<compile_context>
chip_gen: v7x
topology: tpu7x:2x2x1
jax: 0.10.0
libtpu: 0.0.40
codegen_flags: <defaults>
</compile_context>

<pallas_src>
import math
import functools

import jax
import jax.numpy as jnp
from jax.experimental import pallas as pl
from jax.experimental.pallas import tpu as pltpu


def _layernorm(x, alpha, beta, eps):
    # Matches the PyTorch module: *unbiased* std (torch.std default) and eps
    # added to std (not variance).  Kept in f32.
    d = x.shape[-1]
    mean = jnp.mean(x, axis=-1, keepdims=True)
    var = jnp.sum((x - mean) ** 2, axis=-1, keepdims=True) / (d - 1)
    std = jnp.sqrt(var)
    return alpha * (x - mean) / (std + eps) + beta


def encoder_block_kernel(
    x_ref, mask_ref,
    wqkv_ref, wo_ref,
    alpha1_ref, beta1_ref,
    w1_ref, b1_ref, w2_ref, b2_ref,
    alpha2_ref, beta2_ref,
    out_ref,
    *, num_heads: int, eps: float,
):
    TB, S, D = x_ref.shape
    H = num_heads
    dk = D // H
    N = TB * S
    inv_sqrt_dk = 1.0 / math.sqrt(dk)

    cdt = wqkv_ref.dtype                          # MXU operand dtype (f32/bf16)
    approx = bool(cdt != jnp.float32)             # EUP approx recip on bf16

    # (TB, S, D) -> (TB*S, D): leading-dim merge only, lane dim unchanged.
    x = x_ref[...].reshape(N, D)
    mask = mask_ref[...]                          # (TB, S, S); 0 => masked

    # ---- residual connection 0: pre-LN + self-attention ----
    xn = _layernorm(x, alpha1_ref[...], beta1_ref[...], eps)        # (N, D) f32

    # Fused QKV projection with (q|k|v, head) as the dot_general batch dim:
    #   (3H, N, D) @ (3H, D, dk) -> (3H, N, dk)
    xb = jnp.broadcast_to(xn.astype(cdt), (3 * H, N, D))
    qkv = jnp.einsum("hnd,hdk->hnk", xb, wqkv_ref[...],
                     preferred_element_type=jnp.float32)
    q = qkv[:H] * inv_sqrt_dk                     # scale Q (f32, N*dk elems)
    k = qkv[H:2 * H]
    v = qkv[2 * H:]

    # Regroup (H, TB*S, dk) -> (H*TB, S, dk) so attention never mixes batch
    # elements.  Lane dim (dk) untouched; sublane splits are 8-row aligned.
    qb = q.reshape(H * TB, S, dk).astype(cdt)
    kb = k.reshape(H * TB, S, dk).astype(cdt)
    vb = v.reshape(H * TB, S, dk).astype(cdt)

    scores = jnp.einsum("bqd,bkd->bqk", qb, kb,
                        preferred_element_type=jnp.float32)    # (H*TB, S, S)
    mask_b = jnp.broadcast_to(mask[None], (H, TB, S, S)).reshape(H * TB, S, S)
    scores = jnp.where(mask_b == 0.0, -1000000000.0, scores)

    # Softmax in f32; one reciprocal per row instead of S divides per element.
    m = jnp.max(scores, axis=-1, keepdims=True)
    e = jnp.exp(scores - m)
    p = e * pl.reciprocal(jnp.sum(e, axis=-1, keepdims=True), approx=approx)

    o = jnp.einsum("bqk,bkd->bqd", p.astype(cdt), vb,
                   preferred_element_type=jnp.float32)         # (H*TB, S, dk)

    # Output projection: sum_h o_h @ Wo[h*dk:(h+1)*dk, :] as a single batched
    # matmul + leading-axis reduce (== concat(heads) @ Wo, no lane concat).
    o_h = o.reshape(H, N, dk).astype(cdt)                      # (H, N, dk)
    proj = jnp.einsum("hnk,hkd->hnd", o_h, wo_ref[...],
                      preferred_element_type=jnp.float32)      # (H, N, D)
    x1 = x + jnp.sum(proj, axis=0)                # residual (dropout = identity)

    # ---- residual connection 1: pre-LN + feed-forward ----
    x1n = _layernorm(x1, alpha2_ref[...], beta2_ref[...], eps)
    h1 = jnp.dot(x1n.astype(cdt), w1_ref[...],
                 preferred_element_type=jnp.float32) + b1_ref[...]
    h1 = jnp.maximum(h1, 0.0)                      # relu
    ff = jnp.dot(h1.astype(cdt), w2_ref[...],
                 preferred_element_type=jnp.float32) + b2_ref[...]

    # (N, D) -> (TB, S, D): leading-dim split only.
    out_ref[...] = (x1 + ff).reshape(TB, S, D).astype(out_ref.dtype)


def _pick_batch_tile(B, S):
    """Batch elements folded into one grid step so M = TB*S >= ~128 rows."""
    if S % 8 != 0:
        return 1
    tb = min(B, max(1, -(-128 // S)))
    while B % tb:
        tb -= 1
    return tb


def encoder_block(x, src_mask, params, *, num_heads: int, eps: float = 1e-6,
                  compute_dtype=jnp.float32):
    """x: (B, S, D) f32, src_mask: (B, S, S) (0 => masked position)."""
    B, S, D = x.shape
    H = num_heads
    assert D % H == 0, "d_model must be divisible by h"
    dk = D // H
    d_ff = params["w1"].shape[1]

    TB = _pick_batch_tile(B, S)
    grid = (B // TB,)

    cdt = compute_dtype
    # Per-head projection weights: heads become the MXU batch dim inside the
    # kernel (no lane slicing/concatenation in VMEM).  Q/K/V are stacked into
    # one (3H, D, dk) tensor so the kernel issues a single fused batched
    # matmul.  Matmul weights are cast to the compute dtype wrapper-side
    # (halves their DMA when bf16).
    wq_h = params["wq"].reshape(D, H, dk).transpose(1, 0, 2)
    wk_h = params["wk"].reshape(D, H, dk).transpose(1, 0, 2)
    wv_h = params["wv"].reshape(D, H, dk).transpose(1, 0, 2)
    wqkv = jnp.concatenate([wq_h, wk_h, wv_h], axis=0).astype(cdt)  # (3H,D,dk)
    wo_h = params["wo"].reshape(H, dk, D).astype(cdt)
    w1 = params["w1"].astype(cdt)
    w2 = params["w2"].astype(cdt)

    def const_spec(shape):
        # Constant (grid-invariant) block covering the whole array.
        return pl.BlockSpec(shape, lambda b: (0,) * len(shape))

    kernel = functools.partial(encoder_block_kernel, num_heads=H, eps=eps)

    # NOTE: constant weight blocks are still double-buffered by default; for
    # production-sized D/d_ff they should be single-buffered and the FFN /
    # attention tiled (see header comment).  At these shapes all operands fit
    # comfortably in the 32 MiB scoped VMEM set below.
    return pl.pallas_call(
        kernel,
        out_shape=jax.ShapeDtypeStruct((B, S, D), jnp.float32),
        grid=grid,
        in_specs=[
            pl.BlockSpec((TB, S, D), lambda b: (b, 0, 0)),   # x
            pl.BlockSpec((TB, S, S), lambda b: (b, 0, 0)),   # mask
            const_spec((3 * H, D, dk)),                      # wqkv (per-head)
            const_spec((H, dk, D)),                          # wo (per-head)
            const_spec((1, D)),                              # alpha1
            const_spec((1, D)),                              # beta1
            const_spec((D, d_ff)),                           # w1
            const_spec((1, d_ff)),                           # b1
            const_spec((d_ff, D)),                           # w2
            const_spec((1, D)),                              # b2
            const_spec((1, D)),                              # alpha2
            const_spec((1, D)),                              # beta2
        ],
        out_specs=pl.BlockSpec((TB, S, D), lambda b: (b, 0, 0)),
        compiler_params=pltpu.CompilerParams(
            dimension_semantics=("parallel",),
            vmem_limit_bytes=32 * 1024 * 1024),
    )(
        x.astype(jnp.float32), src_mask.astype(jnp.float32),
        wqkv, wo_h,
        params["alpha1"].reshape(1, D).astype(jnp.float32),
        params["beta1"].reshape(1, D).astype(jnp.float32),
        w1, params["b1"].reshape(1, d_ff).astype(jnp.float32),
        w2, params["b2"].reshape(1, D).astype(jnp.float32),
        params["alpha2"].reshape(1, D).astype(jnp.float32),
        params["beta2"].reshape(1, D).astype(jnp.float32),
    )


def encoder_block_reference(x, src_mask, params, *, num_heads: int, eps: float = 1e-6):
    """Pure-JAX reference mirroring the PyTorch EncoderBlock (eval mode)."""
    B, S, D = x.shape
    dk = D // num_heads

    def ln(y, a, b):
        mean = jnp.mean(y, axis=-1, keepdims=True)
        var = jnp.sum((y - mean) ** 2, axis=-1, keepdims=True) / (D - 1)
        std = jnp.sqrt(var)
        return a * (y - mean) / (std + eps) + b

    xn = ln(x, params["alpha1"], params["beta1"])
    q = xn @ params["wq"]
    k = xn @ params["wk"]
    v = xn @ params["wv"]
    q = q.reshape(B, S, num_heads, dk).transpose(0, 2, 1, 3)
    k = k.reshape(B, S, num_heads, dk).transpose(0, 2, 1, 3)
    v = v.reshape(B, S, num_heads, dk).transpose(0, 2, 1, 3)
    scores = jnp.einsum("bhqd,bhkd->bhqk", q, k) / math.sqrt(dk)
    scores = jnp.where(src_mask[:, None, :, :] == 0.0, -1000000000.0, scores)
    attn = jax.nn.softmax(scores, axis=-1)
    o = jnp.einsum("bhqk,bhkd->bhqd", attn, v)
    o = o.transpose(0, 2, 1, 3).reshape(B, S, D)
    x1 = x + o @ params["wo"]

    x1n = ln(x1, params["alpha2"], params["beta2"])
    ff = jnp.maximum(x1n @ params["w1"] + params["b1"], 0.0) @ params["w2"] + params["b2"]
    return x1 + ff


if __name__ == "__main__":
    # Small shapes consistent with the module: d_model=32, h=4, d_ff=64.
    B, S, D, H, D_FF = 2, 8, 32, 4, 64

    key = jax.random.PRNGKey(0)
    keys = jax.random.split(key, 10)

    # Deterministic synthetic parameters. Linear weights stored as (in, out),
    # i.e. already transposed vs. PyTorch's (out, in) convention.
    params = {
        "wq": 0.05 * jax.random.normal(keys[0], (D, D), jnp.float32),
        "wk": 0.05 * jax.random.normal(keys[1], (D, D), jnp.float32),
        "wv": 0.05 * jax.random.normal(keys[2], (D, D), jnp.float32),
        "wo": 0.05 * jax.random.normal(keys[3], (D, D), jnp.float32),
        "w1": 0.05 * jax.random.normal(keys[4], (D, D_FF), jnp.float32),
        "b1": 0.01 * jax.random.normal(keys[5], (D_FF,), jnp.float32),
        "w2": 0.05 * jax.random.normal(keys[6], (D_FF, D), jnp.float32),
        "b2": 0.01 * jax.random.normal(keys[7], (D,), jnp.float32),
        "alpha1": jnp.ones((D,), jnp.float32),
        "beta1": jnp.zeros((D,), jnp.float32),
        "alpha2": jnp.ones((D,), jnp.float32),
        "beta2": jnp.zeros((D,), jnp.float32),
    }

    x = jax.random.normal(keys[8], (B, S, D), jnp.float32)

    # src_mask: (B, S, S); 1 = attend, 0 = masked. Mask the last two keys of
    # batch element 1 to exercise the masked-fill path.
    src_mask = jnp.ones((B, S, S), jnp.float32)
    src_mask = src_mask.at[1, :, S - 2:].set(0.0)

    ref = encoder_block_reference(x, src_mask, params, num_heads=H)

    # f32 MXU-operand path: strict check.
    out = jax.block_until_ready(encoder_block(x, src_mask, params, num_heads=H))
    assert out.shape == (B, S, D)
    assert jnp.allclose(out, ref, atol=1e-4, rtol=1e-4), (
        float(jnp.max(jnp.abs(out - ref))))

    # bf16 MXU-operand path (f32 accumulation / LN / softmax): looser check.
    out_bf16 = jax.block_until_ready(
        encoder_block(x, src_mask, params, num_heads=H,
                      compute_dtype=jnp.bfloat16))
    assert jnp.allclose(out_bf16, ref, atol=5e-2, rtol=5e-2), (
        float(jnp.max(jnp.abs(out_bf16 - ref))))

    # TODO(synk): dropout layers are modeled as identity (eval mode); training-mode
    # stochastic dropout would need pltpu.prng_* inside the kernel.
    print("KERNEL_OK")
</pallas_src>

<mosaic_0001>
module attributes {stable_mosaic.version = 11 : i64} {
  func.func @encoder_block_kernel(%arg0: i32, %arg1: memref<2x8x32xf32, #tpu.memory_space<vmem>>, %arg2: memref<2x8x8xf32, #tpu.memory_space<vmem>>, %arg3: memref<12x32x8xf32, #tpu.memory_space<vmem>>, %arg4: memref<4x8x32xf32, #tpu.memory_space<vmem>>, %arg5: memref<1x32xf32, #tpu.memory_space<vmem>>, %arg6: memref<1x32xf32, #tpu.memory_space<vmem>>, %arg7: memref<32x64xf32, #tpu.memory_space<vmem>>, %arg8: memref<1x64xf32, #tpu.memory_space<vmem>>, %arg9: memref<64x32xf32, #tpu.memory_space<vmem>>, %arg10: memref<1x32xf32, #tpu.memory_space<vmem>>, %arg11: memref<1x32xf32, #tpu.memory_space<vmem>>, %arg12: memref<1x32xf32, #tpu.memory_space<vmem>>, %arg13: memref<2x8x32xf32, #tpu.memory_space<vmem>>) attributes {dimension_semantics = [#tpu.dimension_semantics<parallel>], iteration_bounds = array<i64: 1>, scalar_prefetch = 0 : i64, scratch_operands = 0 : i64, tpu.core_type = #tpu.core_type<tc>, window_params = [{transform_indices = @transform_0, window_bounds = array<i64: 2, 8, 32>}, {transform_indices = @transform_1, window_bounds = array<i64: 2, 8, 8>}, {pipeline_mode = #tpu.pipeline_mode<synchronous>, transform_indices = @transform_2, window_bounds = array<i64: 12, 32, 8>}, {pipeline_mode = #tpu.pipeline_mode<synchronous>, transform_indices = @transform_3, window_bounds = array<i64: 4, 8, 32>}, {pipeline_mode = #tpu.pipeline_mode<synchronous>, transform_indices = @transform_4, window_bounds = array<i64: 1, 32>}, {pipeline_mode = #tpu.pipeline_mode<synchronous>, transform_indices = @transform_5, window_bounds = array<i64: 1, 32>}, {pipeline_mode = #tpu.pipeline_mode<synchronous>, transform_indices = @transform_6, window_bounds = array<i64: 32, 64>}, {pipeline_mode = #tpu.pipeline_mode<synchronous>, transform_indices = @transform_7, window_bounds = array<i64: 1, 64>}, {pipeline_mode = #tpu.pipeline_mode<synchronous>, transform_indices = @transform_8, window_bounds = array<i64: 64, 32>}, {pipeline_mode = #tpu.pipeline_mode<synchronous>, transform_indices = @transform_9, window_bounds = array<i64: 1, 32>}, {pipeline_mode = #tpu.pipeline_mode<synchronous>, transform_indices = @transform_10, window_bounds = array<i64: 1, 32>}, {pipeline_mode = #tpu.pipeline_mode<synchronous>, transform_indices = @transform_11, window_bounds = array<i64: 1, 32>}, {transform_indices = @transform_12, window_bounds = array<i64: 2, 8, 32>}]} {
    %c0 = arith.constant 0 : index
    %c0_0 = arith.constant 0 : index
    %c0_1 = arith.constant 0 : index
    %0 = vector.load %arg1[%c0, %c0_0, %c0_1] : memref<2x8x32xf32, #tpu.memory_space<vmem>>, vector<2x8x32xf32>
    %1 = vector.shape_cast %0 : vector<2x8x32xf32> to vector<16x32xf32>
    %c0_2 = arith.constant 0 : index
    %c0_3 = arith.constant 0 : index
    %c0_4 = arith.constant 0 : index
    %2 = vector.load %arg2[%c0_2, %c0_3, %c0_4] : memref<2x8x8xf32, #tpu.memory_space<vmem>>, vector<2x8x8xf32>
    %c0_5 = arith.constant 0 : index
    %c0_6 = arith.constant 0 : index
    %3 = vector.load %arg5[%c0_5, %c0_6] : memref<1x32xf32, #tpu.memory_space<vmem>>, vector<1x32xf32>
    %c0_7 = arith.constant 0 : index
    %c0_8 = arith.constant 0 : index
    %4 = vector.load %arg6[%c0_7, %c0_8] : memref<1x32xf32, #tpu.memory_space<vmem>>, vector<1x32xf32>
    %cst = arith.constant dense<0.000000e+00> : vector<16xf32>
    %5 = vector.multi_reduction <add>, %1, %cst [1] : vector<16x32xf32> to vector<16xf32>
    %6 = vector.shape_cast %5 : vector<16xf32> to vector<16x1xf32>
    %cst_9 = arith.constant 3.200000e+01 : f32
    %7 = vector.broadcast %cst_9 : f32 to vector<16x1xf32>
    %8 = arith.divf %6, %7 : vector<16x1xf32>
    %9 = vector.broadcast %8 : vector<16x1xf32> to vector<16x32xf32>
    %10 = arith.subf %1, %9 : vector<16x32xf32>
    %11 = arith.mulf %10, %10 : vector<16x32xf32>
    %cst_10 = arith.constant dense<0.000000e+00> : vector<16xf32>
    %12 = vector.multi_reduction <add>, %11, %cst_10 [1] : vector<16x32xf32> to vector<16xf32>
    %13 = vector.shape_cast %12 : vector<16xf32> to vector<16x1xf32>
    %cst_11 = arith.constant 3.100000e+01 : f32
    %14 = vector.broadcast %cst_11 : f32 to vector<16x1xf32>
    %15 = arith.divf %13, %14 : vector<16x1xf32>
    %16 = math.sqrt %15 : vector<16x1xf32>
    %17 = vector.broadcast %8 : vector<16x1xf32> to vector<16x32xf32>
    %18 = arith.subf %1, %17 : vector<16x32xf32>
    %19 = vector.broadcast %3 : vector<1x32xf32> to vector<16x32xf32>
    %20 = arith.mulf %19, %18 : vector<16x32xf32>
    %cst_12 = arith.constant 9.99999997E-7 : f32
    %21 = vector.broadcast %cst_12 : f32 to vector<16x1xf32>
    %22 = arith.addf %16, %21 : vector<16x1xf32>
    %23 = vector.broadcast %22 : vector<16x1xf32> to vector<16x32xf32>
    %24 = arith.divf %20, %23 : vector<16x32xf32>
    %25 = vector.broadcast %4 : vector<1x32xf32> to vector<16x32xf32>
    %26 = arith.addf %24, %25 : vector<16x32xf32>
    %27 = vector.shape_cast %26 : vector<16x32xf32> to vector<1x16x32xf32>
    %28 = vector.broadcast %27 : vector<1x16x32xf32> to vector<12x16x32xf32>
    %c0_13 = arith.constant 0 : index
    %c0_14 = arith.constant 0 : index
    %c0_15 = arith.constant 0 : index
    %29 = vector.load %arg3[%c0_13, %c0_14, %c0_15] : memref<12x32x8xf32, #tpu.memory_space<vmem>>, vector<12x32x8xf32>
    "tpu.trace_start"() <{level = 10 : i32, message = "hnd,hdk->hnk"}> : () -> ()
    %cst_16 = arith.constant dense<0.000000e+00> : vector<12x16x8xf32>
    %30 = tpu.matmul %28, %29, %cst_16 {dimension_numbers = #tpu.dot_dimension_numbers<[2], [1], [1], [2], [0, 0, 0, 1, 1, 2], [0], [0]>} : vector<12x16x32xf32>, vector<12x32x8xf32>, vector<12x16x8xf32> -> vector<12x16x8xf32>
    "tpu.trace_stop"() : () -> ()
    %31 = vector.extract_strided_slice %30 {offsets = [0, 0, 0], sizes = [4, 16, 8], strides = [1, 1, 1]} : vector<12x16x8xf32> to vector<4x16x8xf32>
    %cst_17 = arith.constant 0.353553385 : f32
    %32 = vector.broadcast %cst_17 : f32 to vector<4x16x8xf32>
    %33 = arith.mulf %31, %32 : vector<4x16x8xf32>
    %34 = vector.extract_strided_slice %30 {offsets = [4, 0, 0], sizes = [4, 16, 8], strides = [1, 1, 1]} : vector<12x16x8xf32> to vector<4x16x8xf32>
    %35 = vector.extract_strided_slice %30 {offsets = [8, 0, 0], sizes = [4, 16, 8], strides = [1, 1, 1]} : vector<12x16x8xf32> to vector<4x16x8xf32>
    %36 = vector.shape_cast %33 : vector<4x16x8xf32> to vector<8x8x8xf32>
    %37 = vector.shape_cast %34 : vector<4x16x8xf32> to vector<8x8x8xf32>
    %38 = vector.shape_cast %35 : vector<4x16x8xf32> to vector<8x8x8xf32>
    "tpu.trace_start"() <{level = 10 : i32, message = "bqd,bkd->bqk"}> : () -> ()
    %cst_18 = arith.constant dense<0.000000e+00> : vector<8x8x8xf32>
    %39 = tpu.matmul %36, %37, %cst_18 {dimension_numbers = #tpu.dot_dimension_numbers<[2], [2], [1], [1], [0, 0, 0, 1, 1, 1], [0], [0]>} : vector<8x8x8xf32>, vector<8x8x8xf32>, vector<8x8x8xf32> -> vector<8x8x8xf32>
    "tpu.trace_stop"() : () -> ()
    %40 = vector.shape_cast %2 : vector<2x8x8xf32> to vector<1x2x8x8xf32>
    %41 = vector.shape_cast %40 : vector<1x2x8x8xf32> to vector<1x2x8x8xf32>
    %42 = vector.broadcast %41 : vector<1x2x8x8xf32> to vector<4x2x8x8xf32>
    %43 = vector.shape_cast %42 : vector<4x2x8x8xf32> to vector<8x8x8xf32>
    %cst_19 = arith.constant 0.000000e+00 : f32
    %44 = vector.broadcast %cst_19 : f32 to vector<8x8x8xf32>
    %45 = arith.cmpf oeq, %43, %44 : vector<8x8x8xf32>
    %cst_20 = arith.constant -1.000000e+09 : f32
    %46 = vector.broadcast %cst_20 : f32 to vector<8x8x8xf32>
    %47 = arith.select %45, %46, %39 : vector<8x8x8xi1>, vector<8x8x8xf32>
    %cst_21 = arith.constant dense<0xFF800000> : vector<8x8xf32>
    %48 = vector.multi_reduction <maximumf>, %47, %cst_21 [2] : vector<8x8x8xf32> to vector<8x8xf32>
    %49 = vector.shape_cast %48 : vector<8x8xf32> to vector<8x8x1xf32>
    %50 = vector.broadcast %49 : vector<8x8x1xf32> to vector<8x8x8xf32>
    %51 = arith.subf %47, %50 : vector<8x8x8xf32>
    %52 = math.exp %51 : vector<8x8x8xf32>
    %cst_22 = arith.constant dense<0.000000e+00> : vector<8x8xf32>
    %53 = vector.multi_reduction <add>, %52, %cst_22 [2] : vector<8x8x8xf32> to vector<8x8xf32>
    %54 = vector.shape_cast %53 : vector<8x8xf32> to vector<8x8x1xf32>
    %55 = tpu.reciprocal %54 : vector<8x8x1xf32> -> vector<8x8x1xf32>
    %56 = vector.broadcast %55 : vector<8x8x1xf32> to vector<8x8x8xf32>
    %57 = arith.mulf %52, %56 : vector<8x8x8xf32>
    "tpu.trace_start"() <{level = 10 : i32, message = "bqk,bkd->bqd"}> : () -> ()
    %cst_23 = arith.constant dense<0.000000e+00> : vector<8x8x8xf32>
    %58 = tpu.matmul %57, %38, %cst_23 {dimension_numbers = #tpu.dot_dimension_numbers<[2], [1], [1], [2], [0, 0, 0, 1, 1, 2], [0], [0]>} : vector<8x8x8xf32>, vector<8x8x8xf32>, vector<8x8x8xf32> -> vector<8x8x8xf32>
    "tpu.trace_stop"() : () -> ()
    %59 = vector.shape_cast %58 : vector<8x8x8xf32> to vector<4x16x8xf32>
    %c0_24 = arith.constant 0 : index
    %c0_25 = arith.constant 0 : index
    %c0_26 = arith.constant 0 : index
    %60 = vector.load %arg4[%c0_24, %c0_25, %c0_26] : memref<4x8x32xf32, #tpu.memory_space<vmem>>, vector<4x8x32xf32>
    "tpu.trace_start"() <{level = 10 : i32, message = "hnk,hkd->hnd"}> : () -> ()
    %cst_27 = arith.constant dense<0.000000e+00> : vector<4x16x32xf32>
    %61 = tpu.matmul %59, %60, %cst_27 {dimension_numbers = #tpu.dot_dimension_numbers<[2], [1], [1], [2], [0, 0, 0, 1, 1, 2], [0], [0]>} : vector<4x16x8xf32>, vector<4x8x32xf32>, vector<4x16x32xf32> -> vector<4x16x32xf32>
    "tpu.trace_stop"() : () -> ()
    %cst_28 = arith.constant dense<0.000000e+00> : vector<16x32xf32>
    %62 = vector.multi_reduction <add>, %61, %cst_28 [0] : vector<4x16x32xf32> to vector<16x32xf32>
    %63 = arith.addf %1, %62 : vector<16x32xf32>
    %c0_29 = arith.constant 0 : index
    %c0_30 = arith.constant 0 : index
    %64 = vector.load %arg11[%c0_29, %c0_30] : memref<1x32xf32, #tpu.memory_space<vmem>>, vector<1x32xf32>
    %c0_31 = arith.constant 0 : index
    %c0_32 = arith.constant 0 : index
    %65 = vector.load %arg12[%c0_31, %c0_32] : memref<1x32xf32, #tpu.memory_space<vmem>>, vector<1x32xf32>
    %cst_33 = arith.constant dense<0.000000e+00> : vector<16xf32>
    %66 = vector.multi_reduction <add>, %63, %cst_33 [1] : vector<16x32xf32> to vector<16xf32>
    %67 = vector.shape_cast %66 : vector<16xf32> to vector<16x1xf32>
    %cst_34 = arith.constant 3.200000e+01 : f32
    %68 = vector.broadcast %cst_34 : f32 to vector<16x1xf32>
    %69 = arith.divf %67, %68 : vector<16x1xf32>
    %70 = vector.broadcast %69 : vector<16x1xf32> to vector<16x32xf32>
    %71 = arith.subf %63, %70 : vector<16x32xf32>
    %72 = arith.mulf %71, %71 : vector<16x32xf32>
    %cst_35 = arith.constant dense<0.000000e+00> : vector<16xf32>
    %73 = vector.multi_reduction <add>, %72, %cst_35 [1] : vector<16x32xf32> to vector<16xf32>
    %74 = vector.shape_cast %73 : vector<16xf32> to vector<16x1xf32>
    %cst_36 = arith.constant 3.100000e+01 : f32
    %75 = vector.broadcast %cst_36 : f32 to vector<16x1xf32>
    %76 = arith.divf %74, %75 : vector<16x1xf32>
    %77 = math.sqrt %76 : vector<16x1xf32>
    %78 = vector.broadcast %69 : vector<16x1xf32> to vector<16x32xf32>
    %79 = arith.subf %63, %78 : vector<16x32xf32>
    %80 = vector.broadcast %64 : vector<1x32xf32> to vector<16x32xf32>
    %81 = arith.mulf %80, %79 : vector<16x32xf32>
    %cst_37 = arith.constant 9.99999997E-7 : f32
    %82 = vector.broadcast %cst_37 : f32 to vector<16x1xf32>
    %83 = arith.addf %77, %82 : vector<16x1xf32>
    %84 = vector.broadcast %83 : vector<16x1xf32> to vector<16x32xf32>
    %85 = arith.divf %81, %84 : vector<16x32xf32>
    %86 = vector.broadcast %65 : vector<1x32xf32> to vector<16x32xf32>
    %87 = arith.addf %85, %86 : vector<16x32xf32>
    %c0_38 = arith.constant 0 : index
    %c0_39 = arith.constant 0 : index
    %88 = vector.load %arg7[%c0_38, %c0_39] : memref<32x64xf32, #tpu.memory_space<vmem>>, vector<32x64xf32>
    %cst_40 = arith.constant dense<0.000000e+00> : vector<16x64xf32>
    %89 = tpu.matmul %87, %88, %cst_40 {dimension_numbers = #tpu.dot_dimension_numbers<[1], [0], [0], [1], [0, 0, 1, 1], [], []>} : vector<16x32xf32>, vector<32x64xf32>, vector<16x64xf32> -> vector<16x64xf32>
    %c0_41 = arith.constant 0 : index
    %c0_42 = arith.constant 0 : index
    %90 = vector.load %arg8[%c0_41, %c0_42] : memref<1x64xf32, #tpu.memory_space<vmem>>, vector<1x64xf32>
    %91 = vector.broadcast %90 : vector<1x64xf32> to vector<16x64xf32>
    %92 = arith.addf %89, %91 : vector<16x64xf32>
    %cst_43 = arith.constant 0.000000e+00 : f32
    %93 = vector.broadcast %cst_43 : f32 to vector<16x64xf32>
    %94 = arith.maximumf %92, %93 : vector<16x64xf32>
    %c0_44 = arith.constant 0 : index
    %c0_45 = arith.constant 0 : index
    %95 = vector.load %arg9[%c0_44, %c0_45] : memref<64x32xf32, #tpu.memory_space<vmem>>, vector<64x32xf32>
    %cst_46 = arith.constant dense<0.000000e+00> : vector<16x32xf32>
    %96 = tpu.matmul %94, %95, %cst_46 {dimension_numbers = #tpu.dot_dimension_numbers<[1], [0], [0], [1], [0, 0, 1, 1], [], []>} : vector<16x64xf32>, vector<64x32xf32>, vector<16x32xf32> -> vector<16x32xf32>
    %c0_47 = arith.constant 0 : index
    %c0_48 = arith.constant 0 : index
    %97 = vector.load %arg10[%c0_47, %c0_48] : memref<1x32xf32, #tpu.memory_space<vmem>>, vector<1x32xf32>
    %98 = vector.broadcast %97 : vector<1x32xf32> to vector<16x32xf32>
    %99 = arith.addf %96, %98 : vector<16x32xf32>
    %100 = arith.addf %63, %99 : vector<16x32xf32>
    %101 = vector.shape_cast %100 : vector<16x32xf32> to vector<2x8x32xf32>
    %c0_49 = arith.constant 0 : index
    %c0_50 = arith.constant 0 : index
    %c0_51 = arith.constant 0 : index
    %102 = vector.load %arg13[%c0_49, %c0_50, %c0_51] : memref<2x8x32xf32, #tpu.memory_space<vmem>>, vector<2x8x32xf32>
    tpu.vector_store %arg13[%c0_49, %c0_50, %c0_51], %101 {strides = array<i32>} : memref<2x8x32xf32, #tpu.memory_space<vmem>>, vector<2x8x32xf32>,
    return
  }
  func.func @transform_0(%arg0: i32) -> (i32, i32, i32) {
    %c0_i32 = arith.constant 0 : i32
    %c0_i32_0 = arith.constant 0 : i32
    %c0_i32_1 = arith.constant 0 : i32
    return %arg0, %c0_i32, %c0_i32_0 : i32, i32, i32
  }
  func.func @transform_1(%arg0: i32) -> (i32, i32, i32) {
    %c0_i32 = arith.constant 0 : i32
    %c0_i32_0 = arith.constant 0 : i32
    %c0_i32_1 = arith.constant 0 : i32
    return %arg0, %c0_i32, %c0_i32_0 : i32, i32, i32
  }
  func.func @transform_2(%arg0: i32) -> (i32, i32, i32) {
    %c0_i32 = arith.constant 0 : i32
    %c0_i32_0 = arith.constant 0 : i32
    %c0_i32_1 = arith.constant 0 : i32
    %c0_i32_2 = arith.constant 0 : i32
    return %c0_i32, %c0_i32_0, %c0_i32_1 : i32, i32, i32
  }
  func.func @transform_3(%arg0: i32) -> (i32, i32, i32) {
    %c0_i32 = arith.constant 0 : i32
    %c0_i32_0 = arith.constant 0 : i32
    %c0_i32_1 = arith.constant 0 : i32
    %c0_i32_2 = arith.constant 0 : i32
    return %c0_i32, %c0_i32_0, %c0_i32_1 : i32, i32, i32
  }
  func.func @transform_4(%arg0: i32) -> (i32, i32) {
    %c0_i32 = arith.constant 0 : i32
    %c0_i32_0 = arith.constant 0 : i32
    %c0_i32_1 = arith.constant 0 : i32
    return %c0_i32, %c0_i32_0 : i32, i32
  }
  func.func @transform_5(%arg0: i32) -> (i32, i32) {
    %c0_i32 = arith.constant 0 : i32
    %c0_i32_0 = arith.constant 0 : i32
    %c0_i32_1 = arith.constant 0 : i32
    return %c0_i32, %c0_i32_0 : i32, i32
  }
  func.func @transform_6(%arg0: i32) -> (i32, i32) {
    %c0_i32 = arith.constant 0 : i32
    %c0_i32_0 = arith.constant 0 : i32
    %c0_i32_1 = arith.constant 0 : i32
    return %c0_i32, %c0_i32_0 : i32, i32
  }
  func.func @transform_7(%arg0: i32) -> (i32, i32) {
    %c0_i32 = arith.constant 0 : i32
    %c0_i32_0 = arith.constant 0 : i32
    %c0_i32_1 = arith.constant 0 : i32
    return %c0_i32, %c0_i32_0 : i32, i32
  }
  func.func @transform_8(%arg0: i32) -> (i32, i32) {
    %c0_i32 = arith.constant 0 : i32
    %c0_i32_0 = arith.constant 0 : i32
    %c0_i32_1 = arith.constant 0 : i32
    return %c0_i32, %c0_i32_0 : i32, i32
  }
  func.func @transform_9(%arg0: i32) -> (i32, i32) {
    %c0_i32 = arith.constant 0 : i32
    %c0_i32_0 = arith.constant 0 : i32
    %c0_i32_1 = arith.constant 0 : i32
    return %c0_i32, %c0_i32_0 : i32, i32
  }
  func.func @transform_10(%arg0: i32) -> (i32, i32) {
    %c0_i32 = arith.constant 0 : i32
    %c0_i32_0 = arith.constant 0 : i32
    %c0_i32_1 = arith.constant 0 : i32
    return %c0_i32, %c0_i32_0 : i32, i32
  }
  func.func @transform_11(%arg0: i32) -> (i32, i32) {
    %c0_i32 = arith.constant 0 : i32
    %c0_i32_0 = arith.constant 0 : i32
    %c0_i32_1 = arith.constant 0 : i32
    return %c0_i32, %c0_i32_0 : i32, i32
  }
  func.func @transform_12(%arg0: i32) -> (i32, i32, i32) {
    %c0_i32 = arith.constant 0 : i32
    %c0_i32_0 = arith.constant 0 : i32
    %c0_i32_1 = arith.constant 0 : i32
    return %arg0, %c0_i32, %c0_i32_0 : i32, i32, i32
  }
}

</mosaic_0001>

<llo_original>
// kernel: tpu_custom_call.1
$region0: #{tpu_custom_call.1}
  #allocation0 [shape = 'u32[]', space=smem, size = 0x4, offset = 0x4, fixed_abs, tag = 'smem constant byte address 0x4 - core index']
  #allocation1 [shape = 'u32[144,128]{1,0:T(1,128)}', space=vmem, size = 0x12000, scoped, tag = 'internal scratch']
  %s0 = inlined_call_operand.vmem [shape: f32[2,8,32], index: 0, kind: input, shape index: {}]
  %s1 = inlined_call_operand.vmem [shape: f32[2,8,8], index: 1, kind: input, shape index: {}]
  %s2 = inlined_call_operand.vmem [shape: f32[12,32,8], index: 2, kind: input, shape index: {}]
  %s3 = inlined_call_operand.vmem [shape: f32[4,8,32], index: 3, kind: input, shape index: {}]
  %s4 = inlined_call_operand.vmem [shape: f32[1,32], index: 4, kind: input, shape index: {}]
  %s5 = inlined_call_operand.vmem [shape: f32[1,32], index: 5, kind: input, shape index: {}]
  %s6 = inlined_call_operand.vmem [shape: f32[32,64], index: 6, kind: input, shape index: {}]
  %s7 = inlined_call_operand.vmem [shape: f32[1,64], index: 7, kind: input, shape index: {}]
  %s8 = inlined_call_operand.vmem [shape: f32[64,32], index: 8, kind: input, shape index: {}]
  %s9 = inlined_call_operand.vmem [shape: f32[1,32], index: 9, kind: input, shape index: {}]
  %s10 = inlined_call_operand.vmem [shape: f32[1,32], index: 10, kind: input, shape index: {}]
  %s11 = inlined_call_operand.vmem [shape: f32[1,32], index: 11, kind: input, shape index: {}]
  %s12 = inlined_call_operand.hbm [shape: f32[2,8,32], index: 12, kind: output, shape index: {}]
  %s13 = sld [smem:[#allocation0]]
  $region58: #{tpu_custom_call.1} parent=0
    _
  %s15 = ssub.s32 1, %s13
  %s16 = scalar_select 0, %s15, %s13
  $region1: #{tpu_custom_call.1} parent=0
    #allocation2 [shape = 'u8[8192]{0}', space=vmem, size = 0x2000, scoped, tag = 'output window, operand 0, single buffered']
    #allocation3 [shape = 's32[1]{0}', space=sflag, size = 0x4, scoped, tag = 'scoped memory for tpu_custom_call.1']
    %17 = vsyncpa [#allocation3], 0
    // Predicated region
    $region2: #{tpu_custom_call.1} parent=1 // pred_check
      _
    $region3: #{tpu_custom_call.1} parent=1 // pred_check_branch
      %19 = sbr.rel (0) target = $region5
    $region4: #{tpu_custom_call.1} parent=1 // pred_region
      _
    $region5: #{tpu_custom_call.1} parent=1 // pred_fallthru
      _
    // Predicated region
    $region6: #{tpu_custom_call.1} parent=1 // pred_check
      _
    $region7: #{tpu_custom_call.1} parent=1 // pred_check_branch
      %21 = sbr.rel (0) target = $region9
    $region8: #{tpu_custom_call.1} parent=1 // pred_region
      _
    $region9: #{tpu_custom_call.1} parent=1 // pred_fallthru
      _
    // Predicated region
    $region10: #{tpu_custom_call.1} parent=1 // pred_check
      _
    $region11: #{tpu_custom_call.1} parent=1 // pred_check_branch
      %23 = sbr.rel (0) target = $region13
    $region12: #{tpu_custom_call.1} parent=1 // pred_region
      _
    $region13: #{tpu_custom_call.1} parent=1 // pred_fallthru
      _
    // Predicated region
    $region14: #{tpu_custom_call.1} parent=1 // pred_check
      _
    $region15: #{tpu_custom_call.1} parent=1 // pred_check_branch
      %25 = sbr.rel (0) target = $region17
    $region16: #{tpu_custom_call.1} parent=1 // pred_region
      _
    $region17: #{tpu_custom_call.1} parent=1 // pred_fallthru
      _
    // Predicated region
    $region18: #{tpu_custom_call.1} parent=1 // pred_check
      _
    $region19: #{tpu_custom_call.1} parent=1 // pred_check_branch
      %27 = sbr.rel (0) target = $region21
    $region20: #{tpu_custom_call.1} parent=1 // pred_region
      _
    $region21: #{tpu_custom_call.1} parent=1 // pred_fallthru
      _
    // Predicated region
    $region22: #{tpu_custom_call.1} parent=1 // pred_check
      _
    $region23: #{tpu_custom_call.1} parent=1 // pred_check_branch
      %29 = sbr.rel (0) target = $region25
    $region24: #{tpu_custom_call.1} parent=1 // pred_region
      _
    $region25: #{tpu_custom_call.1} parent=1 // pred_fallthru
      _
    // Predicated region
    $region26: #{tpu_custom_call.1} parent=1 // pred_check
      _
    $region27: #{tpu_custom_call.1} parent=1 // pred_check_branch
      %31 = sbr.rel (0) target = $region29
    $region28: #{tpu_custom_call.1} parent=1 // pred_region
      _
    $region29: #{tpu_custom_call.1} parent=1 // pred_fallthru
      _
    // Predicated region
    $region30: #{tpu_custom_call.1} parent=1 // pred_check
      _
    $region31: #{tpu_custom_call.1} parent=1 // pred_check_branch
      %33 = sbr.rel (0) target = $region33
    $region32: #{tpu_custom_call.1} parent=1 // pred_region
      _
    $region33: #{tpu_custom_call.1} parent=1 // pred_fallthru
      _
    // Predicated region
    $region34: #{tpu_custom_call.1} parent=1 // pred_check
      _
    $region35: #{tpu_custom_call.1} parent=1 // pred_check_branch
      %35 = sbr.rel (0) target = $region37
    $region36: #{tpu_custom_call.1} parent=1 // pred_region
      _
    $region37: #{tpu_custom_call.1} parent=1 // pred_fallthru
      _
    // Predicated region
    $region38: #{tpu_custom_call.1} parent=1 // pred_check
      _
    $region39: #{tpu_custom_call.1} parent=1 // pred_check_branch
      %37 = sbr.rel (0) target = $region41
    $region40: #{tpu_custom_call.1} parent=1 // pred_region
      _
    $region41: #{tpu_custom_call.1} parent=1 // pred_fallthru
      _
    // Predicated region
    $region42: #{tpu_custom_call.1} parent=1 // pred_check
      _
    $region43: #{tpu_custom_call.1} parent=1 // pred_check_branch
      %39 = sbr.rel (0) target = $region45
    $region44: #{tpu_custom_call.1} parent=1 // pred_region
      _
    $region45: #{tpu_custom_call.1} parent=1 // pred_fallthru
      _
    // Predicated region
    $region46: #{tpu_custom_call.1} parent=1 // pred_check
      _
    $region47: #{tpu_custom_call.1} parent=1 // pred_check_branch
      %41 = sbr.rel (0) target = $region49
    $region48: #{tpu_custom_call.1} parent=1 // pred_region
      _
    $region49: #{tpu_custom_call.1} parent=1 // pred_fallthru
      _
    %v42 = vld [vmem:[%s0] sm:$0xff]
    %v43 = vld [vmem:[%s0 + $0x8] sm:$0xff]
    %v44 = vld [vmem:[%s1] sm:$0xff]
    %v45 = vld [vmem:[%s1 + $0x8] sm:$0xff]
    %v46 = vld [vmem:[%s4] sm:$0x1]
    %v47 = vld [vmem:[%s5] sm:$0x1]
    %vm48 = vcmask 261120
    %v49 = vsel %vm48, %v42, 0.0
    %50 = vadd.xlane.f32.xlu0 %v49
    %v51 = vpop.xlane.xlu0 %50
    %v52 = vsel %vm48, %v43, 0.0
    %53 = vadd.xlane.f32.xlu0 %v52
    %v54 = vpop.xlane.xlu0 %53
    %v55 = vrcp.pop 32.0
    %v56 = vmul.f32 %v51, %v55
    %v57 = vmul.f32 %v54, %v55
    %v58 = vsub.f32 %v42, %v56
    %v59 = vsub.f32 %v43, %v57
    %v60 = vmul.f32 %v58, %v58
    %v61 = vmul.f32 %v59, %v59
    %v62 = vsel %vm48, %v60, 0.0
    %63 = vadd.xlane.f32.xlu0 %v62
    %v64 = vpop.xlane.xlu0 %63
    %v65 = vsel %vm48, %v61, 0.0
    %66 = vadd.xlane.f32.xlu0 %v65
    %v67 = vpop.xlane.xlu0 %66
    %v68 = vrcp.pop 31.0
    %v69 = vmul.f32 %v64, %v68
    %v70 = vmul.f32 %v67, %v68
    %v71 = vrsqrt.pop %v69
    %v72 = vmul.f32 %v69, %v71
    %vm73 = vcmp.eq.f32.partialorder %v69, inf
    %v74 = vsel %vm73, %v69, %v72
    %vm75 = vcmp.eq.f32.partialorder %v69, 0.0
    %v76 = vand.u32 %v69, 2147483648
    %v77 = vsel %vm75, %v76, %v74
    %v78 = vrsqrt.pop %v70
    %v79 = vmul.f32 %v70, %v78
    %vm80 = vcmp.eq.f32.partialorder %v70, inf
    %v81 = vsel %vm80, %v70, %v79
    %vm82 = vcmp.eq.f32.partialorder %v70, 0.0
    %v83 = vand.u32 %v70, 2147483648
    %v84 = vsel %vm82, %v83, %v81
    %v86 = vlaneseq
    %v87 = vshrl.u32 %v86, 7
    %v88 = vsub.s32 0, %v87
    %v89 = vrot.slane %v46, %v88
    %v91 = vmul.f32 %v89, %v58
    %v92 = vmul.f32 %v89, %v59
    %v93 = vadd.f32 %v77, 1e-06
    %v94 = vadd.f32 %v84, 1e-06
    %v95 = vrcp.pop %v93
    %v96 = vmul.f32 %v91, %v95
    %v97 = vrcp.pop %v94
    %v98 = vmul.f32 %v92, %v97
    %v100 = vlaneseq
    %v101 = vshrl.u32 %v100, 7
    %v102 = vsub.s32 0, %v101
    %v103 = vrot.slane %v47, %v102
    %v105 = vadd.f32 %v96, %v103
    %v106 = vadd.f32 %v98, %v103
    %v107 = vld [vmem:[%s2] sm:$0xff]
    %v108 = vld [vmem:[%s2 + $0x8] sm:$0xff]
    %v109 = vld [vmem:[%s2 + $0x10] sm:$0xff]
    %v110 = vld [vmem:[%s2 + $0x18] sm:$0xff]
    %v111 = vld [vmem:[%s2 + $0x20] sm:$0xff]
    %v112 = vld [vmem:[%s2 + $0x28] sm:$0xff]
    %v113 = vld [vmem:[%s2 + $0x30] sm:$0xff]
    %v114 = vld [vmem:[%s2 + $0x38] sm:$0xff]
    %v115 = vld [vmem:[%s2 + $0x40] sm:$0xff]
    %v116 = vld [vmem:[%s2 + $0x48] sm:$0xff]
    %v117 = vld [vmem:[%s2 + $0x50] sm:$0xff]
    %v118 = vld [vmem:[%s2 + $0x58] sm:$0xff]
    %v119 = vld [vmem:[%s2 + $0x60] sm:$0xff]
    %v120 = vld [vmem:[%s2 + $0x68] sm:$0xff]
    %v121 = vld [vmem:[%s2 + $0x70] sm:$0xff]
    %v122 = vld [vmem:[%s2 + $0x78] sm:$0xff]
    %v123 = vld [vmem:[%s2 + $0x80] sm:$0xff]
    %v124 = vld [vmem:[%s2 + $0x88] sm:$0xff]
    %v125 = vld [vmem:[%s2 + $0x90] sm:$0xff]
    %v126 = vld [vmem:[%s2 + $0x98] sm:$0xff]
    %v127 = vld [vmem:[%s2 + $0xa0] sm:$0xff]
    %v128 = vld [vmem:[%s2 + $0xa8] sm:$0xff]
    %v129 = vld [vmem:[%s2 + $0xb0] sm:$0xff]
    %v130 = vld [vmem:[%s2 + $0xb8] sm:$0xff]
    %v131 = vld [vmem:[%s2 + $0xc0] sm:$0xff]
    %v132 = vld [vmem:[%s2 + $0xc8] sm:$0xff]
    %v133 = vld [vmem:[%s2 + $0xd0] sm:$0xff]
    %v134 = vld [vmem:[%s2 + $0xd8] sm:$0xff]
    %v135 = vld [vmem:[%s2 + $0xe0] sm:$0xff]
    %v136 = vld [vmem:[%s2 + $0xe8] sm:$0xff]
    %v137 = vld [vmem:[%s2 + $0xf0] sm:$0xff]
    %v138 = vld [vmem:[%s2 + $0xf8] sm:$0xff]
    %v139 = vld [vmem:[%s2 + $0x100] sm:$0xff]
    %v140 = vld [vmem:[%s2 + $0x108] sm:$0xff]
    %v141 = vld [vmem:[%s2 + $0x110] sm:$0xff]
    %v142 = vld [vmem:[%s2 + $0x118] sm:$0xff]
    %v143 = vld [vmem:[%s2 + $0x120] sm:$0xff]
    %v144 = vld [vmem:[%s2 + $0x128] sm:$0xff]
    %v145 = vld [vmem:[%s2 + $0x130] sm:$0xff]
    %v146 = vld [vmem:[%s2 + $0x138] sm:$0xff]
    %v147 = vld [vmem:[%s2 + $0x140] sm:$0xff]
    %v148 = vld [vmem:[%s2 + $0x148] sm:$0xff]
    %v149 = vld [vmem:[%s2 + $0x150] sm:$0xff]
    %v150 = vld [vmem:[%s2 + $0x158] sm:$0xff]
    %v151 = vld [vmem:[%s2 + $0x160] sm:$0xff]
    %v152 = vld [vmem:[%s2 + $0x168] sm:$0xff]
    %v153 = vld [vmem:[%s2 + $0x170] sm:$0xff]
    %v154 = vld [vmem:[%s2 + $0x178] sm:$0xff]
    %v156 = vsel %vm48, %v105, 0
    %v159 = vsel %vm48, %v106, 0
    %161 = vmatprep.subr.mxu0 0.0
    %162 = vmatpush1.msra.mxu0 %v107
    %163 = vmatprep.subr.mxu0 0.0
    %164 = vmatpush1.msra.mxu0 %v108
    %165 = vmatprep.subr.mxu0 0.0
    %166 = vmatpush1.msra.mxu0 %v109
    %167 = vmatprep.subr.mxu0 0.0
    %168 = vmatpush1.msra.mxu0 %v110
    %169 = vmatprep.subr.mxu0 0.0
    %170 = vmatpush1.msra.mxu0 0.0
    %171 = vmatprep.subr.mxu0 0.0
    %172 = vmatpush1.msra.mxu0 0.0
    %173 = vmatprep.subr.mxu0 0.0
    %174 = vmatpush1.msra.mxu0 0.0
    %175 = vmatprep.subr.mxu0 0.0
    %176 = vmatpush1.msra.mxu0 0.0
    %177 = vmatprep.subr.mxu0 0.0
    %178 = vmatpush1.msra.mxu0 0.0
    %179 = vmatprep.subr.mxu0 0.0
    %180 = vmatpush1.msra.mxu0 0.0
    %181 = vmatprep.subr.mxu0 0.0
    %182 = vmatpush1.msra.mxu0 0.0
    %183 = vmatprep.subr.mxu0 0.0
    %184 = vmatpush1.msra.mxu0 0.0
    %185 = vmatprep.subr.mxu0 0.0
    %186 = vmatpush1.msra.mxu0 0.0
    %187 = vmatprep.subr.mxu0 0.0
    %188 = vmatpush1.msra.mxu0 0.0
    %189 = vmatprep.subr.mxu0 0.0
    %190 = vmatpush1.msra.mxu0 0.0
    %191 = vmatprep.subr.mxu0 0.0
    %192 = vmatpush1.msra.mxu0 0.0
    %193 = vmatprep.subr.mxu0 0.0
    %194 = vmatpush1.msra.mxu0 0.0
    %195 = vmatprep.subr.mxu0 0.0
    %196 = vmatpush1.msra.mxu0 0.0
    %197 = vmatprep.subr.mxu0 0.0
    %198 = vmatpush1.msra.mxu0 0.0
    %199 = vmatprep.subr.mxu0 0.0
    %200 = vmatpush1.msra.mxu0 0.0
    %201 = vmatprep.subr.mxu0 0.0
    %202 = vmatpush1.msra.mxu0 0.0
    %203 = vmatprep.subr.mxu0 0.0
    %204 = vmatpush1.msra.mxu0 0.0
    %205 = vmatprep.subr.mxu0 0.0
    %206 = vmatpush1.msra.mxu0 0.0
    %207 = vmatprep.subr.mxu0 0.0
    %208 = vmatpush1.msra.mxu0 0.0
    %209 = vmatprep.subr.mxu0 0.0
    %210 = vmatpush1.msra.mxu0 0.0
    %211 = vmatprep.subr.mxu0 0.0
    %212 = vmatpush1.msra.mxu0 0.0
    %213 = vmatprep.subr.mxu0 0.0
    %214 = vmatpush1.msra.mxu0 0.0
    %215 = vmatprep.subr.mxu0 0.0
    %216 = vmatpush1.msra.mxu0 0.0
    %217 = vmatprep.subr.mxu0 0.0
    %218 = vmatpush1.msra.mxu0 0.0
    %219 = vmatprep.subr.mxu0 0.0
    %220 = vmatpush1.msra.mxu0 0.0
    %221 = vmatprep.subr.mxu0 0.0
    %222 = vmatpush1.msra.mxu0 0.0
    %223 = vmatprep.subr.mxu0 0.0
    %224 = vmatpush1.msra.mxu0 0.0
    %225 = vmatprep.mubr.f32.mxu0 0.0
    %226 = vmatmul.mubr.f32.gmra.mrb[0].mxu0 %v156
    %v227 = vpop.f32.mrb[0].mxu0
    %v228 = vadd.f32 0.0, %v227
    %v229 = vpop.f32.mrb[0].mxu0
    %230 = vmatprep.mubr.f32.mxu0 0.0
    %231 = vmatmul.mubr.f32.gmra.mrb[0].mxu0 %v159
    %v232 = vpop.f32.mrb[0].mxu0
    %v233 = vadd.f32 0.0, %v232
    %v234 = vpop.f32.mrb[0].mxu0
    %235 = vdwg.mxu0
    %236 = vmatprep.subr.mxu0 0.0
    %237 = vmatpush1.msra.mxu0 %v111
    %238 = vmatprep.subr.mxu0 0.0
    %239 = vmatpush1.msra.mxu0 %v112
    %240 = vmatprep.subr.mxu0 0.0
    %241 = vmatpush1.msra.mxu0 %v113
    %242 = vmatprep.subr.mxu0 0.0
    %243 = vmatpush1.msra.mxu0 %v114
    %244 = vmatprep.subr.mxu0 0.0
    %245 = vmatpush1.msra.mxu0 0.0
    %246 = vmatprep.subr.mxu0 0.0
    %247 = vmatpush1.msra.mxu0 0.0
    %248 = vmatprep.subr.mxu0 0.0
    %249 = vmatpush1.msra.mxu0 0.0
    %250 = vmatprep.subr.mxu0 0.0
    %251 = vmatpush1.msra.mxu0 0.0
    %252 = vmatprep.subr.mxu0 0.0
    %253 = vmatpush1.msra.mxu0 0.0
    %254 = vmatprep.subr.mxu0 0.0
    %255 = vmatpush1.msra.mxu0 0.0
    %256 = vmatprep.subr.mxu0 0.0
    %257 = vmatpush1.msra.mxu0 0.0
    %258 = vmatprep.subr.mxu0 0.0
    %259 = vmatpush1.msra.mxu0 0.0
    %260 = vmatprep.subr.mxu0 0.0
    %261 = vmatpush1.msra.mxu0 0.0
    %262 = vmatprep.subr.mxu0 0.0
    %263 = vmatpush1.msra.mxu0 0.0
    %264 = vmatprep.subr.mxu0 0.0
    %265 = vmatpush1.msra.mxu0 0.0
    %266 = vmatprep.subr.mxu0 0.0
    %267 = vmatpush1.msra.mxu0 0.0
    %268 = vmatprep.subr.mxu0 0.0
    %269 = vmatpush1.msra.mxu0 0.0
    %270 = vmatprep.subr.mxu0 0.0
    %271 = vmatpush1.msra.mxu0 0.0
    %272 = vmatprep.subr.mxu0 0.0
    %273 = vmatpush1.msra.mxu0 0.0
    %274 = vmatprep.subr.mxu0 0.0
    %275 = vmatpush1.msra.mxu0 0.0
    %276 = vmatprep.subr.mxu0 0.0
    %277 = vmatpush1.msra.mxu0 0.0
    %278 = vmatprep.subr.mxu0 0.0
    %279 = vmatpush1.msra.mxu0 0.0
    %280 = vmatprep.subr.mxu0 0.0
    %281 = vmatpush1.msra.mxu0 0.0
    %282 = vmatprep.subr.mxu0 0.0
    %283 = vmatpush1.msra.mxu0 0.0
    %284 = vmatprep.subr.mxu0 0.0
    %285 = vmatpush1.msra.mxu0 0.0
    %286 = vmatprep.subr.mxu0 0.0
    %287 = vmatpush1.msra.mxu0 0.0
    %288 = vmatprep.subr.mxu0 0.0
    %289 = vmatpush1.msra.mxu0 0.0
    %290 = vmatprep.subr.mxu0 0.0
    %291 = vmatpush1.msra.mxu0 0.0
    %292 = vmatprep.subr.mxu0 0.0
    %293 = vmatpush1.msra.mxu0 0.0
    %294 = vmatprep.subr.mxu0 0.0
    %295 = vmatpush1.msra.mxu0 0.0
    %296 = vmatprep.subr.mxu0 0.0
    %297 = vmatpush1.msra.mxu0 0.0
    %298 = vmatprep.subr.mxu0 0.0
    %299 = vmatpush1.msra.mxu0 0.0
    %300 = vmatprep.mubr.f32.mxu0 0.0
    %301 = vmatmul.mubr.f32.gmra.mrb[0].mxu0 %v156
    %v302 = vpop.f32.mrb[0].mxu0
    %v303 = vadd.f32 0.0, %v302
    %v304 = vpop.f32.mrb[0].mxu0
    %305 = vmatprep.mubr.f32.mxu0 0.0
    %306 = vmatmul.mubr.f32.gmra.mrb[0].mxu0 %v159
    %v307 = vpop.f32.mrb[0].mxu0
    %v308 = vadd.f32 0.0, %v307
    %v309 = vpop.f32.mrb[0].mxu0
    %310 = vdwg.mxu0
    %311 = vmatprep.subr.mxu0 0.0
    %312 = vmatpush1.msra.mxu0 %v115
    %313 = vmatprep.subr.mxu0 0.0
    %314 = vmatpush1.msra.mxu0 %v116
    %315 = vmatprep.subr.mxu0 0.0
    %316 = vmatpush1.msra.mxu0 %v117
    %317 = vmatprep.subr.mxu0 0.0
    %318 = vmatpush1.msra.mxu0 %v118
    %319 = vmatprep.subr.mxu0 0.0
    %320 = vmatpush1.msra.mxu0 0.0
    %321 = vmatprep.subr.mxu0 0.0
    %322 = vmatpush1.msra.mxu0 0.0
    %323 = vmatprep.subr.mxu0 0.0
    %324 = vmatpush1.msra.mxu0 0.0
    %325 = vmatprep.subr.mxu0 0.0
    %326 = vmatpush1.msra.mxu0 0.0
    %327 = vmatprep.subr.mxu0 0.0
    %328 = vmatpush1.msra.mxu0 0.0
    %329 = vmatprep.subr.mxu0 0.0
    %330 = vmatpush1.msra.mxu0 0.0
    %331 = vmatprep.subr.mxu0 0.0
    %332 = vmatpush1.msra.mxu0 0.0
    %333 = vmatprep.subr.mxu0 0.0
    %334 = vmatpush1.msra.mxu0 0.0
    %335 = vmatprep.subr.mxu0 0.0
    %336 = vmatpush1.msra.mxu0 0.0
    %337 = vmatprep.subr.mxu0 0.0
    %338 = vmatpush1.msra.mxu0 0.0
    %339 = vmatprep.subr.mxu0 0.0
    %340 = vmatpush1.msra.mxu0 0.0
    %341 = vmatprep.subr.mxu0 0.0
    %342 = vmatpush1.msra.mxu0 0.0
    %343 = vmatprep.subr.mxu0 0.0
    %344 = vmatpush1.msra.mxu0 0.0
    %345 = vmatprep.subr.mxu0 0.0
    %346 = vmatpush1.msra.mxu0 0.0
    %347 = vmatprep.subr.mxu0 0.0
    %348 = vmatpush1.msra.mxu0 0.0
    %349 = vmatprep.subr.mxu0 0.0
    %350 = vmatpush1.msra.mxu0 0.0
    %351 = vmatprep.subr.mxu0 0.0
    %352 = vmatpush1.msra.mxu0 0.0
    %353 = vmatprep.subr.mxu0 0.0
    %354 = vmatpush1.msra.mxu0 0.0
    %355 = vmatprep.subr.mxu0 0.0
    %356 = vmatpush1.msra.mxu0 0.0
    %357 = vmatprep.subr.mxu0 0.0
    %358 = vmatpush1.msra.mxu0 0.0
    %359 = vmatprep.subr.mxu0 0.0
    %360 = vmatpush1.msra.mxu0 0.0
    %361 = vmatprep.subr.mxu0 0.0
    %362 = vmatpush1.msra.mxu0 0.0
    %363 = vmatprep.subr.mxu0 0.0
    %364 = vmatpush1.msra.mxu0 0.0
    %365 = vmatprep.subr.mxu0 0.0
    %366 = vmatpush1.msra.mxu0 0.0
    %367 = vmatprep.subr.mxu0 0.0
    %368 = vmatpush1.msra.mxu0 0.0
    %369 = vmatprep.subr.mxu0 0.0
    %370 = vmatpush1.msra.mxu0 0.0
    %371 = vmatprep.subr.mxu0 0.0
    %372 = vmatpush1.msra.mxu0 0.0
    %373 = vmatprep.subr.mxu0 0.0
    %374 = vmatpush1.msra.mxu0 0.0
    %375 = vmatprep.mubr.f32.mxu0 0.0
    %376 = vmatmul.mubr.f32.gmra.mrb[0].mxu0 %v156
    %v377 = vpop.f32.mrb[0].mxu0
    %v378 = vadd.f32 0.0, %v377
    %v379 = vpop.f32.mrb[0].mxu0
    %380 = vmatprep.mubr.f32.mxu0 0.0
    %381 = vmatmul.mubr.f32.gmra.mrb[0].mxu0 %v159
    %v382 = vpop.f32.mrb[0].mxu0
    %v383 = vadd.f32 0.0, %v382
    %v384 = vpop.f32.mrb[0].mxu0
    %385 = vdwg.mxu0
    %386 = vmatprep.subr.mxu0 0.0
    %387 = vmatpush1.msra.mxu0 %v119
    %388 = vmatprep.subr.mxu0 0.0
    %389 = vmatpush1.msra.mxu0 %v120
    %390 = vmatprep.subr.mxu0 0.0
    %391 = vmatpush1.msra.mxu0 %v121
    %392 = vmatprep.subr.mxu0 0.0
    %393 = vmatpush1.msra.mxu0 %v122
    %394 = vmatprep.subr.mxu0 0.0
    %395 = vmatpush1.msra.mxu0 0.0
    %396 = vmatprep.subr.mxu0 0.0
    %397 = vmatpush1.msra.mxu0 0.0
    %398 = vmatprep.subr.mxu0 0.0
    %399 = vmatpush1.msra.mxu0 0.0
    %400 = vmatprep.subr.mxu0 0.0
    %401 = vmatpush1.msra.mxu0 0.0
    %402 = vmatprep.subr.mxu0 0.0
    %403 = vmatpush1.msra.mxu0 0.0
    %404 = vmatprep.subr.mxu0 0.0
    %405 = vmatpush1.msra.mxu0 0.0
    %406 = vmatprep.subr.mxu0 0.0
    %407 = vmatpush1.msra.mxu0 0.0
    %408 = vmatprep.subr.mxu0 0.0
    %409 = vmatpush1.msra.mxu0 0.0
    %410 = vmatprep.subr.mxu0 0.0
    %411 = vmatpush1.msra.mxu0 0.0
    %412 = vmatprep.subr.mxu0 0.0
    %413 = vmatpush1.msra.mxu0 0.0
    %414 = vmatprep.subr.mxu0 0.0
    %415 = vmatpush1.msra.mxu0 0.0
    %416 = vmatprep.subr.mxu0 0.0
    %417 = vmatpush1.msra.mxu0 0.0
    %418 = vmatprep.subr.mxu0 0.0
    %419 = vmatpush1.msra.mxu0 0.0
    %420 = vmatprep.subr.mxu0 0.0
    %421 = vmatpush1.msra.mxu0 0.0
    %422 = vmatprep.subr.mxu0 0.0
    %423 = vmatpush1.msra.mxu0 0.0
    %424 = vmatprep.subr.mxu0 0.0
    %425 = vmatpush1.msra.mxu0 0.0
    %426 = vmatprep.subr.mxu0 0.0
    %427 = vmatpush1.msra.mxu0 0.0
    %428 = vmatprep.subr.mxu0 0.0
    %429 = vmatpush1.msra.mxu0 0.0
    %430 = vmatprep.subr.mxu0 0.0
    %431 = vmatpush1.msra.mxu0 0.0
    %432 = vmatprep.subr.mxu0 0.0
    %433 = vmatpush1.msra.mxu0 0.0
    %434 = vmatprep.subr.mxu0 0.0
    %435 = vmatpush1.msra.mxu0 0.0
    %436 = vmatprep.subr.mxu0 0.0
    %437 = vmatpush1.msra.mxu0 0.0
    %438 = vmatprep.subr.mxu0 0.0
    %439 = vmatpush1.msra.mxu0 0.0
    %440 = vmatprep.subr.mxu0 0.0
    %441 = vmatpush1.msra.mxu0 0.0
    %442 = vmatprep.subr.mxu0 0.0
    %443 = vmatpush1.msra.mxu0 0.0
    %444 = vmatprep.subr.mxu0 0.0
    %445 = vmatpush1.msra.mxu0 0.0
    %446 = vmatprep.subr.mxu0 0.0
    %447 = vmatpush1.msra.mxu0 0.0
    %448 = vmatprep.subr.mxu0 0.0
    %449 = vmatpush1.msra.mxu0 0.0
    %450 = vmatprep.mubr.f32.mxu0 0.0
    %451 = vmatmul.mubr.f32.gmra.mrb[0].mxu0 %v156
    %v452 = vpop.f32.mrb[0].mxu0
    %v453 = vadd.f32 0.0, %v452
    %v454 = vpop.f32.mrb[0].mxu0
    %455 = vmatprep.mubr.f32.mxu0 0.0
    %456 = vmatmul.mubr.f32.gmra.mrb[0].mxu0 %v159
    %v457 = vpop.f32.mrb[0].mxu0
    %v458 = vadd.f32 0.0, %v457
    %v459 = vpop.f32.mrb[0].mxu0
    %460 = vdwg.mxu0
    %461 = vmatprep.subr.mxu0 0.0
    %462 = vmatpush1.msra.mxu0 %v123
    %463 = vmatprep.subr.mxu0 0.0
    %464 = vmatpush1.msra.mxu0 %v124
    %465 = vmatprep.subr.mxu0 0.0
    %466 = vmatpush1.msra.mxu0 %v125
    %467 = vmatprep.subr.mxu0 0.0
    %468 = vmatpush1.msra.mxu0 %v126
    %469 = vmatprep.subr.mxu0 0.0
    %470 = vmatpush1.msra.mxu0 0.0
    %471 = vmatprep.subr.mxu0 0.0
    %472 = vmatpush1.msra.mxu0 0.0
    %473 = vmatprep.subr.mxu0 0.0
    %474 = vmatpush1.msra.mxu0 0.0
    %475 = vmatprep.subr.mxu0 0.0
    %476 = vmatpush1.msra.mxu0 0.0
    %477 = vmatprep.subr.mxu0 0.0
    %478 = vmatpush1.msra.mxu0 0.0
    %479 = vmatprep.subr.mxu0 0.0
    %480 = vmatpush1.msra.mxu0 0.0
    %481 = vmatprep.subr.mxu0 0.0
    %482 = vmatpush1.msra.mxu0 0.0
    %483 = vmatprep.subr.mxu0 0.0
    %484 = vmatpush1.msra.mxu0 0.0
    %485 = vmatprep.subr.mxu0 0.0
    %486 = vmatpush1.msra.mxu0 0.0
    %487 = vmatprep.subr.mxu0 0.0
    %488 = vmatpush1.msra.mxu0 0.0
    %489 = vmatprep.subr.mxu0 0.0
    %490 = vmatpush1.msra.mxu0 0.0
    %491 = vmatprep.subr.mxu0 0.0
    %492 = vmatpush1.msra.mxu0 0.0
    %493 = vmatprep.subr.mxu0 0.0
    %494 = vmatpush1.msra.mxu0 0.0
    %495 = vmatprep.subr.mxu0 0.0
    %496 = vmatpush1.msra.mxu0 0.0
    %497 = vmatprep.subr.mxu0 0.0
    %498 = vmatpush1.msra.mxu0 0.0
    %499 = vmatprep.subr.mxu0 0.0
    %500 = vmatpush1.msra.mxu0 0.0
    %501 = vmatprep.subr.mxu0 0.0
    %502 = vmatpush1.msra.mxu0 0.0
    %503 = vmatprep.subr.mxu0 0.0
    %504 = vmatpush1.msra.mxu0 0.0
    %505 = vmatprep.subr.mxu0 0.0
    %506 = vmatpush1.msra.mxu0 0.0
    %507 = vmatprep.subr.mxu0 0.0
    %508 = vmatpush1.msra.mxu0 0.0
    %509 = vmatprep.subr.mxu0 0.0
    %510 = vmatpush1.msra.mxu0 0.0
    %511 = vmatprep.subr.mxu0 0.0
    %512 = vmatpush1.msra.mxu0 0.0
    %513 = vmatprep.subr.mxu0 0.0
    %514 = vmatpush1.msra.mxu0 0.0
    %515 = vmatprep.subr.mxu0 0.0
    %516 = vmatpush1.msra.mxu0 0.0
    %517 = vmatprep.subr.mxu0 0.0
    %518 = vmatpush1.msra.mxu0 0.0
    %519 = vmatprep.subr.mxu0 0.0
    %520 = vmatpush1.msra.mxu0 0.0
    %521 = vmatprep.subr.mxu0 0.0
    %522 = vmatpush1.msra.mxu0 0.0
    %523 = vmatprep.subr.mxu0 0.0
    %524 = vmatpush1.msra.mxu0 0.0
    %525 = vmatprep.mubr.f32.mxu0 0.0
    %526 = vmatmul.mubr.f32.gmra.mrb[0].mxu0 %v156
    %v527 = vpop.f32.mrb[0].mxu0
    %v528 = vadd.f32 0.0, %v527
    %v529 = vpop.f32.mrb[0].mxu0
    %530 = vmatprep.mubr.f32.mxu0 0.0
    %531 = vmatmul.mubr.f32.gmra.mrb[0].mxu0 %v159
    %v532 = vpop.f32.mrb[0].mxu0
    %v533 = vadd.f32 0.0, %v532
    %v534 = vpop.f32.mrb[0].mxu0
    %535 = vdwg.mxu0
    %536 = vmatprep.subr.mxu0 0.0
    %537 = vmatpush1.msra.mxu0 %v127
    %538 = vmatprep.subr.mxu0 0.0
    %539 = vmatpush1.msra.mxu0 %v128
    %540 = vmatprep.subr.mxu0 0.0
    %541 = vmatpush1.msra.mxu0 %v129
    %542 = vmatprep.subr.mxu0 0.0
    %543 = vmatpush1.msra.mxu0 %v130
    %544 = vmatprep.subr.mxu0 0.0
    %545 = vmatpush1.msra.mxu0 0.0
    %546 = vmatprep.subr.mxu0 0.0
    %547 = vmatpush1.msra.mxu0 0.0
    %548 = vmatprep.subr.mxu0 0.0
    %549 = vmatpush1.msra.mxu0 0.0
    %550 = vmatprep.subr.mxu0 0.0
    %551 = vmatpush1.msra.mxu0 0.0
    %552 = vmatprep.subr.mxu0 0.0
    %553 = vmatpush1.msra.mxu0 0.0
    %554 = vmatprep.subr.mxu0 0.0
    %555 = vmatpush1.msra.mxu0 0.0
    %556 = vmatprep.subr.mxu0 0.0
    %557 = vmatpush1.msra.mxu0 0.0
    %558 = vmatprep.subr.mxu0 0.0
    %559 = vmatpush1.msra.mxu0 0.0
    %560 = vmatprep.subr.mxu0 0.0
    %561 = vmatpush1.msra.mxu0 0.0
    %562 = vmatprep.subr.mxu0 0.0
    %563 = vmatpush1.msra.mxu0 0.0
    %564 = vmatprep.subr.mxu0 0.0
    %565 = vmatpush1.msra.mxu0 0.0
    %566 = vmatprep.subr.mxu0 0.0
    %567 = vmatpush1.msra.mxu0 0.0
    %568 = vmatprep.subr.mxu0 0.0
    %569 = vmatpush1.msra.mxu0 0.0
    %570 = vmatprep.subr.mxu0 0.0
    %571 = vmatpush1.msra.mxu0 0.0
    %572 = vmatprep.subr.mxu0 0.0
    %573 = vmatpush1.msra.mxu0 0.0
    %574 = vmatprep.subr.mxu0 0.0
    %575 = vmatpush1.msra.mxu0 0.0
    %576 = vmatprep.subr.mxu0 0.0
    %577 = vmatpush1.msra.mxu0 0.0
    %578 = vmatprep.subr.mxu0 0.0
    %579 = vmatpush1.msra.mxu0 0.0
    %580 = vmatprep.subr.mxu0 0.0
    %581 = vmatpush1.msra.mxu0 0.0
    %582 = vmatprep.subr.mxu0 0.0
    %583 = vmatpush1.msra.mxu0 0.0
    %584 = vmatprep.subr.mxu0 0.0
    %585 = vmatpush1.msra.mxu0 0.0
    %586 = vmatprep.subr.mxu0 0.0
    %587 = vmatpush1.msra.mxu0 0.0
    %588 = vmatprep.subr.mxu0 0.0
    %589 = vmatpush1.msra.mxu0 0.0
    %590 = vmatprep.subr.mxu0 0.0
    %591 = vmatpush1.msra.mxu0 0.0
    %592 = vmatprep.subr.mxu0 0.0
    %593 = vmatpush1.msra.mxu0 0.0
    %594 = vmatprep.subr.mxu0 0.0
    %595 = vmatpush1.msra.mxu0 0.0
    %596 = vmatprep.subr.mxu0 0.0
    %597 = vmatpush1.msra.mxu0 0.0
    %598 = vmatprep.subr.mxu0 0.0
    %599 = vmatpush1.msra.mxu0 0.0
    %600 = vmatprep.mubr.f32.mxu0 0.0
    %601 = vmatmul.mubr.f32.gmra.mrb[0].mxu0 %v156
    %v602 = vpop.f32.mrb[0].mxu0
    %v603 = vadd.f32 0.0, %v602
    %v604 = vpop.f32.mrb[0].mxu0
    %605 = vmatprep.mubr.f32.mxu0 0.0
    %606 = vmatmul.mubr.f32.gmra.mrb[0].mxu0 %v159
    %v607 = vpop.f32.mrb[0].mxu0
    %v608 = vadd.f32 0.0, %v607
    %v609 = vpop.f32.mrb[0].mxu0
    %610 = vdwg.mxu0
    %611 = vmatprep.subr.mxu0 0.0
    %612 = vmatpush1.msra.mxu0 %v131
    %613 = vmatprep.subr.mxu0 0.0
    %614 = vmatpush1.msra.mxu0 %v132
    %615 = vmatprep.subr.mxu0 0.0
    %616 = vmatpush1.msra.mxu0 %v133
    %617 = vmatprep.subr.mxu0 0.0
    %618 = vmatpush1.msra.mxu0 %v134
    %619 = vmatprep.subr.mxu0 0.0
    %620 = vmatpush1.msra.mxu0 0.0
    %621 = vmatprep.subr.mxu0 0.0
    %622 = vmatpush1.msra.mxu0 0.0
    %623 = vmatprep.subr.mxu0 0.0
    %624 = vmatpush1.msra.mxu0 0.0
    %625 = vmatprep.subr.mxu0 0.0
    %626 = vmatpush1.msra.mxu0 0.0
    %627 = vmatprep.subr.mxu0 0.0
    %628 = vmatpush1.msra.mxu0 0.0
    %629 = vmatprep.subr.mxu0 0.0
    %630 = vmatpush1.msra.mxu0 0.0
    %631 = vmatprep.subr.mxu0 0.0
    %632 = vmatpush1.msra.mxu0 0.0
    %633 = vmatprep.subr.mxu0 0.0
    %634 = vmatpush1.msra.mxu0 0.0
    %635 = vmatprep.subr.mxu0 0.0
    %636 = vmatpush1.msra.mxu0 0.0
    %637 = vmatprep.subr.mxu0 0.0
    %638 = vmatpush1.msra.mxu0 0.0
    %639 = vmatprep.subr.mxu0 0.0
    %640 = vmatpush1.msra.mxu0 0.0
    %641 = vmatprep.subr.mxu0 0.0
    %642 = vmatpush1.msra.mxu0 0.0
    %643 = vmatprep.subr.mxu0 0.0
    %644 = vmatpush1.msra.mxu0 0.0
    %645 = vmatprep.subr.mxu0 0.0
    %646 = vmatpush1.msra.mxu0 0.0
    %647 = vmatprep.subr.mxu0 0.0
    %648 = vmatpush1.msra.mxu0 0.0
    %649 = vmatprep.subr.mxu0 0.0
    %650 = vmatpush1.msra.mxu0 0.0
    %651 = vmatprep.subr.mxu0 0.0
    %652 = vmatpush1.msra.mxu0 0.0
    %653 = vmatprep.subr.mxu0 0.0
    %654 = vmatpush1.msra.mxu0 0.0
    %655 = vmatprep.subr.mxu0 0.0
    %656 = vmatpush1.msra.mxu0 0.0
    %657 = vmatprep.subr.mxu0 0.0
    %658 = vmatpush1.msra.mxu0 0.0
    %659 = vmatprep.subr.mxu0 0.0
    %660 = vmatpush1.msra.mxu0 0.0
    %661 = vmatprep.subr.mxu0 0.0
    %662 = vmatpush1.msra.mxu0 0.0
    %663 = vmatprep.subr.mxu0 0.0
    %664 = vmatpush1.msra.mxu0 0.0
    %665 = vmatprep.subr.mxu0 0.0
    %666 = vmatpush1.msra.mxu0 0.0
    %667 = vmatprep.subr.mxu0 0.0
    %668 = vmatpush1.msra.mxu0 0.0
    %669 = vmatprep.subr.mxu0 0.0
    %670 = vmatpush1.msra.mxu0 0.0
    %671 = vmatprep.subr.mxu0 0.0
    %672 = vmatpush1.msra.mxu0 0.0
    %673 = vmatprep.subr.mxu0 0.0
    %674 = vmatpush1.msra.mxu0 0.0
    %675 = vmatprep.mubr.f32.mxu0 0.0
    %676 = vmatmul.mubr.f32.gmra.mrb[0].mxu0 %v156
    %v677 = vpop.f32.mrb[0].mxu0
    %v678 = vadd.f32 0.0, %v677
    %v679 = vpop.f32.mrb[0].mxu0
    %680 = vmatprep.mubr.f32.mxu0 0.0
    %681 = vmatmul.mubr.f32.gmra.mrb[0].mxu0 %v159
    %v682 = vpop.f32.mrb[0].mxu0
    %v683 = vadd.f32 0.0, %v682
    %v684 = vpop.f32.mrb[0].mxu0
    %685 = vdwg.mxu0
    %686 = vmatprep.subr.mxu0 0.0
    %687 = vmatpush1.msra.mxu0 %v135
    %688 = vmatprep.subr.mxu0 0.0
    %689 = vmatpush1.msra.mxu0 %v136
    %690 = vmatprep.subr.mxu0 0.0
    %691 = vmatpush1.msra.mxu0 %v137
    %692 = vmatprep.subr.mxu0 0.0
    %693 = vmatpush1.msra.mxu0 %v138
    %694 = vmatprep.subr.mxu0 0.0
    %695 = vmatpush1.msra.mxu0 0.0
    %696 = vmatprep.subr.mxu0 0.0
    %697 = vmatpush1.msra.mxu0 0.0
    %698 = vmatprep.subr.mxu0 0.0
    %699 = vmatpush1.msra.mxu0 0.0
    %700 = vmatprep.subr.mxu0 0.0
    %701 = vmatpush1.msra.mxu0 0.0
    %702 = vmatprep.subr.mxu0 0.0
    %703 = vmatpush1.msra.mxu0 0.0
    %704 = vmatprep.subr.mxu0 0.0
    %705 = vmatpush1.msra.mxu0 0.0
    %706 = vmatprep.subr.mxu0 0.0
    %707 = vmatpush1.msra.mxu0 0.0
    %708 = vmatprep.subr.mxu0 0.0
    %709 = vmatpush1.msra.mxu0 0.0
    %710 = vmatprep.subr.mxu0 0.0
    %711 = vmatpush1.msra.mxu0 0.0
    %712 = vmatprep.subr.mxu0 0.0
    %713 = vmatpush1.msra.mxu0 0.0
    %714 = vmatprep.subr.mxu0 0.0
    %715 = vmatpush1.msra.mxu0 0.0
    %716 = vmatprep.subr.mxu0 0.0
    %717 = vmatpush1.msra.mxu0 0.0
    %718 = vmatprep.subr.mxu0 0.0
    %719 = vmatpush1.msra.mxu0 0.0
    %720 = vmatprep.subr.mxu0 0.0
    %721 = vmatpush1.msra.mxu0 0.0
    %722 = vmatprep.subr.mxu0 0.0
    %723 = vmatpush1.msra.mxu0 0.0
    %724 = vmatprep.subr.mxu0 0.0
    %725 = vmatpush1.msra.mxu0 0.0
    %726 = vmatprep.subr.mxu0 0.0
    %727 = vmatpush1.msra.mxu0 0.0
    %728 = vmatprep.subr.mxu0 0.0
    %729 = vmatpush1.msra.mxu0 0.0
    %730 = vmatprep.subr.mxu0 0.0
    %731 = vmatpush1.msra.mxu0 0.0
    %732 = vmatprep.subr.mxu0 0.0
    %733 = vmatpush1.msra.mxu0 0.0
    %734 = vmatprep.subr.mxu0 0.0
    %735 = vmatpush1.msra.mxu0 0.0
    %736 = vmatprep.subr.mxu0 0.0
    %737 = vmatpush1.msra.mxu0 0.0
    %738 = vmatprep.subr.mxu0 0.0
    %739 = vmatpush1.msra.mxu0 0.0
    %740 = vmatprep.subr.mxu0 0.0
    %741 = vmatpush1.msra.mxu0 0.0
    %742 = vmatprep.subr.mxu0 0.0
    %743 = vmatpush1.msra.mxu0 0.0
    %744 = vmatprep.subr.mxu0 0.0
    %745 = vmatpush1.msra.mxu0 0.0
    %746 = vmatprep.subr.mxu0 0.0
    %747 = vmatpush1.msra.mxu0 0.0
    %748 = vmatprep.subr.mxu0 0.0
    %749 = vmatpush1.msra.mxu0 0.0
    %750 = vmatprep.mubr.f32.mxu0 0.0
    %751 = vmatmul.mubr.f32.gmra.mrb[0].mxu0 %v156
    %v752 = vpop.f32.mrb[0].mxu0
    %v753 = vadd.f32 0.0, %v752
    %v754 = vpop.f32.mrb[0].mxu0
    %755 = vmatprep.mubr.f32.mxu0 0.0
    %756 = vmatmul.mubr.f32.gmra.mrb[0].mxu0 %v159
    %v757 = vpop.f32.mrb[0].mxu0
    %v758 = vadd.f32 0.0, %v757
    %v759 = vpop.f32.mrb[0].mxu0
    %760 = vdwg.mxu0
    %761 = vmatprep.subr.mxu0 0.0
    %762 = vmatpush1.msra.mxu0 %v139
    %763 = vmatprep.subr.mxu0 0.0
    %764 = vmatpush1.msra.mxu0 %v140
    %765 = vmatprep.subr.mxu0 0.0
    %766 = vmatpush1.msra.mxu0 %v141
    %767 = vmatprep.subr.mxu0 0.0
    %768 = vmatpush1.msra.mxu0 %v142
    %769 = vmatprep.subr.mxu0 0.0
    %770 = vmatpush1.msra.mxu0 0.0
    %771 = vmatprep.subr.mxu0 0.0
    %772 = vmatpush1.msra.mxu0 0.0
    %773 = vmatprep.subr.mxu0 0.0
    %774 = vmatpush1.msra.mxu0 0.0
    %775 = vmatprep.subr.mxu0 0.0
    %776 = vmatpush1.msra.mxu0 0.0
    %777 = vmatprep.subr.mxu0 0.0
    %778 = vmatpush1.msra.mxu0 0.0
    %779 = vmatprep.subr.mxu0 0.0
    %780 = vmatpush1.msra.mxu0 0.0
    %781 = vmatprep.subr.mxu0 0.0
    %782 = vmatpush1.msra.mxu0 0.0
    %783 = vmatprep.subr.mxu0 0.0
    %784 = vmatpush1.msra.mxu0 0.0
    %785 = vmatprep.subr.mxu0 0.0
    %786 = vmatpush1.msra.mxu0 0.0
    %787 = vmatprep.subr.mxu0 0.0
    %788 = vmatpush1.msra.mxu0 0.0
    %789 = vmatprep.subr.mxu0 0.0
    %790 = vmatpush1.msra.mxu0 0.0
    %791 = vmatprep.subr.mxu0 0.0
    %792 = vmatpush1.msra.mxu0 0.0
    %793 = vmatprep.subr.mxu0 0.0
    %794 = vmatpush1.msra.mxu0 0.0
    %795 = vmatprep.subr.mxu0 0.0
    %796 = vmatpush1.msra.mxu0 0.0
    %797 = vmatprep.subr.mxu0 0.0
    %798 = vmatpush1.msra.mxu0 0.0
    %799 = vmatprep.subr.mxu0 0.0
    %800 = vmatpush1.msra.mxu0 0.0
    %801 = vmatprep.subr.mxu0 0.0
    %802 = vmatpush1.msra.mxu0 0.0
    %803 = vmatprep.subr.mxu0 0.0
    %804 = vmatpush1.msra.mxu0 0.0
    %805 = vmatprep.subr.mxu0 0.0
    %806 = vmatpush1.msra.mxu0 0.0
    %807 = vmatprep.subr.mxu0 0.0
    %808 = vmatpush1.msra.mxu0 0.0
    %809 = vmatprep.subr.mxu0 0.0
    %810 = vmatpush1.msra.mxu0 0.0
    %811 = vmatprep.subr.mxu0 0.0
    %812 = vmatpush1.msra.mxu0 0.0
    %813 = vmatprep.subr.mxu0 0.0
    %814 = vmatpush1.msra.mxu0 0.0
    %815 = vmatprep.subr.mxu0 0.0
    %816 = vmatpush1.msra.mxu0 0.0
    %817 = vmatprep.subr.mxu0 0.0
    %818 = vmatpush1.msra.mxu0 0.0
    %819 = vmatprep.subr.mxu0 0.0
    %820 = vmatpush1.msra.mxu0 0.0
    %821 = vmatprep.subr.mxu0 0.0
    %822 = vmatpush1.msra.mxu0 0.0
    %823 = vmatprep.subr.mxu0 0.0
    %824 = vmatpush1.msra.mxu0 0.0
    %825 = vmatprep.mubr.f32.mxu0 0.0
    %826 = vmatmul.mubr.f32.gmra.mrb[0].mxu0 %v156
    %v827 = vpop.f32.mrb[0].mxu0
    %v828 = vadd.f32 0.0, %v827
    %v829 = vpop.f32.mrb[0].mxu0
    %830 = vmatprep.mubr.f32.mxu0 0.0
    %831 = vmatmul.mubr.f32.gmra.mrb[0].mxu0 %v159
    %v832 = vpop.f32.mrb[0].mxu0
    %v833 = vadd.f32 0.0, %v832
    %v834 = vpop.f32.mrb[0].mxu0
    %835 = vdwg.mxu0
    %836 = vmatprep.subr.mxu0 0.0
    %837 = vmatpush1.msra.mxu0 %v143
    %838 = vmatprep.subr.mxu0 0.0
    %839 = vmatpush1.msra.mxu0 %v144
    %840 = vmatprep.subr.mxu0 0.0
    %841 = vmatpush1.msra.mxu0 %v145
    %842 = vmatprep.subr.mxu0 0.0
    %843 = vmatpush1.msra.mxu0 %v146
    %844 = vmatprep.subr.mxu0 0.0
    %845 = vmatpush1.msra.mxu0 0.0
    %846 = vmatprep.subr.mxu0 0.0
    %847 = vmatpush1.msra.mxu0 0.0
    %848 = vmatprep.subr.mxu0 0.0
    %849 = vmatpush1.msra.mxu0 0.0
    %850 = vmatprep.subr.mxu0 0.0
    %851 = vmatpush1.msra.mxu0 0.0
    %852 = vmatprep.subr.mxu0 0.0
    %853 = vmatpush1.msra.mxu0 0.0
    %854 = vmatprep.subr.mxu0 0.0
    %855 = vmatpush1.msra.mxu0 0.0
    %856 = vmatprep.subr.mxu0 0.0
    %857 = vmatpush1.msra.mxu0 0.0
    %858 = vmatprep.subr.mxu0 0.0
    %859 = vmatpush1.msra.mxu0 0.0
    %860 = vmatprep.subr.mxu0 0.0
    %861 = vmatpush1.msra.mxu0 0.0
    %862 = vmatprep.subr.mxu0 0.0
    %863 = vmatpush1.msra.mxu0 0.0
    %864 = vmatprep.subr.mxu0 0.0
    %865 = vmatpush1.msra.mxu0 0.0
    %866 = vmatprep.subr.mxu0 0.0
    %867 = vmatpush1.msra.mxu0 0.0
    %868 = vmatprep.subr.mxu0 0.0
    %869 = vmatpush1.msra.mxu0 0.0
    %870 = vmatprep.subr.mxu0 0.0
    %871 = vmatpush1.msra.mxu0 0.0
    %872 = vmatprep.subr.mxu0 0.0
    %873 = vmatpush1.msra.mxu0 0.0
    %874 = vmatprep.subr.mxu0 0.0
    %875 = vmatpush1.msra.mxu0 0.0
    %876 = vmatprep.subr.mxu0 0.0
    %877 = vmatpush1.msra.mxu0 0.0
    %878 = vmatprep.subr.mxu0 0.0
    %879 = vmatpush1.msra.mxu0 0.0
    %880 = vmatprep.subr.mxu0 0.0
    %881 = vmatpush1.msra.mxu0 0.0
    %882 = vmatprep.subr.mxu0 0.0
    %883 = vmatpush1.msra.mxu0 0.0
    %884 = vmatprep.subr.mxu0 0.0
    %885 = vmatpush1.msra.mxu0 0.0
    %886 = vmatprep.subr.mxu0 0.0
    %887 = vmatpush1.msra.mxu0 0.0
    %888 = vmatprep.subr.mxu0 0.0
    %889 = vmatpush1.msra.mxu0 0.0
    %890 = vmatprep.subr.mxu0 0.0
    %891 = vmatpush1.msra.mxu0 0.0
    %892 = vmatprep.subr.mxu0 0.0
    %893 = vmatpush1.msra.mxu0 0.0
    %894 = vmatprep.subr.mxu0 0.0
    %895 = vmatpush1.msra.mxu0 0.0
    %896 = vmatprep.subr.mxu0 0.0
    %897 = vmatpush1.msra.mxu0 0.0
    %898 = vmatprep.subr.mxu0 0.0
    %899 = vmatpush1.msra.mxu0 0.0
    %900 = vmatprep.mubr.f32.mxu0 0.0
    %901 = vmatmul.mubr.f32.gmra.mrb[0].mxu0 %v156
    %v902 = vpop.f32.mrb[0].mxu0
    %v903 = vadd.f32 0.0, %v902
    %v904 = vpop.f32.mrb[0].mxu0
    %905 = vmatprep.mubr.f32.mxu0 0.0
    %906 = vmatmul.mubr.f32.gmra.mrb[0].mxu0 %v159
    %v907 = vpop.f32.mrb[0].mxu0
    %v908 = vadd.f32 0.0, %v907
    %v909 = vpop.f32.mrb[0].mxu0
    %910 = vdwg.mxu0
    %911 = vmatprep.subr.mxu0 0.0
    %912 = vmatpush1.msra.mxu0 %v147
    %913 = vmatprep.subr.mxu0 0.0
    %914 = vmatpush1.msra.mxu0 %v148
    %915 = vmatprep.subr.mxu0 0.0
    %916 = vmatpush1.msra.mxu0 %v149
    %917 = vmatprep.subr.mxu0 0.0
    %918 = vmatpush1.msra.mxu0 %v150
    %919 = vmatprep.subr.mxu0 0.0
    %920 = vmatpush1.msra.mxu0 0.0
    %921 = vmatprep.subr.mxu0 0.0
    %922 = vmatpush1.msra.mxu0 0.0
    %923 = vmatprep.subr.mxu0 0.0
    %924 = vmatpush1.msra.mxu0 0.0
    %925 = vmatprep.subr.mxu0 0.0
    %926 = vmatpush1.msra.mxu0 0.0
    %927 = vmatprep.subr.mxu0 0.0
    %928 = vmatpush1.msra.mxu0 0.0
    %929 = vmatprep.subr.mxu0 0.0
    %930 = vmatpush1.msra.mxu0 0.0
    %931 = vmatprep.subr.mxu0 0.0
    %932 = vmatpush1.msra.mxu0 0.0
    %933 = vmatprep.subr.mxu0 0.0
    %934 = vmatpush1.msra.mxu0 0.0
    %935 = vmatprep.subr.mxu0 0.0
    %936 = vmatpush1.msra.mxu0 0.0
    %937 = vmatprep.subr.mxu0 0.0
    %938 = vmatpush1.msra.mxu0 0.0
    %939 = vmatprep.subr.mxu0 0.0
    %940 = vmatpush1.msra.mxu0 0.0
    %941 = vmatprep.subr.mxu0 0.0
    %942 = vmatpush1.msra.mxu0 0.0
    %943 = vmatprep.subr.mxu0 0.0
    %944 = vmatpush1.msra.mxu0 0.0
    %945 = vmatprep.subr.mxu0 0.0
    %946 = vmatpush1.msra.mxu0 0.0
    %947 = vmatprep.subr.mxu0 0.0
    %948 = vmatpush1.msra.mxu0 0.0
    %949 = vmatprep.subr.mxu0 0.0
    %950 = vmatpush1.msra.mxu0 0.0
    %951 = vmatprep.subr.mxu0 0.0
    %952 = vmatpush1.msra.mxu0 0.0
    %953 = vmatprep.subr.mxu0 0.0
    %954 = vmatpush1.msra.mxu0 0.0
    %955 = vmatprep.subr.mxu0 0.0
    %956 = vmatpush1.msra.mxu0 0.0
    %957 = vmatprep.subr.mxu0 0.0
    %958 = vmatpush1.msra.mxu0 0.0
    %959 = vmatprep.subr.mxu0 0.0
    %960 = vmatpush1.msra.mxu0 0.0
    %961 = vmatprep.subr.mxu0 0.0
    %962 = vmatpush1.msra.mxu0 0.0
    %963 = vmatprep.subr.mxu0 0.0
    %964 = vmatpush1.msra.mxu0 0.0
    %965 = vmatprep.subr.mxu0 0.0
    %966 = vmatpush1.msra.mxu0 0.0
    %967 = vmatprep.subr.mxu0 0.0
    %968 = vmatpush1.msra.mxu0 0.0
    %969 = vmatprep.subr.mxu0 0.0
    %970 = vmatpush1.msra.mxu0 0.0
    %971 = vmatprep.subr.mxu0 0.0
    %972 = vmatpush1.msra.mxu0 0.0
    %973 = vmatprep.subr.mxu0 0.0
    %974 = vmatpush1.msra.mxu0 0.0
    %975 = vmatprep.mubr.f32.mxu0 0.0
    %976 = vmatmul.mubr.f32.gmra.mrb[0].mxu0 %v156
    %v977 = vpop.f32.mrb[0].mxu0
    %v978 = vadd.f32 0.0, %v977
    %v979 = vpop.f32.mrb[0].mxu0
    %980 = vmatprep.mubr.f32.mxu0 0.0
    %981 = vmatmul.mubr.f32.gmra.mrb[0].mxu0 %v159
    %v982 = vpop.f32.mrb[0].mxu0
    %v983 = vadd.f32 0.0, %v982
    %v984 = vpop.f32.mrb[0].mxu0
    %985 = vdwg.mxu0
    %986 = vmatprep.subr.mxu0 0.0
    %987 = vmatpush1.msra.mxu0 %v151
    %988 = vmatprep.subr.mxu0 0.0
    %989 = vmatpush1.msra.mxu0 %v152
    %990 = vmatprep.subr.mxu0 0.0
    %991 = vmatpush1.msra.mxu0 %v153
    %992 = vmatprep.subr.mxu0 0.0
    %993 = vmatpush1.msra.mxu0 %v154
    %994 = vmatprep.subr.mxu0 0.0
    %995 = vmatpush1.msra.mxu0 0.0
    %996 = vmatprep.subr.mxu0 0.0
    %997 = vmatpush1.msra.mxu0 0.0
    %998 = vmatprep.subr.mxu0 0.0
    %999 = vmatpush1.msra.mxu0 0.0
    %1000 = vmatprep.subr.mxu0 0.0
    %1001 = vmatpush1.msra.mxu0 0.0
    %1002 = vmatprep.subr.mxu0 0.0
    %1003 = vmatpush1.msra.mxu0 0.0
    %1004 = vmatprep.subr.mxu0 0.0
    %1005 = vmatpush1.msra.mxu0 0.0
    %1006 = vmatprep.subr.mxu0 0.0
    %1007 = vmatpush1.msra.mxu0 0.0
    %1008 = vmatprep.subr.mxu0 0.0
    %1009 = vmatpush1.msra.mxu0 0.0
    %1010 = vmatprep.subr.mxu0 0.0
    %1011 = vmatpush1.msra.mxu0 0.0
    %1012 = vmatprep.subr.mxu0 0.0
    %1013 = vmatpush1.msra.mxu0 0.0
    %1014 = vmatprep.subr.mxu0 0.0
    %1015 = vmatpush1.msra.mxu0 0.0
    %1016 = vmatprep.subr.mxu0 0.0
    %1017 = vmatpush1.msra.mxu0 0.0
    %1018 = vmatprep.subr.mxu0 0.0
    %1019 = vmatpush1.msra.mxu0 0.0
    %1020 = vmatprep.subr.mxu0 0.0
    %1021 = vmatpush1.msra.mxu0 0.0
    %1022 = vmatprep.subr.mxu0 0.0
    %1023 = vmatpush1.msra.mxu0 0.0
    %1024 = vmatprep.subr.mxu0 0.0
    %1025 = vmatpush1.msra.mxu0 0.0
    %1026 = vmatprep.subr.mxu0 0.0
    %1027 = vmatpush1.msra.mxu0 0.0
    %1028 = vmatprep.subr.mxu0 0.0
    %1029 = vmatpush1.msra.mxu0 0.0
    %1030 = vmatprep.subr.mxu0 0.0
    %1031 = vmatpush1.msra.mxu0 0.0
    %1032 = vmatprep.subr.mxu0 0.0
    %1033 = vmatpush1.msra.mxu0 0.0
    %1034 = vmatprep.subr.mxu0 0.0
    %1035 = vmatpush1.msra.mxu0 0.0
    %1036 = vmatprep.subr.mxu0 0.0
    %1037 = vmatpush1.msra.mxu0 0.0
    %1038 = vmatprep.subr.mxu0 0.0
    %1039 = vmatpush1.msra.mxu0 0.0
    %1040 = vmatprep.subr.mxu0 0.0
    %1041 = vmatpush1.msra.mxu0 0.0
    %1042 = vmatprep.subr.mxu0 0.0
    %1043 = vmatpush1.msra.mxu0 0.0
    %1044 = vmatprep.subr.mxu0 0.0
    %1045 = vmatpush1.msra.mxu0 0.0
    %1046 = vmatprep.subr.mxu0 0.0
    %1047 = vmatpush1.msra.mxu0 0.0
    %1048 = vmatprep.subr.mxu0 0.0
    %1049 = vmatpush1.msra.mxu0 0.0
    %1050 = vmatprep.mubr.f32.mxu0 0.0
    %1051 = vmatmul.mubr.f32.gmra.mrb[0].mxu0 %v156
    %v1052 = vpop.f32.mrb[0].mxu0
    %v1053 = vadd.f32 0.0, %v1052
    %v1054 = vpop.f32.mrb[0].mxu0
    %1055 = vmatprep.mubr.f32.mxu0 0.0
    %1056 = vmatmul.mubr.f32.gmra.mrb[0].mxu0 %v159
    %v1057 = vpop.f32.mrb[0].mxu0
    %v1058 = vadd.f32 0.0, %v1057
    %v1059 = vpop.f32.mrb[0].mxu0
    %1060 = vdwg.mxu0
    %v1061 = vmul.f32 %v228, 0.35355338
    %v1062 = vmul.f32 %v233, 0.35355338
    %v1063 = vmul.f32 %v303, 0.35355338
    %v1064 = vmul.f32 %v308, 0.35355338
    %v1065 = vmul.f32 %v378, 0.35355338
    %v1066 = vmul.f32 %v383, 0.35355338
    %v1067 = vmul.f32 %v453, 0.35355338
    %v1068 = vmul.f32 %v458, 0.35355338
    %vm1069 = vcmask 64512
    %v1071 = vsel %vm1069, %v1061, 0
    %v1074 = vsel %vm1069, %v528, 0
    %1076 = vmatprep.subr.mxu0 0.0
    %1077 = vmatpush1.xpose.msra.mxu0 %v1074
    %1078 = vmatprep.subr.mxu0 0.0
    %1079 = vmatpush1.xpose.msra.mxu0 0.0
    %1080 = vmatprep.subr.mxu0 0.0
    %1081 = vmatpush1.xpose.msra.mxu0 0.0
    %1082 = vmatprep.subr.mxu0 0.0
    %1083 = vmatpush1.xpose.msra.mxu0 0.0
    %1084 = vmatprep.subr.mxu0 0.0
    %1085 = vmatpush1.xpose.msra.mxu0 0.0
    %1086 = vmatprep.subr.mxu0 0.0
    %1087 = vmatpush1.xpose.msra.mxu0 0.0
    %1088 = vmatprep.subr.mxu0 0.0
    %1089 = vmatpush1.xpose.msra.mxu0 0.0
    %1090 = vmatprep.subr.mxu0 0.0
    %1091 = vmatpush1.xpose.msra.mxu0 0.0
    %1092 = vmatprep.subr.mxu0 0.0
    %1093 = vmatpush1.xpose.msra.mxu0 0.0
    %1094 = vmatprep.subr.mxu0 0.0
    %1095 = vmatpush1.xpose.msra.mxu0 0.0
    %1096 = vmatprep.subr.mxu0 0.0
    %1097 = vmatpush1.xpose.msra.mxu0 0.0
    %1098 = vmatprep.subr.mxu0 0.0
    %1099 = vmatpush1.xpose.msra.mxu0 0.0
    %1100 = vmatprep.subr.mxu0 0.0
    %1101 = vmatpush1.xpose.msra.mxu0 0.0
    %1102 = vmatprep.subr.mxu0 0.0
    %1103 = vmatpush1.xpose.msra.mxu0 0.0
    %1104 = vmatprep.subr.mxu0 0.0
    %1105 = vmatpush1.xpose.msra.mxu0 0.0
    %1106 = vmatprep.subr.mxu0 0.0
    %1107 = vmatpush1.xpose.msra.mxu0 0.0
    %1108 = vmatprep.subr.mxu0 0.0
    %1109 = vmatpush1.xpose.msra.mxu0 0.0
    %1110 = vmatprep.subr.mxu0 0.0
    %1111 = vmatpush1.xpose.msra.mxu0 0.0
    %1112 = vmatprep.subr.mxu0 0.0
    %1113 = vmatpush1.xpose.msra.mxu0 0.0
    %1114 = vmatprep.subr.mxu0 0.0
    %1115 = vmatpush1.xpose.msra.mxu0 0.0
    %1116 = vmatprep.subr.mxu0 0.0
    %1117 = vmatpush1.xpose.msra.mxu0 0.0
    %1118 = vmatprep.subr.mxu0 0.0
    %1119 = vmatpush1.xpose.msra.mxu0 0.0
    %1120 = vmatprep.subr.mxu0 0.0
    %1121 = vmatpush1.xpose.msra.mxu0 0.0
    %1122 = vmatprep.subr.mxu0 0.0
    %1123 = vmatpush1.xpose.msra.mxu0 0.0
    %1124 = vmatprep.subr.mxu0 0.0
    %1125 = vmatpush1.xpose.msra.mxu0 0.0
    %1126 = vmatprep.subr.mxu0 0.0
    %1127 = vmatpush1.xpose.msra.mxu0 0.0
    %1128 = vmatprep.subr.mxu0 0.0
    %1129 = vmatpush1.xpose.msra.mxu0 0.0
    %1130 = vmatprep.subr.mxu0 0.0
    %1131 = vmatpush1.xpose.msra.mxu0 0.0
    %1132 = vmatprep.subr.mxu0 0.0
    %1133 = vmatpush1.xpose.msra.mxu0 0.0
    %1134 = vmatprep.subr.mxu0 0.0
    %1135 = vmatpush1.xpose.msra.mxu0 0.0
    %1136 = vmatprep.subr.mxu0 0.0
    %1137 = vmatpush1.xpose.msra.mxu0 0.0
    %1138 = vmatprep.subr.mxu0 0.0
    %1139 = vmatpush1.xpose.msra.mxu0 0.0
    %1140 = vmatprep.mubr.f32.mxu0 0.0
    %1141 = vmatmul.mubr.f32.gmra.mrb[0].mxu0 %v1071
    %v1142 = vpop.f32.mrb[0].mxu0
    %v1143 = vadd.f32 0.0, %v1142
    %v1144 = vpop.f32.mrb[0].mxu0
    %1145 = vdwg.mxu0
    %v1147 = vsel %vm1069, %v1062, 0
    %v1150 = vsel %vm1069, %v533, 0
    %1152 = vmatprep.subr.mxu0 0.0
    %1153 = vmatpush1.xpose.msra.mxu0 %v1150
    %1154 = vmatprep.subr.mxu0 0.0
    %1155 = vmatpush1.xpose.msra.mxu0 0.0
    %1156 = vmatprep.subr.mxu0 0.0
    %1157 = vmatpush1.xpose.msra.mxu0 0.0
    %1158 = vmatprep.subr.mxu0 0.0
    %1159 = vmatpush1.xpose.msra.mxu0 0.0
    %1160 = vmatprep.subr.mxu0 0.0
    %1161 = vmatpush1.xpose.msra.mxu0 0.0
    %1162 = vmatprep.subr.mxu0 0.0
    %1163 = vmatpush1.xpose.msra.mxu0 0.0
    %1164 = vmatprep.subr.mxu0 0.0
    %1165 = vmatpush1.xpose.msra.mxu0 0.0
    %1166 = vmatprep.subr.mxu0 0.0
    %1167 = vmatpush1.xpose.msra.mxu0 0.0
    %1168 = vmatprep.subr.mxu0 0.0
    %1169 = vmatpush1.xpose.msra.mxu0 0.0
    %1170 = vmatprep.subr.mxu0 0.0
    %1171 = vmatpush1.xpose.msra.mxu0 0.0
    %1172 = vmatprep.subr.mxu0 0.0
    %1173 = vmatpush1.xpose.msra.mxu0 0.0
    %1174 = vmatprep.subr.mxu0 0.0
    %1175 = vmatpush1.xpose.msra.mxu0 0.0
    %1176 = vmatprep.subr.mxu0 0.0
    %1177 = vmatpush1.xpose.msra.mxu0 0.0
    %1178 = vmatprep.subr.mxu0 0.0
    %1179 = vmatpush1.xpose.msra.mxu0 0.0
    %1180 = vmatprep.subr.mxu0 0.0
    %1181 = vmatpush1.xpose.msra.mxu0 0.0
    %1182 = vmatprep.subr.mxu0 0.0
    %1183 = vmatpush1.xpose.msra.mxu0 0.0
    %1184 = vmatprep.subr.mxu0 0.0
    %1185 = vmatpush1.xpose.msra.mxu0 0.0
    %1186 = vmatprep.subr.mxu0 0.0
    %1187 = vmatpush1.xpose.msra.mxu0 0.0
    %1188 = vmatprep.subr.mxu0 0.0
    %1189 = vmatpush1.xpose.msra.mxu0 0.0
    %1190 = vmatprep.subr.mxu0 0.0
    %1191 = vmatpush1.xpose.msra.mxu0 0.0
    %1192 = vmatprep.subr.mxu0 0.0
    %1193 = vmatpush1.xpose.msra.mxu0 0.0
    %1194 = vmatprep.subr.mxu0 0.0
    %1195 = vmatpush1.xpose.msra.mxu0 0.0
    %1196 = vmatprep.subr.mxu0 0.0
    %1197 = vmatpush1.xpose.msra.mxu0 0.0
    %1198 = vmatprep.subr.mxu0 0.0
    %1199 = vmatpush1.xpose.msra.mxu0 0.0
    %1200 = vmatprep.subr.mxu0 0.0
    %1201 = vmatpush1.xpose.msra.mxu0 0.0
    %1202 = vmatprep.subr.mxu0 0.0
    %1203 = vmatpush1.xpose.msra.mxu0 0.0
    %1204 = vmatprep.subr.mxu0 0.0
    %1205 = vmatpush1.xpose.msra.mxu0 0.0
    %1206 = vmatprep.subr.mxu0 0.0
    %1207 = vmatpush1.xpose.msra.mxu0 0.0
    %1208 = vmatprep.subr.mxu0 0.0
    %1209 = vmatpush1.xpose.msra.mxu0 0.0
    %1210 = vmatprep.subr.mxu0 0.0
    %1211 = vmatpush1.xpose.msra.mxu0 0.0
    %1212 = vmatprep.subr.mxu0 0.0
    %1213 = vmatpush1.xpose.msra.mxu0 0.0
    %1214 = vmatprep.subr.mxu0 0.0
    %1215 = vmatpush1.xpose.msra.mxu0 0.0
    %1216 = vmatprep.mubr.f32.mxu0 0.0
    %1217 = vmatmul.mubr.f32.gmra.mrb[0].mxu0 %v1147
    %v1218 = vpop.f32.mrb[0].mxu0
    %v1219 = vadd.f32 0.0, %v1218
    %v1220 = vpop.f32.mrb[0].mxu0
    %1221 = vdwg.mxu0
    %v1223 = vsel %vm1069, %v1063, 0
    %v1226 = vsel %vm1069, %v603, 0
    %1228 = vmatprep.subr.mxu0 0.0
    %1229 = vmatpush1.xpose.msra.mxu0 %v1226
    %1230 = vmatprep.subr.mxu0 0.0
    %1231 = vmatpush1.xpose.msra.mxu0 0.0
    %1232 = vmatprep.subr.mxu0 0.0
    %1233 = vmatpush1.xpose.msra.mxu0 0.0
    %1234 = vmatprep.subr.mxu0 0.0
    %1235 = vmatpush1.xpose.msra.mxu0 0.0
    %1236 = vmatprep.subr.mxu0 0.0
    %1237 = vmatpush1.xpose.msra.mxu0 0.0
    %1238 = vmatprep.subr.mxu0 0.0
    %1239 = vmatpush1.xpose.msra.mxu0 0.0
    %1240 = vmatprep.subr.mxu0 0.0
    %1241 = vmatpush1.xpose.msra.mxu0 0.0
    %1242 = vmatprep.subr.mxu0 0.0
    %1243 = vmatpush1.xpose.msra.mxu0 0.0
    %1244 = vmatprep.subr.mxu0 0.0
    %1245 = vmatpush1.xpose.msra.mxu0 0.0
    %1246 = vmatprep.subr.mxu0 0.0
    %1247 = vmatpush1.xpose.msra.mxu0 0.0
    %1248 = vmatprep.subr.mxu0 0.0
    %1249 = vmatpush1.xpose.msra.mxu0 0.0
    %1250 = vmatprep.subr.mxu0 0.0
    %1251 = vmatpush1.xpose.msra.mxu0 0.0
    %1252 = vmatprep.subr.mxu0 0.0
    %1253 = vmatpush1.xpose.msra.mxu0 0.0
    %1254 = vmatprep.subr.mxu0 0.0
    %1255 = vmatpush1.xpose.msra.mxu0 0.0
    %1256 = vmatprep.subr.mxu0 0.0
    %1257 = vmatpush1.xpose.msra.mxu0 0.0
    %1258 = vmatprep.subr.mxu0 0.0
    %1259 = vmatpush1.xpose.msra.mxu0 0.0
    %1260 = vmatprep.subr.mxu0 0.0
    %1261 = vmatpush1.xpose.msra.mxu0 0.0
    %1262 = vmatprep.subr.mxu0 0.0
    %1263 = vmatpush1.xpose.msra.mxu0 0.0
    %1264 = vmatprep.subr.mxu0 0.0
    %1265 = vmatpush1.xpose.msra.mxu0 0.0
    %1266 = vmatprep.subr.mxu0 0.0
    %1267 = vmatpush1.xpose.msra.mxu0 0.0
    %1268 = vmatprep.subr.mxu0 0.0
    %1269 = vmatpush1.xpose.msra.mxu0 0.0
    %1270 = vmatprep.subr.mxu0 0.0
    %1271 = vmatpush1.xpose.msra.mxu0 0.0
    %1272 = vmatprep.subr.mxu0 0.0
    %1273 = vmatpush1.xpose.msra.mxu0 0.0
    %1274 = vmatprep.subr.mxu0 0.0
    %1275 = vmatpush1.xpose.msra.mxu0 0.0
    %1276 = vmatprep.subr.mxu0 0.0
    %1277 = vmatpush1.xpose.msra.mxu0 0.0
    %1278 = vmatprep.subr.mxu0 0.0
    %1279 = vmatpush1.xpose.msra.mxu0 0.0
    %1280 = vmatprep.subr.mxu0 0.0
    %1281 = vmatpush1.xpose.msra.mxu0 0.0
    %1282 = vmatprep.subr.mxu0 0.0
    %1283 = vmatpush1.xpose.msra.mxu0 0.0
    %1284 = vmatprep.subr.mxu0 0.0
    %1285 = vmatpush1.xpose.msra.mxu0 0.0
    %1286 = vmatprep.subr.mxu0 0.0
    %1287 = vmatpush1.xpose.msra.mxu0 0.0
    %1288 = vmatprep.subr.mxu0 0.0
    %1289 = vmatpush1.xpose.msra.mxu0 0.0
    %1290 = vmatprep.subr.mxu0 0.0
    %1291 = vmatpush1.xpose.msra.mxu0 0.0
    %1292 = vmatprep.mubr.f32.mxu0 0.0
    %1293 = vmatmul.mubr.f32.gmra.mrb[0].mxu0 %v1223
    %v1294 = vpop.f32.mrb[0].mxu0
    %v1295 = vadd.f32 0.0, %v1294
    %v1296 = vpop.f32.mrb[0].mxu0
    %1297 = vdwg.mxu0
    %v1299 = vsel %vm1069, %v1064, 0
    %v1302 = vsel %vm1069, %v608, 0
    %1304 = vmatprep.subr.mxu0 0.0
    %1305 = vmatpush1.xpose.msra.mxu0 %v1302
    %1306 = vmatprep.subr.mxu0 0.0
    %1307 = vmatpush1.xpose.msra.mxu0 0.0
    %1308 = vmatprep.subr.mxu0 0.0
    %1309 = vmatpush1.xpose.msra.mxu0 0.0
    %1310 = vmatprep.subr.mxu0 0.0
    %1311 = vmatpush1.xpose.msra.mxu0 0.0
    %1312 = vmatprep.subr.mxu0 0.0
    %1313 = vmatpush1.xpose.msra.mxu0 0.0
    %1314 = vmatprep.subr.mxu0 0.0
    %1315 = vmatpush1.xpose.msra.mxu0 0.0
    %1316 = vmatprep.subr.mxu0 0.0
    %1317 = vmatpush1.xpose.msra.mxu0 0.0
    %1318 = vmatprep.subr.mxu0 0.0
    %1319 = vmatpush1.xpose.msra.mxu0 0.0
    %1320 = vmatprep.subr.mxu0 0.0
    %1321 = vmatpush1.xpose.msra.mxu0 0.0
    %1322 = vmatprep.subr.mxu0 0.0
    %1323 = vmatpush1.xpose.msra.mxu0 0.0
    %1324 = vmatprep.subr.mxu0 0.0
    %1325 = vmatpush1.xpose.msra.mxu0 0.0
    %1326 = vmatprep.subr.mxu0 0.0
    %1327 = vmatpush1.xpose.msra.mxu0 0.0
    %1328 = vmatprep.subr.mxu0 0.0
    %1329 = vmatpush1.xpose.msra.mxu0 0.0
    %1330 = vmatprep.subr.mxu0 0.0
    %1331 = vmatpush1.xpose.msra.mxu0 0.0
    %1332 = vmatprep.subr.mxu0 0.0
    %1333 = vmatpush1.xpose.msra.mxu0 0.0
    %1334 = vmatprep.subr.mxu0 0.0
    %1335 = vmatpush1.xpose.msra.mxu0 0.0
    %1336 = vmatprep.subr.mxu0 0.0
    %1337 = vmatpush1.xpose.msra.mxu0 0.0
    %1338 = vmatprep.subr.mxu0 0.0
    %1339 = vmatpush1.xpose.msra.mxu0 0.0
    %1340 = vmatprep.subr.mxu0 0.0
    %1341 = vmatpush1.xpose.msra.mxu0 0.0
    %1342 = vmatprep.subr.mxu0 0.0
    %1343 = vmatpush1.xpose.msra.mxu0 0.0
    %1344 = vmatprep.subr.mxu0 0.0
    %1345 = vmatpush1.xpose.msra.mxu0 0.0
    %1346 = vmatprep.subr.mxu0 0.0
    %1347 = vmatpush1.xpose.msra.mxu0 0.0
    %1348 = vmatprep.subr.mxu0 0.0
    %1349 = vmatpush1.xpose.msra.mxu0 0.0
    %1350 = vmatprep.subr.mxu0 0.0
    %1351 = vmatpush1.xpose.msra.mxu0 0.0
    %1352 = vmatprep.subr.mxu0 0.0
    %1353 = vmatpush1.xpose.msra.mxu0 0.0
    %1354 = vmatprep.subr.mxu0 0.0
    %1355 = vmatpush1.xpose.msra.mxu0 0.0
    %1356 = vmatprep.subr.mxu0 0.0
    %1357 = vmatpush1.xpose.msra.mxu0 0.0
    %1358 = vmatprep.subr.mxu0 0.0
    %1359 = vmatpush1.xpose.msra.mxu0 0.0
    %1360 = vmatprep.subr.mxu0 0.0
    %1361 = vmatpush1.xpose.msra.mxu0 0.0
    %1362 = vmatprep.subr.mxu0 0.0
    %1363 = vmatpush1.xpose.msra.mxu0 0.0
    %1364 = vmatprep.subr.mxu0 0.0
    %1365 = vmatpush1.xpose.msra.mxu0 0.0
    %1366 = vmatprep.subr.mxu0 0.0
    %1367 = vmatpush1.xpose.msra.mxu0 0.0
    %1368 = vmatprep.mubr.f32.mxu0 0.0
    %1369 = vmatmul.mubr.f32.gmra.mrb[0].mxu0 %v1299
    %v1370 = vpop.f32.mrb[0].mxu0
    %v1371 = vadd.f32 0.0, %v1370
    %v1372 = vpop.f32.mrb[0].mxu0
    %1373 = vdwg.mxu0
    %v1375 = vsel %vm1069, %v1065, 0
    %v1378 = vsel %vm1069, %v678, 0
    %1380 = vmatprep.subr.mxu0 0.0
    %1381 = vmatpush1.xpose.msra.mxu0 %v1378
    %1382 = vmatprep.subr.mxu0 0.0
    %1383 = vmatpush1.xpose.msra.mxu0 0.0
    %1384 = vmatprep.subr.mxu0 0.0
    %1385 = vmatpush1.xpose.msra.mxu0 0.0
    %1386 = vmatprep.subr.mxu0 0.0
    %1387 = vmatpush1.xpose.msra.mxu0 0.0
    %1388 = vmatprep.subr.mxu0 0.0
    %1389 = vmatpush1.xpose.msra.mxu0 0.0
    %1390 = vmatprep.subr.mxu0 0.0
    %1391 = vmatpush1.xpose.msra.mxu0 0.0
    %1392 = vmatprep.subr.mxu0 0.0
    %1393 = vmatpush1.xpose.msra.mxu0 0.0
    %1394 = vmatprep.subr.mxu0 0.0
    %1395 = vmatpush1.xpose.msra.mxu0 0.0
    %1396 = vmatprep.subr.mxu0 0.0
    %1397 = vmatpush1.xpose.msra.mxu0 0.0
    %1398 = vmatprep.subr.mxu0 0.0
    %1399 = vmatpush1.xpose.msra.mxu0 0.0
    %1400 = vmatprep.subr.mxu0 0.0
    %1401 = vmatpush1.xpose.msra.mxu0 0.0
    %1402 = vmatprep.subr.mxu0 0.0
    %1403 = vmatpush1.xpose.msra.mxu0 0.0
    %1404 = vmatprep.subr.mxu0 0.0
    %1405 = vmatpush1.xpose.msra.mxu0 0.0
    %1406 = vmatprep.subr.mxu0 0.0
    %1407 = vmatpush1.xpose.msra.mxu0 0.0
    %1408 = vmatprep.subr.mxu0 0.0
    %1409 = vmatpush1.xpose.msra.mxu0 0.0
    %1410 = vmatprep.subr.mxu0 0.0
    %1411 = vmatpush1.xpose.msra.mxu0 0.0
    %1412 = vmatprep.subr.mxu0 0.0
    %1413 = vmatpush1.xpose.msra.mxu0 0.0
    %1414 = vmatprep.subr.mxu0 0.0
    %1415 = vmatpush1.xpose.msra.mxu0 0.0
    %1416 = vmatprep.subr.mxu0 0.0
    %1417 = vmatpush1.xpose.msra.mxu0 0.0
    %1418 = vmatprep.subr.mxu0 0.0
    %1419 = vmatpush1.xpose.msra.mxu0 0.0
    %1420 = vmatprep.subr.mxu0 0.0
    %1421 = vmatpush1.xpose.msra.mxu0 0.0
    %1422 = vmatprep.subr.mxu0 0.0
    %1423 = vmatpush1.xpose.msra.mxu0 0.0
    %1424 = vmatprep.subr.mxu0 0.0
    %1425 = vmatpush1.xpose.msra.mxu0 0.0
    %1426 = vmatprep.subr.mxu0 0.0
    %1427 = vmatpush1.xpose.msra.mxu0 0.0
    %1428 = vmatprep.subr.mxu0 0.0
    %1429 = vmatpush1.xpose.msra.mxu0 0.0
    %1430 = vmatprep.subr.mxu0 0.0
    %1431 = vmatpush1.xpose.msra.mxu0 0.0
    %1432 = vmatprep.subr.mxu0 0.0
    %1433 = vmatpush1.xpose.msra.mxu0 0.0
    %1434 = vmatprep.subr.mxu0 0.0
    %1435 = vmatpush1.xpose.msra.mxu0 0.0
    %1436 = vmatprep.subr.mxu0 0.0
    %1437 = vmatpush1.xpose.msra.mxu0 0.0
    %1438 = vmatprep.subr.mxu0 0.0
    %1439 = vmatpush1.xpose.msra.mxu0 0.0
    %1440 = vmatprep.subr.mxu0 0.0
    %1441 = vmatpush1.xpose.msra.mxu0 0.0
    %1442 = vmatprep.subr.mxu0 0.0
    %1443 = vmatpush1.xpose.msra.mxu0 0.0
    %1444 = vmatprep.mubr.f32.mxu0 0.0
    %1445 = vmatmul.mubr.f32.gmra.mrb[0].mxu0 %v1375
    %v1446 = vpop.f32.mrb[0].mxu0
    %v1447 = vadd.f32 0.0, %v1446
    %v1448 = vpop.f32.mrb[0].mxu0
    %1449 = vdwg.mxu0
    %v1451 = vsel %vm1069, %v1066, 0
    %v1454 = vsel %vm1069, %v683, 0
    %1456 = vmatprep.subr.mxu0 0.0
    %1457 = vmatpush1.xpose.msra.mxu0 %v1454
    %1458 = vmatprep.subr.mxu0 0.0
    %1459 = vmatpush1.xpose.msra.mxu0 0.0
    %1460 = vmatprep.subr.mxu0 0.0
    %1461 = vmatpush1.xpose.msra.mxu0 0.0
    %1462 = vmatprep.subr.mxu0 0.0
    %1463 = vmatpush1.xpose.msra.mxu0 0.0
    %1464 = vmatprep.subr.mxu0 0.0
    %1465 = vmatpush1.xpose.msra.mxu0 0.0
    %1466 = vmatprep.subr.mxu0 0.0
    %1467 = vmatpush1.xpose.msra.mxu0 0.0
    %1468 = vmatprep.subr.mxu0 0.0
    %1469 = vmatpush1.xpose.msra.mxu0 0.0
    %1470 = vmatprep.subr.mxu0 0.0
    %1471 = vmatpush1.xpose.msra.mxu0 0.0
    %1472 = vmatprep.subr.mxu0 0.0
    %1473 = vmatpush1.xpose.msra.mxu0 0.0
    %1474 = vmatprep.subr.mxu0 0.0
    %1475 = vmatpush1.xpose.msra.mxu0 0.0
    %1476 = vmatprep.subr.mxu0 0.0
    %1477 = vmatpush1.xpose.msra.mxu0 0.0
    %1478 = vmatprep.subr.mxu0 0.0
    %1479 = vmatpush1.xpose.msra.mxu0 0.0
    %1480 = vmatprep.subr.mxu0 0.0
    %1481 = vmatpush1.xpose.msra.mxu0 0.0
    %1482 = vmatprep.subr.mxu0 0.0
    %1483 = vmatpush1.xpose.msra.mxu0 0.0
    %1484 = vmatprep.subr.mxu0 0.0
    %1485 = vmatpush1.xpose.msra.mxu0 0.0
    %1486 = vmatprep.subr.mxu0 0.0
    %1487 = vmatpush1.xpose.msra.mxu0 0.0
    %1488 = vmatprep.subr.mxu0 0.0
    %1489 = vmatpush1.xpose.msra.mxu0 0.0
    %1490 = vmatprep.subr.mxu0 0.0
    %1491 = vmatpush1.xpose.msra.mxu0 0.0
    %1492 = vmatprep.subr.mxu0 0.0
    %1493 = vmatpush1.xpose.msra.mxu0 0.0
    %1494 = vmatprep.subr.mxu0 0.0
    %1495 = vmatpush1.xpose.msra.mxu0 0.0
    %1496 = vmatprep.subr.mxu0 0.0
    %1497 = vmatpush1.xpose.msra.mxu0 0.0
    %1498 = vmatprep.subr.mxu0 0.0
    %1499 = vmatpush1.xpose.msra.mxu0 0.0
    %1500 = vmatprep.subr.mxu0 0.0
    %1501 = vmatpush1.xpose.msra.mxu0 0.0
    %1502 = vmatprep.subr.mxu0 0.0
    %1503 = vmatpush1.xpose.msra.mxu0 0.0
    %1504 = vmatprep.subr.mxu0 0.0
    %1505 = vmatpush1.xpose.msra.mxu0 0.0
    %1506 = vmatprep.subr.mxu0 0.0
    %1507 = vmatpush1.xpose.msra.mxu0 0.0
    %1508 = vmatprep.subr.mxu0 0.0
    %1509 = vmatpush1.xpose.msra.mxu0 0.0
    %1510 = vmatprep.subr.mxu0 0.0
    %1511 = vmatpush1.xpose.msra.mxu0 0.0
    %1512 = vmatprep.subr.mxu0 0.0
    %1513 = vmatpush1.xpose.msra.mxu0 0.0
    %1514 = vmatprep.subr.mxu0 0.0
    %1515 = vmatpush1.xpose.msra.mxu0 0.0
    %1516 = vmatprep.subr.mxu0 0.0
    %1517 = vmatpush1.xpose.msra.mxu0 0.0
    %1518 = vmatprep.subr.mxu0 0.0
    %1519 = vmatpush1.xpose.msra.mxu0 0.0
    %1520 = vmatprep.mubr.f32.mxu0 0.0
    %1521 = vmatmul.mubr.f32.gmra.mrb[0].mxu0 %v1451
    %v1522 = vpop.f32.mrb[0].mxu0
    %v1523 = vadd.f32 0.0, %v1522
    %v1524 = vpop.f32.mrb[0].mxu0
    %1525 = vdwg.mxu0
    %v1527 = vsel %vm1069, %v1067, 0
    %v1530 = vsel %vm1069, %v753, 0
    %1532 = vmatprep.subr.mxu0 0.0
    %1533 = vmatpush1.xpose.msra.mxu0 %v1530
    %1534 = vmatprep.subr.mxu0 0.0
    %1535 = vmatpush1.xpose.msra.mxu0 0.0
    %1536 = vmatprep.subr.mxu0 0.0
    %1537 = vmatpush1.xpose.msra.mxu0 0.0
    %1538 = vmatprep.subr.mxu0 0.0
    %1539 = vmatpush1.xpose.msra.mxu0 0.0
    %1540 = vmatprep.subr.mxu0 0.0
    %1541 = vmatpush1.xpose.msra.mxu0 0.0
    %1542 = vmatprep.subr.mxu0 0.0
    %1543 = vmatpush1.xpose.msra.mxu0 0.0
    %1544 = vmatprep.subr.mxu0 0.0
    %1545 = vmatpush1.xpose.msra.mxu0 0.0
    %1546 = vmatprep.subr.mxu0 0.0
    %1547 = vmatpush1.xpose.msra.mxu0 0.0
    %1548 = vmatprep.subr.mxu0 0.0
    %1549 = vmatpush1.xpose.msra.mxu0 0.0
    %1550 = vmatprep.subr.mxu0 0.0
    %1551 = vmatpush1.xpose.msra.mxu0 0.0
    %1552 = vmatprep.subr.mxu0 0.0
    %1553 = vmatpush1.xpose.msra.mxu0 0.0
    %1554 = vmatprep.subr.mxu0 0.0
    %1555 = vmatpush1.xpose.msra.mxu0 0.0
    %1556 = vmatprep.subr.mxu0 0.0
    %1557 = vmatpush1.xpose.msra.mxu0 0.0
    %1558 = vmatprep.subr.mxu0 0.0
    %1559 = vmatpush1.xpose.msra.mxu0 0.0
    %1560 = vmatprep.subr.mxu0 0.0
    %1561 = vmatpush1.xpose.msra.mxu0 0.0
    %1562 = vmatprep.subr.mxu0 0.0
    %1563 = vmatpush1.xpose.msra.mxu0 0.0
    %1564 = vmatprep.subr.mxu0 0.0
    %1565 = vmatpush1.xpose.msra.mxu0 0.0
    %1566 = vmatprep.subr.mxu0 0.0
    %1567 = vmatpush1.xpose.msra.mxu0 0.0
    %1568 = vmatprep.subr.mxu0 0.0
    %1569 = vmatpush1.xpose.msra.mxu0 0.0
    %1570 = vmatprep.subr.mxu0 0.0
    %1571 = vmatpush1.xpose.msra.mxu0 0.0
    %1572 = vmatprep.subr.mxu0 0.0
    %1573 = vmatpush1.xpose.msra.mxu0 0.0
    %1574 = vmatprep.subr.mxu0 0.0
    %1575 = vmatpush1.xpose.msra.mxu0 0.0
    %1576 = vmatprep.subr.mxu0 0.0
    %1577 = vmatpush1.xpose.msra.mxu0 0.0
    %1578 = vmatprep.subr.mxu0 0.0
    %1579 = vmatpush1.xpose.msra.mxu0 0.0
    %1580 = vmatprep.subr.mxu0 0.0
    %1581 = vmatpush1.xpose.msra.mxu0 0.0
    %1582 = vmatprep.subr.mxu0 0.0
    %1583 = vmatpush1.xpose.msra.mxu0 0.0
    %1584 = vmatprep.subr.mxu0 0.0
    %1585 = vmatpush1.xpose.msra.mxu0 0.0
    %1586 = vmatprep.subr.mxu0 0.0
    %1587 = vmatpush1.xpose.msra.mxu0 0.0
    %1588 = vmatprep.subr.mxu0 0.0
    %1589 = vmatpush1.xpose.msra.mxu0 0.0
    %1590 = vmatprep.subr.mxu0 0.0
    %1591 = vmatpush1.xpose.msra.mxu0 0.0
    %1592 = vmatprep.subr.mxu0 0.0
    %1593 = vmatpush1.xpose.msra.mxu0 0.0
    %1594 = vmatprep.subr.mxu0 0.0
    %1595 = vmatpush1.xpose.msra.mxu0 0.0
    %1596 = vmatprep.mubr.f32.mxu0 0.0
    %1597 = vmatmul.mubr.f32.gmra.mrb[0].mxu0 %v1527
    %v1598 = vpop.f32.mrb[0].mxu0
    %v1599 = vadd.f32 0.0, %v1598
    %v1600 = vpop.f32.mrb[0].mxu0
    %1601 = vdwg.mxu0
    %v1603 = vsel %vm1069, %v1068, 0
    %v1606 = vsel %vm1069, %v758, 0
    %1608 = vmatprep.subr.mxu0 0.0
    %1609 = vmatpush1.xpose.msra.mxu0 %v1606
    %1610 = vmatprep.subr.mxu0 0.0
    %1611 = vmatpush1.xpose.msra.mxu0 0.0
    %1612 = vmatprep.subr.mxu0 0.0
    %1613 = vmatpush1.xpose.msra.mxu0 0.0
    %1614 = vmatprep.subr.mxu0 0.0
    %1615 = vmatpush1.xpose.msra.mxu0 0.0
    %1616 = vmatprep.subr.mxu0 0.0
    %1617 = vmatpush1.xpose.msra.mxu0 0.0
    %1618 = vmatprep.subr.mxu0 0.0
    %1619 = vmatpush1.xpose.msra.mxu0 0.0
    %1620 = vmatprep.subr.mxu0 0.0
    %1621 = vmatpush1.xpose.msra.mxu0 0.0
    %1622 = vmatprep.subr.mxu0 0.0
    %1623 = vmatpush1.xpose.msra.mxu0 0.0
    %1624 = vmatprep.subr.mxu0 0.0
    %1625 = vmatpush1.xpose.msra.mxu0 0.0
    %1626 = vmatprep.subr.mxu0 0.0
    %1627 = vmatpush1.xpose.msra.mxu0 0.0
    %1628 = vmatprep.subr.mxu0 0.0
    %1629 = vmatpush1.xpose.msra.mxu0 0.0
    %1630 = vmatprep.subr.mxu0 0.0
    %1631 = vmatpush1.xpose.msra.mxu0 0.0
    %1632 = vmatprep.subr.mxu0 0.0
    %1633 = vmatpush1.xpose.msra.mxu0 0.0
    %1634 = vmatprep.subr.mxu0 0.0
    %1635 = vmatpush1.xpose.msra.mxu0 0.0
    %1636 = vmatprep.subr.mxu0 0.0
    %1637 = vmatpush1.xpose.msra.mxu0 0.0
    %1638 = vmatprep.subr.mxu0 0.0
    %1639 = vmatpush1.xpose.msra.mxu0 0.0
    %1640 = vmatprep.subr.mxu0 0.0
    %1641 = vmatpush1.xpose.msra.mxu0 0.0
    %1642 = vmatprep.subr.mxu0 0.0
    %1643 = vmatpush1.xpose.msra.mxu0 0.0
    %1644 = vmatprep.subr.mxu0 0.0
    %1645 = vmatpush1.xpose.msra.mxu0 0.0
    %1646 = vmatprep.subr.mxu0 0.0
    %1647 = vmatpush1.xpose.msra.mxu0 0.0
    %1648 = vmatprep.subr.mxu0 0.0
    %1649 = vmatpush1.xpose.msra.mxu0 0.0
    %1650 = vmatprep.subr.mxu0 0.0
    %1651 = vmatpush1.xpose.msra.mxu0 0.0
    %1652 = vmatprep.subr.mxu0 0.0
    %1653 = vmatpush1.xpose.msra.mxu0 0.0
    %1654 = vmatprep.subr.mxu0 0.0
    %1655 = vmatpush1.xpose.msra.mxu0 0.0
    %1656 = vmatprep.subr.mxu0 0.0
    %1657 = vmatpush1.xpose.msra.mxu0 0.0
    %1658 = vmatprep.subr.mxu0 0.0
    %1659 = vmatpush1.xpose.msra.mxu0 0.0
    %1660 = vmatprep.subr.mxu0 0.0
    %1661 = vmatpush1.xpose.msra.mxu0 0.0
    %1662 = vmatprep.subr.mxu0 0.0
    %1663 = vmatpush1.xpose.msra.mxu0 0.0
    %1664 = vmatprep.subr.mxu0 0.0
    %1665 = vmatpush1.xpose.msra.mxu0 0.0
    %1666 = vmatprep.subr.mxu0 0.0
    %1667 = vmatpush1.xpose.msra.mxu0 0.0
    %1668 = vmatprep.subr.mxu0 0.0
    %1669 = vmatpush1.xpose.msra.mxu0 0.0
    %1670 = vmatprep.subr.mxu0 0.0
    %1671 = vmatpush1.xpose.msra.mxu0 0.0
    %1672 = vmatprep.mubr.f32.mxu0 0.0
    %1673 = vmatmul.mubr.f32.gmra.mrb[0].mxu0 %v1603
    %v1674 = vpop.f32.mrb[0].mxu0
    %v1675 = vadd.f32 0.0, %v1674
    %v1676 = vpop.f32.mrb[0].mxu0
    %1677 = vdwg.mxu0
    %vm1678 = vcmp.eq.f32.partialorder %v44, 0.0
    %vm1679 = vcmp.eq.f32.partialorder %v45, 0.0
    %v1680 = vsel %vm1678, -1e+09, %v1143
    %v1681 = vsel %vm1679, -1e+09, %v1219
    %v1682 = vsel %vm1678, -1e+09, %v1295
    %v1683 = vsel %vm1679, -1e+09, %v1371
    %v1684 = vsel %vm1678, -1e+09, %v1447
    %v1685 = vsel %vm1679, -1e+09, %v1523
    %v1686 = vsel %vm1678, -1e+09, %v1599
    %v1687 = vsel %vm1679, -1e+09, %v1675
    %v1688 = vsel %vm1069, %v1680, -inf
    %1689 = vmax.xlane.f32.xlu0 %v1688
    %v1690 = vpop.xlane.xlu0 %1689
    %v1691 = vsel %vm1069, %v1681, -inf
    %1692 = vmax.xlane.f32.xlu0 %v1691
    %v1693 = vpop.xlane.xlu0 %1692
    %v1694 = vsel %vm1069, %v1682, -inf
    %1695 = vmax.xlane.f32.xlu0 %v1694
    %v1696 = vpop.xlane.xlu0 %1695
    %v1697 = vsel %vm1069, %v1683, -inf
    %1698 = vmax.xlane.f32.xlu0 %v1697
    %v1699 = vpop.xlane.xlu0 %1698
    %v1700 = vsel %vm1069, %v1684, -inf
    %1701 = vmax.xlane.f32.xlu0 %v1700
    %v1702 = vpop.xlane.xlu0 %1701
    %v1703 = vsel %vm1069, %v1685, -inf
    %1704 = vmax.xlane.f32.xlu0 %v1703
    %v1705 = vpop.xlane.xlu0 %1704
    %v1706 = vsel %vm1069, %v1686, -inf
    %1707 = vmax.xlane.f32.xlu0 %v1706
    %v1708 = vpop.xlane.xlu0 %1707
    %v1709 = vsel %vm1069, %v1687, -inf
    %1710 = vmax.xlane.f32.xlu0 %v1709
    %v1711 = vpop.xlane.xlu0 %1710
    %v1712 = vsub.f32 %v1680, %v1690
    %v1713 = vsub.f32 %v1681, %v1693
    %v1714 = vsub.f32 %v1682, %v1696
    %v1715 = vsub.f32 %v1683, %v1699
    %v1716 = vsub.f32 %v1684, %v1702
    %v1717 = vsub.f32 %v1685, %v1705
    %v1718 = vsub.f32 %v1686, %v1708
    %v1719 = vsub.f32 %v1687, %v1711
    %v1720 = vmul.f32 %v1712, 1.442695
    %v1721 = vpow.pop %v1720
    %v1722 = vmul.f32 %v1713, 1.442695
    %v1723 = vpow.pop %v1722
    %v1724 = vmul.f32 %v1714, 1.442695
    %v1725 = vpow.pop %v1724
    %v1726 = vmul.f32 %v1715, 1.442695
    %v1727 = vpow.pop %v1726
    %v1728 = vmul.f32 %v1716, 1.442695
    %v1729 = vpow.pop %v1728
    %v1730 = vmul.f32 %v1717, 1.442695
    %v1731 = vpow.pop %v1730
    %v1732 = vmul.f32 %v1718, 1.442695
    %v1733 = vpow.pop %v1732
    %v1734 = vmul.f32 %v1719, 1.442695
    %v1735 = vpow.pop %v1734
    %v1736 = vsel %vm1069, %v1721, 0.0
    %1737 = vadd.xlane.f32.xlu0 %v1736
    %v1738 = vpop.xlane.xlu0 %1737
    %v1739 = vsel %vm1069, %v1723, 0.0
    %1740 = vadd.xlane.f32.xlu0 %v1739
    %v1741 = vpop.xlane.xlu0 %1740
    %v1742 = vsel %vm1069, %v1725, 0.0
    %1743 = vadd.xlane.f32.xlu0 %v1742
    %v1744 = vpop.xlane.xlu0 %1743
    %v1745 = vsel %vm1069, %v1727, 0.0
    %1746 = vadd.xlane.f32.xlu0 %v1745
    %v1747 = vpop.xlane.xlu0 %1746
    %v1748 = vsel %vm1069, %v1729, 0.0
    %1749 = vadd.xlane.f32.xlu0 %v1748
    %v1750 = vpop.xlane.xlu0 %1749
    %v1751 = vsel %vm1069, %v1731, 0.0
    %1752 = vadd.xlane.f32.xlu0 %v1751
    %v1753 = vpop.xlane.xlu0 %1752
    %v1754 = vsel %vm1069, %v1733, 0.0
    %1755 = vadd.xlane.f32.xlu0 %v1754
    %v1756 = vpop.xlane.xlu0 %1755
    %v1757 = vsel %vm1069, %v1735, 0.0
    %1758 = vadd.xlane.f32.xlu0 %v1757
    %v1759 = vpop.xlane.xlu0 %1758
    %v1760 = vrcp.pop %v1738
    %v1761 = vrcp.pop %v1741
    %v1762 = vrcp.pop %v1744
    %v1763 = vrcp.pop %v1747
    %v1764 = vrcp.pop %v1750
    %v1765 = vrcp.pop %v1753
    %v1766 = vrcp.pop %v1756
    %v1767 = vrcp.pop %v1759
    %v1768 = vmul.f32 %v1721, %v1760
    %v1769 = vmul.f32 %v1723, %v1761
    %v1770 = vmul.f32 %v1725, %v1762
    %v1771 = vmul.f32 %v1727, %v1763
    %v1772 = vmul.f32 %v1729, %v1764
    %v1773 = vmul.f32 %v1731, %v1765
    %v1774 = vmul.f32 %v1733, %v1766
    %v1775 = vmul.f32 %v1735, %v1767
    %v1777 = vsel %vm1069, %v1768, 0
    %1779 = vmatprep.subr.mxu0 0.0
    %1780 = vmatpush1.msra.mxu0 %v828
    %1781 = vmatprep.subr.mxu0 0.0
    %1782 = vmatpush1.msra.mxu0 0.0
    %1783 = vmatprep.subr.mxu0 0.0
    %1784 = vmatpush1.msra.mxu0 0.0
    %1785 = vmatprep.subr.mxu0 0.0
    %1786 = vmatpush1.msra.mxu0 0.0
    %1787 = vmatprep.subr.mxu0 0.0
    %1788 = vmatpush1.msra.mxu0 0.0
    %1789 = vmatprep.subr.mxu0 0.0
    %1790 = vmatpush1.msra.mxu0 0.0
    %1791 = vmatprep.subr.mxu0 0.0
    %1792 = vmatpush1.msra.mxu0 0.0
    %1793 = vmatprep.subr.mxu0 0.0
    %1794 = vmatpush1.msra.mxu0 0.0
    %1795 = vmatprep.subr.mxu0 0.0
    %1796 = vmatpush1.msra.mxu0 0.0
    %1797 = vmatprep.subr.mxu0 0.0
    %1798 = vmatpush1.msra.mxu0 0.0
    %1799 = vmatprep.subr.mxu0 0.0
    %1800 = vmatpush1.msra.mxu0 0.0
    %1801 = vmatprep.subr.mxu0 0.0
    %1802 = vmatpush1.msra.mxu0 0.0
    %1803 = vmatprep.subr.mxu0 0.0
    %1804 = vmatpush1.msra.mxu0 0.0
    %1805 = vmatprep.subr.mxu0 0.0
    %1806 = vmatpush1.msra.mxu0 0.0
    %1807 = vmatprep.subr.mxu0 0.0
    %1808 = vmatpush1.msra.mxu0 0.0
    %1809 = vmatprep.subr.mxu0 0.0
    %1810 = vmatpush1.msra.mxu0 0.0
    %1811 = vmatprep.subr.mxu0 0.0
    %1812 = vmatpush1.msra.mxu0 0.0
    %1813 = vmatprep.subr.mxu0 0.0
    %1814 = vmatpush1.msra.mxu0 0.0
    %1815 = vmatprep.subr.mxu0 0.0
    %1816 = vmatpush1.msra.mxu0 0.0
    %1817 = vmatprep.subr.mxu0 0.0
    %1818 = vmatpush1.msra.mxu0 0.0
    %1819 = vmatprep.subr.mxu0 0.0
    %1820 = vmatpush1.msra.mxu0 0.0
    %1821 = vmatprep.subr.mxu0 0.0
    %1822 = vmatpush1.msra.mxu0 0.0
    %1823 = vmatprep.subr.mxu0 0.0
    %1824 = vmatpush1.msra.mxu0 0.0
    %1825 = vmatprep.subr.mxu0 0.0
    %1826 = vmatpush1.msra.mxu0 0.0
    %1827 = vmatprep.subr.mxu0 0.0
    %1828 = vmatpush1.msra.mxu0 0.0
    %1829 = vmatprep.subr.mxu0 0.0
    %1830 = vmatpush1.msra.mxu0 0.0
    %1831 = vmatprep.subr.mxu0 0.0
    %1832 = vmatpush1.msra.mxu0 0.0
    %1833 = vmatprep.subr.mxu0 0.0
    %1834 = vmatpush1.msra.mxu0 0.0
    %1835 = vmatprep.subr.mxu0 0.0
    %1836 = vmatpush1.msra.mxu0 0.0
    %1837 = vmatprep.subr.mxu0 0.0
    %1838 = vmatpush1.msra.mxu0 0.0
    %1839 = vmatprep.subr.mxu0 0.0
    %1840 = vmatpush1.msra.mxu0 0.0
    %1841 = vmatprep.subr.mxu0 0.0
    %1842 = vmatpush1.msra.mxu0 0.0
    %1843 = vmatprep.mubr.f32.mxu0 0.0
    %1844 = vmatmul.mubr.f32.gmra.mrb[0].mxu0 %v1777
    %v1845 = vpop.f32.mrb[0].mxu0
    %v1846 = vadd.f32 0.0, %v1845
    %v1847 = vpop.f32.mrb[0].mxu0
    %1848 = vdwg.mxu0
    %v1850 = vsel %vm1069, %v1769, 0
    %1852 = vmatprep.subr.mxu0 0.0
    %1853 = vmatpush1.msra.mxu0 %v833
    %1854 = vmatprep.subr.mxu0 0.0
    %1855 = vmatpush1.msra.mxu0 0.0
    %1856 = vmatprep.subr.mxu0 0.0
    %1857 = vmatpush1.msra.mxu0 0.0
    %1858 = vmatprep.subr.mxu0 0.0
    %1859 = vmatpush1.msra.mxu0 0.0
    %1860 = vmatprep.subr.mxu0 0.0
    %1861 = vmatpush1.msra.mxu0 0.0
    %1862 = vmatprep.subr.mxu0 0.0
    %1863 = vmatpush1.msra.mxu0 0.0
    %1864 = vmatprep.subr.mxu0 0.0
    %1865 = vmatpush1.msra.mxu0 0.0
    %1866 = vmatprep.subr.mxu0 0.0
    %1867 = vmatpush1.msra.mxu0 0.0
    %1868 = vmatprep.subr.mxu0 0.0
    %1869 = vmatpush1.msra.mxu0 0.0
    %1870 = vmatprep.subr.mxu0 0.0
    %1871 = vmatpush1.msra.mxu0 0.0
    %1872 = vmatprep.subr.mxu0 0.0
    %1873 = vmatpush1.msra.mxu0 0.0
    %1874 = vmatprep.subr.mxu0 0.0
    %1875 = vmatpush1.msra.mxu0 0.0
    %1876 = vmatprep.subr.mxu0 0.0
    %1877 = vmatpush1.msra.mxu0 0.0
    %1878 = vmatprep.subr.mxu0 0.0
    %1879 = vmatpush1.msra.mxu0 0.0
    %1880 = vmatprep.subr.mxu0 0.0
    %1881 = vmatpush1.msra.mxu0 0.0
    %1882 = vmatprep.subr.mxu0 0.0
    %1883 = vmatpush1.msra.mxu0 0.0
    %1884 = vmatprep.subr.mxu0 0.0
    %1885 = vmatpush1.msra.mxu0 0.0
    %1886 = vmatprep.subr.mxu0 0.0
    %1887 = vmatpush1.msra.mxu0 0.0
    %1888 = vmatprep.subr.mxu0 0.0
    %1889 = vmatpush1.msra.mxu0 0.0
    %1890 = vmatprep.subr.mxu0 0.0
    %1891 = vmatpush1.msra.mxu0 0.0
    %1892 = vmatprep.subr.mxu0 0.0
    %1893 = vmatpush1.msra.mxu0 0.0
    %1894 = vmatprep.subr.mxu0 0.0
    %1895 = vmatpush1.msra.mxu0 0.0
    %1896 = vmatprep.subr.mxu0 0.0
    %1897 = vmatpush1.msra.mxu0 0.0
    %1898 = vmatprep.subr.mxu0 0.0
    %1899 = vmatpush1.msra.mxu0 0.0
    %1900 = vmatprep.subr.mxu0 0.0
    %1901 = vmatpush1.msra.mxu0 0.0
    %1902 = vmatprep.subr.mxu0 0.0
    %1903 = vmatpush1.msra.mxu0 0.0
    %1904 = vmatprep.subr.mxu0 0.0
    %1905 = vmatpush1.msra.mxu0 0.0
    %1906 = vmatprep.subr.mxu0 0.0
    %1907 = vmatpush1.msra.mxu0 0.0
    %1908 = vmatprep.subr.mxu0 0.0
    %1909 = vmatpush1.msra.mxu0 0.0
    %1910 = vmatprep.subr.mxu0 0.0
    %1911 = vmatpush1.msra.mxu0 0.0
    %1912 = vmatprep.subr.mxu0 0.0
    %1913 = vmatpush1.msra.mxu0 0.0
    %1914 = vmatprep.subr.mxu0 0.0
    %1915 = vmatpush1.msra.mxu0 0.0
    %1916 = vmatprep.mubr.f32.mxu0 0.0
    %1917 = vmatmul.mubr.f32.gmra.mrb[0].mxu0 %v1850
    %v1918 = vpop.f32.mrb[0].mxu0
    %v1919 = vadd.f32 0.0, %v1918
    %v1920 = vpop.f32.mrb[0].mxu0
    %1921 = vdwg.mxu0
    %v1923 = vsel %vm1069, %v1770, 0
    %1925 = vmatprep.subr.mxu0 0.0
    %1926 = vmatpush1.msra.mxu0 %v903
    %1927 = vmatprep.subr.mxu0 0.0
    %1928 = vmatpush1.msra.mxu0 0.0
    %1929 = vmatprep.subr.mxu0 0.0
    %1930 = vmatpush1.msra.mxu0 0.0
    %1931 = vmatprep.subr.mxu0 0.0
    %1932 = vmatpush1.msra.mxu0 0.0
    %1933 = vmatprep.subr.mxu0 0.0
    %1934 = vmatpush1.msra.mxu0 0.0
    %1935 = vmatprep.subr.mxu0 0.0
    %1936 = vmatpush1.msra.mxu0 0.0
    %1937 = vmatprep.subr.mxu0 0.0
    %1938 = vmatpush1.msra.mxu0 0.0
    %1939 = vmatprep.subr.mxu0 0.0
    %1940 = vmatpush1.msra.mxu0 0.0
    %1941 = vmatprep.subr.mxu0 0.0
    %1942 = vmatpush1.msra.mxu0 0.0
    %1943 = vmatprep.subr.mxu0 0.0
    %1944 = vmatpush1.msra.mxu0 0.0
    %1945 = vmatprep.subr.mxu0 0.0
    %1946 = vmatpush1.msra.mxu0 0.0
    %1947 = vmatprep.subr.mxu0 0.0
    %1948 = vmatpush1.msra.mxu0 0.0
    %1949 = vmatprep.subr.mxu0 0.0
    %1950 = vmatpush1.msra.mxu0 0.0
    %1951 = vmatprep.subr.mxu0 0.0
    %1952 = vmatpush1.msra.mxu0 0.0
    %1953 = vmatprep.subr.mxu0 0.0
    %1954 = vmatpush1.msra.mxu0 0.0
    %1955 = vmatprep.subr.mxu0 0.0
    %1956 = vmatpush1.msra.mxu0 0.0
    %1957 = vmatprep.subr.mxu0 0.0
    %1958 = vmatpush1.msra.mxu0 0.0
    %1959 = vmatprep.subr.mxu0 0.0
    %1960 = vmatpush1.msra.mxu0 0.0
    %1961 = vmatprep.subr.mxu0 0.0
    %1962 = vmatpush1.msra.mxu0 0.0
    %1963 = vmatprep.subr.mxu0 0.0
    %1964 = vmatpush1.msra.mxu0 0.0
    %1965 = vmatprep.subr.mxu0 0.0
    %1966 = vmatpush1.msra.mxu0 0.0
    %1967 = vmatprep.subr.mxu0 0.0
    %1968 = vmatpush1.msra.mxu0 0.0
    %1969 = vmatprep.subr.mxu0 0.0
    %1970 = vmatpush1.msra.mxu0 0.0
    %1971 = vmatprep.subr.mxu0 0.0
    %1972 = vmatpush1.msra.mxu0 0.0
    %1973 = vmatprep.subr.mxu0 0.0
    %1974 = vmatpush1.msra.mxu0 0.0
    %1975 = vmatprep.subr.mxu0 0.0
    %1976 = vmatpush1.msra.mxu0 0.0
    %1977 = vmatprep.subr.mxu0 0.0
    %1978 = vmatpush1.msra.mxu0 0.0
    %1979 = vmatprep.subr.mxu0 0.0
    %1980 = vmatpush1.msra.mxu0 0.0
    %1981 = vmatprep.subr.mxu0 0.0
    %1982 = vmatpush1.msra.mxu0 0.0
    %1983 = vmatprep.subr.mxu0 0.0
    %1984 = vmatpush1.msra.mxu0 0.0
    %1985 = vmatprep.subr.mxu0 0.0
    %1986 = vmatpush1.msra.mxu0 0.0
    %1987 = vmatprep.subr.mxu0 0.0
    %1988 = vmatpush1.msra.mxu0 0.0
    %1989 = vmatprep.mubr.f32.mxu0 0.0
    %1990 = vmatmul.mubr.f32.gmra.mrb[0].mxu0 %v1923
    %v1991 = vpop.f32.mrb[0].mxu0
    %v1992 = vadd.f32 0.0, %v1991
    %v1993 = vpop.f32.mrb[0].mxu0
    %1994 = vdwg.mxu0
    %v1996 = vsel %vm1069, %v1771, 0
    %1998 = vmatprep.subr.mxu0 0.0
    %1999 = vmatpush1.msra.mxu0 %v908
    %2000 = vmatprep.subr.mxu0 0.0
    %2001 = vmatpush1.msra.mxu0 0.0
    %2002 = vmatprep.subr.mxu0 0.0
    %2003 = vmatpush1.msra.mxu0 0.0
    %2004 = vmatprep.subr.mxu0 0.0
    %2005 = vmatpush1.msra.mxu0 0.0
    %2006 = vmatprep.subr.mxu0 0.0
    %2007 = vmatpush1.msra.mxu0 0.0
    %2008 = vmatprep.subr.mxu0 0.0
    %2009 = vmatpush1.msra.mxu0 0.0
    %2010 = vmatprep.subr.mxu0 0.0
    %2011 = vmatpush1.msra.mxu0 0.0
    %2012 = vmatprep.subr.mxu0 0.0
    %2013 = vmatpush1.msra.mxu0 0.0
    %2014 = vmatprep.subr.mxu0 0.0
    %2015 = vmatpush1.msra.mxu0 0.0
    %2016 = vmatprep.subr.mxu0 0.0
    %2017 = vmatpush1.msra.mxu0 0.0
    %2018 = vmatprep.subr.mxu0 0.0
    %2019 = vmatpush1.msra.mxu0 0.0
    %2020 = vmatprep.subr.mxu0 0.0
    %2021 = vmatpush1.msra.mxu0 0.0
    %2022 = vmatprep.subr.mxu0 0.0
    %2023 = vmatpush1.msra.mxu0 0.0
    %2024 = vmatprep.subr.mxu0 0.0
    %2025 = vmatpush1.msra.mxu0 0.0
    %2026 = vmatprep.subr.mxu0 0.0
    %2027 = vmatpush1.msra.mxu0 0.0
    %2028 = vmatprep.subr.mxu0 0.0
    %2029 = vmatpush1.msra.mxu0 0.0
    %2030 = vmatprep.subr.mxu0 0.0
    %2031 = vmatpush1.msra.mxu0 0.0
    %2032 = vmatprep.subr.mxu0 0.0
    %2033 = vmatpush1.msra.mxu0 0.0
    %2034 = vmatprep.subr.mxu0 0.0
    %2035 = vmatpush1.msra.mxu0 0.0
    %2036 = vmatprep.subr.mxu0 0.0
    %2037 = vmatpush1.msra.mxu0 0.0
    %2038 = vmatprep.subr.mxu0 0.0
    %2039 = vmatpush1.msra.mxu0 0.0
    %2040 = vmatprep.subr.mxu0 0.0
    %2041 = vmatpush1.msra.mxu0 0.0
    %2042 = vmatprep.subr.mxu0 0.0
    %2043 = vmatpush1.msra.mxu0 0.0
    %2044 = vmatprep.subr.mxu0 0.0
    %2045 = vmatpush1.msra.mxu0 0.0
    %2046 = vmatprep.subr.mxu0 0.0
    %2047 = vmatpush1.msra.mxu0 0.0
    %2048 = vmatprep.subr.mxu0 0.0
    %2049 = vmatpush1.msra.mxu0 0.0
    %2050 = vmatprep.subr.mxu0 0.0
    %2051 = vmatpush1.msra.mxu0 0.0
    %2052 = vmatprep.subr.mxu0 0.0
    %2053 = vmatpush1.msra.mxu0 0.0
    %2054 = vmatprep.subr.mxu0 0.0
    %2055 = vmatpush1.msra.mxu0 0.0
    %2056 = vmatprep.subr.mxu0 0.0
    %2057 = vmatpush1.msra.mxu0 0.0
    %2058 = vmatprep.subr.mxu0 0.0
    %2059 = vmatpush1.msra.mxu0 0.0
    %2060 = vmatprep.subr.mxu0 0.0
    %2061 = vmatpush1.msra.mxu0 0.0
    %2062 = vmatprep.mubr.f32.mxu0 0.0
    %2063 = vmatmul.mubr.f32.gmra.mrb[0].mxu0 %v1996
    %v2064 = vpop.f32.mrb[0].mxu0
    %v2065 = vadd.f32 0.0, %v2064
    %v2066 = vpop.f32.mrb[0].mxu0
    %2067 = vdwg.mxu0
    %v2069 = vsel %vm1069, %v1772, 0
    %2071 = vmatprep.subr.mxu0 0.0
    %2072 = vmatpush1.msra.mxu0 %v978
    %2073 = vmatprep.subr.mxu0 0.0
    %2074 = vmatpush1.msra.mxu0 0.0
    %2075 = vmatprep.subr.mxu0 0.0
    %2076 = vmatpush1.msra.mxu0 0.0
    %2077 = vmatprep.subr.mxu0 0.0
    %2078 = vmatpush1.msra.mxu0 0.0
    %2079 = vmatprep.subr.mxu0 0.0
    %2080 = vmatpush1.msra.mxu0 0.0
    %2081 = vmatprep.subr.mxu0 0.0
    %2082 = vmatpush1.msra.mxu0 0.0
    %2083 = vmatprep.subr.mxu0 0.0
    %2084 = vmatpush1.msra.mxu0 0.0
    %2085 = vmatprep.subr.mxu0 0.0
    %2086 = vmatpush1.msra.mxu0 0.0
    %2087 = vmatprep.subr.mxu0 0.0
    %2088 = vmatpush1.msra.mxu0 0.0
    %2089 = vmatprep.subr.mxu0 0.0
    %2090 = vmatpush1.msra.mxu0 0.0
    %2091 = vmatprep.subr.mxu0 0.0
    %2092 = vmatpush1.msra.mxu0 0.0
    %2093 = vmatprep.subr.mxu0 0.0
    %2094 = vmatpush1.msra.mxu0 0.0
    %2095 = vmatprep.subr.mxu0 0.0
    %2096 = vmatpush1.msra.mxu0 0.0
    %2097 = vmatprep.subr.mxu0 0.0
    %2098 = vmatpush1.msra.mxu0 0.0
    %2099 = vmatprep.subr.mxu0 0.0
    %2100 = vmatpush1.msra.mxu0 0.0
    %2101 = vmatprep.subr.mxu0 0.0
    %2102 = vmatpush1.msra.mxu0 0.0
    %2103 = vmatprep.subr.mxu0 0.0
    %2104 = vmatpush1.msra.mxu0 0.0
    %2105 = vmatprep.subr.mxu0 0.0
    %2106 = vmatpush1.msra.mxu0 0.0
    %2107 = vmatprep.subr.mxu0 0.0
    %2108 = vmatpush1.msra.mxu0 0.0
    %2109 = vmatprep.subr.mxu0 0.0
    %2110 = vmatpush1.msra.mxu0 0.0
    %2111 = vmatprep.subr.mxu0 0.0
    %2112 = vmatpush1.msra.mxu0 0.0
    %2113 = vmatprep.subr.mxu0 0.0
    %2114 = vmatpush1.msra.mxu0 0.0
    %2115 = vmatprep.subr.mxu0 0.0
    %2116 = vmatpush1.msra.mxu0 0.0
    %2117 = vmatprep.subr.mxu0 0.0
    %2118 = vmatpush1.msra.mxu0 0.0
    %2119 = vmatprep.subr.mxu0 0.0
    %2120 = vmatpush1.msra.mxu0 0.0
    %2121 = vmatprep.subr.mxu0 0.0
    %2122 = vmatpush1.msra.mxu0 0.0
    %2123 = vmatprep.subr.mxu0 0.0
    %2124 = vmatpush1.msra.mxu0 0.0
    %2125 = vmatprep.subr.mxu0 0.0
    %2126 = vmatpush1.msra.mxu0 0.0
    %2127 = vmatprep.subr.mxu0 0.0
    %2128 = vmatpush1.msra.mxu0 0.0
    %2129 = vmatprep.subr.mxu0 0.0
    %2130 = vmatpush1.msra.mxu0 0.0
    %2131 = vmatprep.subr.mxu0 0.0
    %2132 = vmatpush1.msra.mxu0 0.0
    %2133 = vmatprep.subr.mxu0 0.0
    %2134 = vmatpush1.msra.mxu0 0.0
    %2135 = vmatprep.mubr.f32.mxu0 0.0
    %2136 = vmatmul.mubr.f32.gmra.mrb[0].mxu0 %v2069
    %v2137 = vpop.f32.mrb[0].mxu0
    %v2138 = vadd.f32 0.0, %v2137
    %v2139 = vpop.f32.mrb[0].mxu0
    %2140 = vdwg.mxu0
    %v2142 = vsel %vm1069, %v1773, 0
    %2144 = vmatprep.subr.mxu0 0.0
    %2145 = vmatpush1.msra.mxu0 %v983
    %2146 = vmatprep.subr.mxu0 0.0
    %2147 = vmatpush1.msra.mxu0 0.0
    %2148 = vmatprep.subr.mxu0 0.0
    %2149 = vmatpush1.msra.mxu0 0.0
    %2150 = vmatprep.subr.mxu0 0.0
    %2151 = vmatpush1.msra.mxu0 0.0
    %2152 = vmatprep.subr.mxu0 0.0
    %2153 = vmatpush1.msra.mxu0 0.0
    %2154 = vmatprep.subr.mxu0 0.0
    %2155 = vmatpush1.msra.mxu0 0.0
    %2156 = vmatprep.subr.mxu0 0.0
    %2157 = vmatpush1.msra.mxu0 0.0
    %2158 = vmatprep.subr.mxu0 0.0
    %2159 = vmatpush1.msra.mxu0 0.0
    %2160 = vmatprep.subr.mxu0 0.0
    %2161 = vmatpush1.msra.mxu0 0.0
    %2162 = vmatprep.subr.mxu0 0.0
    %2163 = vmatpush1.msra.mxu0 0.0
    %2164 = vmatprep.subr.mxu0 0.0
    %2165 = vmatpush1.msra.mxu0 0.0
    %2166 = vmatprep.subr.mxu0 0.0
    %2167 = vmatpush1.msra.mxu0 0.0
    %2168 = vmatprep.subr.mxu0 0.0
    %2169 = vmatpush1.msra.mxu0 0.0
    %2170 = vmatprep.subr.mxu0 0.0
    %2171 = vmatpush1.msra.mxu0 0.0
    %2172 = vmatprep.subr.mxu0 0.0
    %2173 = vmatpush1.msra.mxu0 0.0
    %2174 = vmatprep.subr.mxu0 0.0
    %2175 = vmatpush1.msra.mxu0 0.0
    %2176 = vmatprep.subr.mxu0 0.0
    %2177 = vmatpush1.msra.mxu0 0.0
    %2178 = vmatprep.subr.mxu0 0.0
    %2179 = vmatpush1.msra.mxu0 0.0
    %2180 = vmatprep.subr.mxu0 0.0
    %2181 = vmatpush1.msra.mxu0 0.0
    %2182 = vmatprep.subr.mxu0 0.0
    %2183 = vmatpush1.msra.mxu0 0.0
    %2184 = vmatprep.subr.mxu0 0.0
    %2185 = vmatpush1.msra.mxu0 0.0
    %2186 = vmatprep.subr.mxu0 0.0
    %2187 = vmatpush1.msra.mxu0 0.0
    %2188 = vmatprep.subr.mxu0 0.0
    %2189 = vmatpush1.msra.mxu0 0.0
    %2190 = vmatprep.subr.mxu0 0.0
    %2191 = vmatpush1.msra.mxu0 0.0
    %2192 = vmatprep.subr.mxu0 0.0
    %2193 = vmatpush1.msra.mxu0 0.0
    %2194 = vmatprep.subr.mxu0 0.0
    %2195 = vmatpush1.msra.mxu0 0.0
    %2196 = vmatprep.subr.mxu0 0.0
    %2197 = vmatpush1.msra.mxu0 0.0
    %2198 = vmatprep.subr.mxu0 0.0
    %2199 = vmatpush1.msra.mxu0 0.0
    %2200 = vmatprep.subr.mxu0 0.0
    %2201 = vmatpush1.msra.mxu0 0.0
    %2202 = vmatprep.subr.mxu0 0.0
    %2203 = vmatpush1.msra.mxu0 0.0
    %2204 = vmatprep.subr.mxu0 0.0
    %2205 = vmatpush1.msra.mxu0 0.0
    %2206 = vmatprep.subr.mxu0 0.0
    %2207 = vmatpush1.msra.mxu0 0.0
    %2208 = vmatprep.mubr.f32.mxu0 0.0
    %2209 = vmatmul.mubr.f32.gmra.mrb[0].mxu0 %v2142
    %v2210 = vpop.f32.mrb[0].mxu0
    %v2211 = vadd.f32 0.0, %v2210
    %v2212 = vpop.f32.mrb[0].mxu0
    %2213 = vdwg.mxu0
    %v2215 = vsel %vm1069, %v1774, 0
    %2217 = vmatprep.subr.mxu0 0.0
    %2218 = vmatpush1.msra.mxu0 %v1053
    %2219 = vmatprep.subr.mxu0 0.0
    %2220 = vmatpush1.msra.mxu0 0.0
    %2221 = vmatprep.subr.mxu0 0.0
    %2222 = vmatpush1.msra.mxu0 0.0
    %2223 = vmatprep.subr.mxu0 0.0
    %2224 = vmatpush1.msra.mxu0 0.0
    %2225 = vmatprep.subr.mxu0 0.0
    %2226 = vmatpush1.msra.mxu0 0.0
    %2227 = vmatprep.subr.mxu0 0.0
    %2228 = vmatpush1.msra.mxu0 0.0
    %2229 = vmatprep.subr.mxu0 0.0
    %2230 = vmatpush1.msra.mxu0 0.0
    %2231 = vmatprep.subr.mxu0 0.0
    %2232 = vmatpush1.msra.mxu0 0.0
    %2233 = vmatprep.subr.mxu0 0.0
    %2234 = vmatpush1.msra.mxu0 0.0
    %2235 = vmatprep.subr.mxu0 0.0
    %2236 = vmatpush1.msra.mxu0 0.0
    %2237 = vmatprep.subr.mxu0 0.0
    %2238 = vmatpush1.msra.mxu0 0.0
    %2239 = vmatprep.subr.mxu0 0.0
    %2240 = vmatpush1.msra.mxu0 0.0
    %2241 = vmatprep.subr.mxu0 0.0
    %2242 = vmatpush1.msra.mxu0 0.0
    %2243 = vmatprep.subr.mxu0 0.0
    %2244 = vmatpush1.msra.mxu0 0.0
    %2245 = vmatprep.subr.mxu0 0.0
    %2246 = vmatpush1.msra.mxu0 0.0
    %2247 = vmatprep.subr.mxu0 0.0
    %2248 = vmatpush1.msra.mxu0 0.0
    %2249 = vmatprep.subr.mxu0 0.0
    %2250 = vmatpush1.msra.mxu0 0.0
    %2251 = vmatprep.subr.mxu0 0.0
    %2252 = vmatpush1.msra.mxu0 0.0
    %2253 = vmatprep.subr.mxu0 0.0
    %2254 = vmatpush1.msra.mxu0 0.0
    %2255 = vmatprep.subr.mxu0 0.0
    %2256 = vmatpush1.msra.mxu0 0.0
    %2257 = vmatprep.subr.mxu0 0.0
    %2258 = vmatpush1.msra.mxu0 0.0
    %2259 = vmatprep.subr.mxu0 0.0
    %2260 = vmatpush1.msra.mxu0 0.0
    %2261 = vmatprep.subr.mxu0 0.0
    %2262 = vmatpush1.msra.mxu0 0.0
    %2263 = vmatprep.subr.mxu0 0.0
    %2264 = vmatpush1.msra.mxu0 0.0
    %2265 = vmatprep.subr.mxu0 0.0
    %2266 = vmatpush1.msra.mxu0 0.0
    %2267 = vmatprep.subr.mxu0 0.0
    %2268 = vmatpush1.msra.mxu0 0.0
    %2269 = vmatprep.subr.mxu0 0.0
    %2270 = vmatpush1.msra.mxu0 0.0
    %2271 = vmatprep.subr.mxu0 0.0
    %2272 = vmatpush1.msra.mxu0 0.0
    %2273 = vmatprep.subr.mxu0 0.0
    %2274 = vmatpush1.msra.mxu0 0.0
    %2275 = vmatprep.subr.mxu0 0.0
    %2276 = vmatpush1.msra.mxu0 0.0
    %2277 = vmatprep.subr.mxu0 0.0
    %2278 = vmatpush1.msra.mxu0 0.0
    %2279 = vmatprep.subr.mxu0 0.0
    %2280 = vmatpush1.msra.mxu0 0.0
    %2281 = vmatprep.mubr.f32.mxu0 0.0
    %2282 = vmatmul.mubr.f32.gmra.mrb[0].mxu0 %v2215
    %v2283 = vpop.f32.mrb[0].mxu0
    %v2284 = vadd.f32 0.0, %v2283
    %v2285 = vpop.f32.mrb[0].mxu0
    %2286 = vdwg.mxu0
    %v2288 = vsel %vm1069, %v1775, 0
    %2290 = vmatprep.subr.mxu0 0.0
    %2291 = vmatpush1.msra.mxu0 %v1058
    %2292 = vmatprep.subr.mxu0 0.0
    %2293 = vmatpush1.msra.mxu0 0.0
    %2294 = vmatprep.subr.mxu0 0.0
    %2295 = vmatpush1.msra.mxu0 0.0
    %2296 = vmatprep.subr.mxu0 0.0
    %2297 = vmatpush1.msra.mxu0 0.0
    %2298 = vmatprep.subr.mxu0 0.0
    %2299 = vmatpush1.msra.mxu0 0.0
    %2300 = vmatprep.subr.mxu0 0.0
    %2301 = vmatpush1.msra.mxu0 0.0
    %2302 = vmatprep.subr.mxu0 0.0
    %2303 = vmatpush1.msra.mxu0 0.0
    %2304 = vmatprep.subr.mxu0 0.0
    %2305 = vmatpush1.msra.mxu0 0.0
    %2306 = vmatprep.subr.mxu0 0.0
    %2307 = vmatpush1.msra.mxu0 0.0
    %2308 = vmatprep.subr.mxu0 0.0
    %2309 = vmatpush1.msra.mxu0 0.0
    %2310 = vmatprep.subr.mxu0 0.0
    %2311 = vmatpush1.msra.mxu0 0.0
    %2312 = vmatprep.subr.mxu0 0.0
    %2313 = vmatpush1.msra.mxu0 0.0
    %2314 = vmatprep.subr.mxu0 0.0
    %2315 = vmatpush1.msra.mxu0 0.0
    %2316 = vmatprep.subr.mxu0 0.0
    %2317 = vmatpush1.msra.mxu0 0.0
    %2318 = vmatprep.subr.mxu0 0.0
    %2319 = vmatpush1.msra.mxu0 0.0
    %2320 = vmatprep.subr.mxu0 0.0
    %2321 = vmatpush1.msra.mxu0 0.0
    %2322 = vmatprep.subr.mxu0 0.0
    %2323 = vmatpush1.msra.mxu0 0.0
    %2324 = vmatprep.subr.mxu0 0.0
    %2325 = vmatpush1.msra.mxu0 0.0
    %2326 = vmatprep.subr.mxu0 0.0
    %2327 = vmatpush1.msra.mxu0 0.0
    %2328 = vmatprep.subr.mxu0 0.0
    %2329 = vmatpush1.msra.mxu0 0.0
    %2330 = vmatprep.subr.mxu0 0.0
    %2331 = vmatpush1.msra.mxu0 0.0
    %2332 = vmatprep.subr.mxu0 0.0
    %2333 = vmatpush1.msra.mxu0 0.0
    %2334 = vmatprep.subr.mxu0 0.0
    %2335 = vmatpush1.msra.mxu0 0.0
    %2336 = vmatprep.subr.mxu0 0.0
    %2337 = vmatpush1.msra.mxu0 0.0
    %2338 = vmatprep.subr.mxu0 0.0
    %2339 = vmatpush1.msra.mxu0 0.0
    %2340 = vmatprep.subr.mxu0 0.0
    %2341 = vmatpush1.msra.mxu0 0.0
    %2342 = vmatprep.subr.mxu0 0.0
    %2343 = vmatpush1.msra.mxu0 0.0
    %2344 = vmatprep.subr.mxu0 0.0
    %2345 = vmatpush1.msra.mxu0 0.0
    %2346 = vmatprep.subr.mxu0 0.0
    %2347 = vmatpush1.msra.mxu0 0.0
    %2348 = vmatprep.subr.mxu0 0.0
    %2349 = vmatpush1.msra.mxu0 0.0
    %2350 = vmatprep.subr.mxu0 0.0
    %2351 = vmatpush1.msra.mxu0 0.0
    %2352 = vmatprep.subr.mxu0 0.0
    %2353 = vmatpush1.msra.mxu0 0.0
    %2354 = vmatprep.mubr.f32.mxu0 0.0
    %2355 = vmatmul.mubr.f32.gmra.mrb[0].mxu0 %v2288
    %v2356 = vpop.f32.mrb[0].mxu0
    %v2357 = vadd.f32 0.0, %v2356
    %v2358 = vpop.f32.mrb[0].mxu0
    %2359 = vdwg.mxu0
    %v2360 = vld [vmem:[%s3] sm:$0xff]
    %v2361 = vld [vmem:[%s3 + $0x8] sm:$0xff]
    %v2362 = vld [vmem:[%s3 + $0x10] sm:$0xff]
    %v2363 = vld [vmem:[%s3 + $0x18] sm:$0xff]
    %v2365 = vsel %vm1069, %v1846, 0
    %v2368 = vsel %vm1069, %v1919, 0
    %2370 = vmatprep.subr.mxu0 0.0
    %2371 = vmatpush1.msra.mxu0 %v2360
    %2372 = vmatprep.subr.mxu0 0.0
    %2373 = vmatpush1.msra.mxu0 0.0
    %2374 = vmatprep.subr.mxu0 0.0
    %2375 = vmatpush1.msra.mxu0 0.0
    %2376 = vmatprep.subr.mxu0 0.0
    %2377 = vmatpush1.msra.mxu0 0.0
    %2378 = vmatprep.subr.mxu0 0.0
    %2379 = vmatpush1.msra.mxu0 0.0
    %2380 = vmatprep.subr.mxu0 0.0
    %2381 = vmatpush1.msra.mxu0 0.0
    %2382 = vmatprep.subr.mxu0 0.0
    %2383 = vmatpush1.msra.mxu0 0.0
    %2384 = vmatprep.subr.mxu0 0.0
    %2385 = vmatpush1.msra.mxu0 0.0
    %2386 = vmatprep.subr.mxu0 0.0
    %2387 = vmatpush1.msra.mxu0 0.0
    %2388 = vmatprep.subr.mxu0 0.0
    %2389 = vmatpush1.msra.mxu0 0.0
    %2390 = vmatprep.subr.mxu0 0.0
    %2391 = vmatpush1.msra.mxu0 0.0
    %2392 = vmatprep.subr.mxu0 0.0
    %2393 = vmatpush1.msra.mxu0 0.0
    %2394 = vmatprep.subr.mxu0 0.0
    %2395 = vmatpush1.msra.mxu0 0.0
    %2396 = vmatprep.subr.mxu0 0.0
    %2397 = vmatpush1.msra.mxu0 0.0
    %2398 = vmatprep.subr.mxu0 0.0
    %2399 = vmatpush1.msra.mxu0 0.0
    %2400 = vmatprep.subr.mxu0 0.0
    %2401 = vmatpush1.msra.mxu0 0.0
    %2402 = vmatprep.subr.mxu0 0.0
    %2403 = vmatpush1.msra.mxu0 0.0
    %2404 = vmatprep.subr.mxu0 0.0
    %2405 = vmatpush1.msra.mxu0 0.0
    %2406 = vmatprep.subr.mxu0 0.0
    %2407 = vmatpush1.msra.mxu0 0.0
    %2408 = vmatprep.subr.mxu0 0.0
    %2409 = vmatpush1.msra.mxu0 0.0
    %2410 = vmatprep.subr.mxu0 0.0
    %2411 = vmatpush1.msra.mxu0 0.0
    %2412 = vmatprep.subr.mxu0 0.0
    %2413 = vmatpush1.msra.mxu0 0.0
    %2414 = vmatprep.subr.mxu0 0.0
    %2415 = vmatpush1.msra.mxu0 0.0
    %2416 = vmatprep.subr.mxu0 0.0
    %2417 = vmatpush1.msra.mxu0 0.0
    %2418 = vmatprep.subr.mxu0 0.0
    %2419 = vmatpush1.msra.mxu0 0.0
    %2420 = vmatprep.subr.mxu0 0.0
    %2421 = vmatpush1.msra.mxu0 0.0
    %2422 = vmatprep.subr.mxu0 0.0
    %2423 = vmatpush1.msra.mxu0 0.0
    %2424 = vmatprep.subr.mxu0 0.0
    %2425 = vmatpush1.msra.mxu0 0.0
    %2426 = vmatprep.subr.mxu0 0.0
    %2427 = vmatpush1.msra.mxu0 0.0
    %2428 = vmatprep.subr.mxu0 0.0
    %2429 = vmatpush1.msra.mxu0 0.0
    %2430 = vmatprep.subr.mxu0 0.0
    %2431 = vmatpush1.msra.mxu0 0.0
    %2432 = vmatprep.subr.mxu0 0.0
    %2433 = vmatpush1.msra.mxu0 0.0
    %2434 = vmatprep.mubr.f32.mxu0 0.0
    %2435 = vmatmul.mubr.f32.gmra.mrb[0].mxu0 %v2365
    %v2436 = vpop.f32.mrb[0].mxu0
    %v2437 = vadd.f32 0.0, %v2436
    %v2438 = vpop.f32.mrb[0].mxu0
    %2439 = vmatprep.mubr.f32.mxu0 0.0
    %2440 = vmatmul.mubr.f32.gmra.mrb[0].mxu0 %v2368
    %v2441 = vpop.f32.mrb[0].mxu0
    %v2442 = vadd.f32 0.0, %v2441
    %v2443 = vpop.f32.mrb[0].mxu0
    %2444 = vdwg.mxu0
    %v2446 = vsel %vm1069, %v1992, 0
    %v2449 = vsel %vm1069, %v2065, 0
    %2451 = vmatprep.subr.mxu0 0.0
    %2452 = vmatpush1.msra.mxu0 %v2361
    %2453 = vmatprep.subr.mxu0 0.0
    %2454 = vmatpush1.msra.mxu0 0.0
    %2455 = vmatprep.subr.mxu0 0.0
    %2456 = vmatpush1.msra.mxu0 0.0
    %2457 = vmatprep.subr.mxu0 0.0
    %2458 = vmatpush1.msra.mxu0 0.0
    %2459 = vmatprep.subr.mxu0 0.0
    %2460 = vmatpush1.msra.mxu0 0.0
    %2461 = vmatprep.subr.mxu0 0.0
    %2462 = vmatpush1.msra.mxu0 0.0
    %2463 = vmatprep.subr.mxu0 0.0
    %2464 = vmatpush1.msra.mxu0 0.0
    %2465 = vmatprep.subr.mxu0 0.0
    %2466 = vmatpush1.msra.mxu0 0.0
    %2467 = vmatprep.subr.mxu0 0.0
    %2468 = vmatpush1.msra.mxu0 0.0
    %2469 = vmatprep.subr.mxu0 0.0
    %2470 = vmatpush1.msra.mxu0 0.0
    %2471 = vmatprep.subr.mxu0 0.0
    %2472 = vmatpush1.msra.mxu0 0.0
    %2473 = vmatprep.subr.mxu0 0.0
    %2474 = vmatpush1.msra.mxu0 0.0
    %2475 = vmatprep.subr.mxu0 0.0
    %2476 = vmatpush1.msra.mxu0 0.0
    %2477 = vmatprep.subr.mxu0 0.0
    %2478 = vmatpush1.msra.mxu0 0.0
    %2479 = vmatprep.subr.mxu0 0.0
    %2480 = vmatpush1.msra.mxu0 0.0
    %2481 = vmatprep.subr.mxu0 0.0
    %2482 = vmatpush1.msra.mxu0 0.0
    %2483 = vmatprep.subr.mxu0 0.0
    %2484 = vmatpush1.msra.mxu0 0.0
    %2485 = vmatprep.subr.mxu0 0.0
    %2486 = vmatpush1.msra.mxu0 0.0
    %2487 = vmatprep.subr.mxu0 0.0
    %2488 = vmatpush1.msra.mxu0 0.0
    %2489 = vmatprep.subr.mxu0 0.0
    %2490 = vmatpush1.msra.mxu0 0.0
    %2491 = vmatprep.subr.mxu0 0.0
    %2492 = vmatpush1.msra.mxu0 0.0
    %2493 = vmatprep.subr.mxu0 0.0
    %2494 = vmatpush1.msra.mxu0 0.0
    %2495 = vmatprep.subr.mxu0 0.0
    %2496 = vmatpush1.msra.mxu0 0.0
    %2497 = vmatprep.subr.mxu0 0.0
    %2498 = vmatpush1.msra.mxu0 0.0
    %2499 = vmatprep.subr.mxu0 0.0
    %2500 = vmatpush1.msra.mxu0 0.0
    %2501 = vmatprep.subr.mxu0 0.0
    %2502 = vmatpush1.msra.mxu0 0.0
    %2503 = vmatprep.subr.mxu0 0.0
    %2504 = vmatpush1.msra.mxu0 0.0
    %2505 = vmatprep.subr.mxu0 0.0
    %2506 = vmatpush1.msra.mxu0 0.0
    %2507 = vmatprep.subr.mxu0 0.0
    %2508 = vmatpush1.msra.mxu0 0.0
    %2509 = vmatprep.subr.mxu0 0.0
    %2510 = vmatpush1.msra.mxu0 0.0
    %2511 = vmatprep.subr.mxu0 0.0
    %2512 = vmatpush1.msra.mxu0 0.0
    %2513 = vmatprep.subr.mxu0 0.0
    %2514 = vmatpush1.msra.mxu0 0.0
    %2515 = vmatprep.mubr.f32.mxu0 0.0
    %2516 = vmatmul.mubr.f32.gmra.mrb[0].mxu0 %v2446
    %v2517 = vpop.f32.mrb[0].mxu0
    %v2518 = vadd.f32 0.0, %v2517
    %v2519 = vpop.f32.mrb[0].mxu0
    %2520 = vmatprep.mubr.f32.mxu0 0.0
    %2521 = vmatmul.mubr.f32.gmra.mrb[0].mxu0 %v2449
    %v2522 = vpop.f32.mrb[0].mxu0
    %v2523 = vadd.f32 0.0, %v2522
    %v2524 = vpop.f32.mrb[0].mxu0
    %2525 = vdwg.mxu0
    %v2527 = vsel %vm1069, %v2138, 0
    %v2530 = vsel %vm1069, %v2211, 0
    %2532 = vmatprep.subr.mxu0 0.0
    %2533 = vmatpush1.msra.mxu0 %v2362
    %2534 = vmatprep.subr.mxu0 0.0
    %2535 = vmatpush1.msra.mxu0 0.0
    %2536 = vmatprep.subr.mxu0 0.0
    %2537 = vmatpush1.msra.mxu0 0.0
    %2538 = vmatprep.subr.mxu0 0.0
    %2539 = vmatpush1.msra.mxu0 0.0
    %2540 = vmatprep.subr.mxu0 0.0
    %2541 = vmatpush1.msra.mxu0 0.0
    %2542 = vmatprep.subr.mxu0 0.0
    %2543 = vmatpush1.msra.mxu0 0.0
    %2544 = vmatprep.subr.mxu0 0.0
    %2545 = vmatpush1.msra.mxu0 0.0
    %2546 = vmatprep.subr.mxu0 0.0
    %2547 = vmatpush1.msra.mxu0 0.0
    %2548 = vmatprep.subr.mxu0 0.0
    %2549 = vmatpush1.msra.mxu0 0.0
    %2550 = vmatprep.subr.mxu0 0.0
    %2551 = vmatpush1.msra.mxu0 0.0
    %2552 = vmatprep.subr.mxu0 0.0
    %2553 = vmatpush1.msra.mxu0 0.0
    %2554 = vmatprep.subr.mxu0 0.0
    %2555 = vmatpush1.msra.mxu0 0.0
    %2556 = vmatprep.subr.mxu0 0.0
    %2557 = vmatpush1.msra.mxu0 0.0
    %2558 = vmatprep.subr.mxu0 0.0
    %2559 = vmatpush1.msra.mxu0 0.0
    %2560 = vmatprep.subr.mxu0 0.0
    %2561 = vmatpush1.msra.mxu0 0.0
    %2562 = vmatprep.subr.mxu0 0.0
    %2563 = vmatpush1.msra.mxu0 0.0
    %2564 = vmatprep.subr.mxu0 0.0
    %2565 = vmatpush1.msra.mxu0 0.0
    %2566 = vmatprep.subr.mxu0 0.0
    %2567 = vmatpush1.msra.mxu0 0.0
    %2568 = vmatprep.subr.mxu0 0.0
    %2569 = vmatpush1.msra.mxu0 0.0
    %2570 = vmatprep.subr.mxu0 0.0
    %2571 = vmatpush1.msra.mxu0 0.0
    %2572 = vmatprep.subr.mxu0 0.0
    %2573 = vmatpush1.msra.mxu0 0.0
    %2574 = vmatprep.subr.mxu0 0.0
    %2575 = vmatpush1.msra.mxu0 0.0
    %2576 = vmatprep.subr.mxu0 0.0
    %2577 = vmatpush1.msra.mxu0 0.0
    %2578 = vmatprep.subr.mxu0 0.0
    %2579 = vmatpush1.msra.mxu0 0.0
    %2580 = vmatprep.subr.mxu0 0.0
    %2581 = vmatpush1.msra.mxu0 0.0
    %2582 = vmatprep.subr.mxu0 0.0
    %2583 = vmatpush1.msra.mxu0 0.0
    %2584 = vmatprep.subr.mxu0 0.0
    %2585 = vmatpush1.msra.mxu0 0.0
    %2586 = vmatprep.subr.mxu0 0.0
    %2587 = vmatpush1.msra.mxu0 0.0
    %2588 = vmatprep.subr.mxu0 0.0
    %2589 = vmatpush1.msra.mxu0 0.0
    %2590 = vmatprep.subr.mxu0 0.0
    %2591 = vmatpush1.msra.mxu0 0.0
    %2592 = vmatprep.subr.mxu0 0.0
    %2593 = vmatpush1.msra.mxu0 0.0
    %2594 = vmatprep.subr.mxu0 0.0
    %2595 = vmatpush1.msra.mxu0 0.0
    %2596 = vmatprep.mubr.f32.mxu0 0.0
    %2597 = vmatmul.mubr.f32.gmra.mrb[0].mxu0 %v2527
    %v2598 = vpop.f32.mrb[0].mxu0
    %v2599 = vadd.f32 0.0, %v2598
    %v2600 = vpop.f32.mrb[0].mxu0
    %2601 = vmatprep.mubr.f32.mxu0 0.0
    %2602 = vmatmul.mubr.f32.gmra.mrb[0].mxu0 %v2530
    %v2603 = vpop.f32.mrb[0].mxu0
    %v2604 = vadd.f32 0.0, %v2603
    %v2605 = vpop.f32.mrb[0].mxu0
    %2606 = vdwg.mxu0
    %v2608 = vsel %vm1069, %v2284, 0
    %v2611 = vsel %vm1069, %v2357, 0
    %2613 = vmatprep.subr.mxu0 0.0
    %2614 = vmatpush1.msra.mxu0 %v2363
    %2615 = vmatprep.subr.mxu0 0.0
    %2616 = vmatpush1.msra.mxu0 0.0
    %2617 = vmatprep.subr.mxu0 0.0
    %2618 = vmatpush1.msra.mxu0 0.0
    %2619 = vmatprep.subr.mxu0 0.0
    %2620 = vmatpush1.msra.mxu0 0.0
    %2621 = vmatprep.subr.mxu0 0.0
    %2622 = vmatpush1.msra.mxu0 0.0
    %2623 = vmatprep.subr.mxu0 0.0
    %2624 = vmatpush1.msra.mxu0 0.0
    %2625 = vmatprep.subr.mxu0 0.0
    %2626 = vmatpush1.msra.mxu0 0.0
    %2627 = vmatprep.subr.mxu0 0.0
    %2628 = vmatpush1.msra.mxu0 0.0
    %2629 = vmatprep.subr.mxu0 0.0
    %2630 = vmatpush1.msra.mxu0 0.0
    %2631 = vmatprep.subr.mxu0 0.0
    %2632 = vmatpush1.msra.mxu0 0.0
    %2633 = vmatprep.subr.mxu0 0.0
    %2634 = vmatpush1.msra.mxu0 0.0
    %2635 = vmatprep.subr.mxu0 0.0
    %2636 = vmatpush1.msra.mxu0 0.0
    %2637 = vmatprep.subr.mxu0 0.0
    %2638 = vmatpush1.msra.mxu0 0.0
    %2639 = vmatprep.subr.mxu0 0.0
    %2640 = vmatpush1.msra.mxu0 0.0
    %2641 = vmatprep.subr.mxu0 0.0
    %2642 = vmatpush1.msra.mxu0 0.0
    %2643 = vmatprep.subr.mxu0 0.0
    %2644 = vmatpush1.msra.mxu0 0.0
    %2645 = vmatprep.subr.mxu0 0.0
    %2646 = vmatpush1.msra.mxu0 0.0
    %2647 = vmatprep.subr.mxu0 0.0
    %2648 = vmatpush1.msra.mxu0 0.0
    %2649 = vmatprep.subr.mxu0 0.0
    %2650 = vmatpush1.msra.mxu0 0.0
    %2651 = vmatprep.subr.mxu0 0.0
    %2652 = vmatpush1.msra.mxu0 0.0
    %2653 = vmatprep.subr.mxu0 0.0
    %2654 = vmatpush1.msra.mxu0 0.0
    %2655 = vmatprep.subr.mxu0 0.0
    %2656 = vmatpush1.msra.mxu0 0.0
    %2657 = vmatprep.subr.mxu0 0.0
    %2658 = vmatpush1.msra.mxu0 0.0
    %2659 = vmatprep.subr.mxu0 0.0
    %2660 = vmatpush1.msra.mxu0 0.0
    %2661 = vmatprep.subr.mxu0 0.0
    %2662 = vmatpush1.msra.mxu0 0.0
    %2663 = vmatprep.subr.mxu0 0.0
    %2664 = vmatpush1.msra.mxu0 0.0
    %2665 = vmatprep.subr.mxu0 0.0
    %2666 = vmatpush1.msra.mxu0 0.0
    %2667 = vmatprep.subr.mxu0 0.0
    %2668 = vmatpush1.msra.mxu0 0.0
    %2669 = vmatprep.subr.mxu0 0.0
    %2670 = vmatpush1.msra.mxu0 0.0
    %2671 = vmatprep.subr.mxu0 0.0
    %2672 = vmatpush1.msra.mxu0 0.0
    %2673 = vmatprep.subr.mxu0 0.0
    %2674 = vmatpush1.msra.mxu0 0.0
    %2675 = vmatprep.subr.mxu0 0.0
    %2676 = vmatpush1.msra.mxu0 0.0
    %2677 = vmatprep.mubr.f32.mxu0 0.0
    %2678 = vmatmul.mubr.f32.gmra.mrb[0].mxu0 %v2608
    %v2679 = vpop.f32.mrb[0].mxu0
    %v2680 = vadd.f32 0.0, %v2679
    %v2681 = vpop.f32.mrb[0].mxu0
    %2682 = vmatprep.mubr.f32.mxu0 0.0
    %2683 = vmatmul.mubr.f32.gmra.mrb[0].mxu0 %v2611
    %v2684 = vpop.f32.mrb[0].mxu0
    %v2685 = vadd.f32 0.0, %v2684
    %v2686 = vpop.f32.mrb[0].mxu0
    %2687 = vdwg.mxu0
    %v2688 = vsel %vm48, %v2437, 0.0
    %v2689 = vsel %vm48, %v2518, 0.0
    %v2690 = vadd.f32 %v2688, %v2689
    %v2691 = vsel %vm48, %v2599, 0.0
    %v2692 = vadd.f32 %v2690, %v2691
    %v2693 = vsel %vm48, %v2680, 0.0
    %v2694 = vadd.f32 %v2692, %v2693
    %v2695 = vsel %vm48, %v2442, 0.0
    %v2696 = vsel %vm48, %v2523, 0.0
    %v2697 = vadd.f32 %v2695, %v2696
    %v2698 = vsel %vm48, %v2604, 0.0
    %v2699 = vadd.f32 %v2697, %v2698
    %v2700 = vsel %vm48, %v2685, 0.0
    %v2701 = vadd.f32 %v2699, %v2700
    %v2702 = vadd.f32 %v42, %v2694
    %v2703 = vadd.f32 %v43, %v2701
    %v2704 = vld [vmem:[%s10] sm:$0x1]
    %v2705 = vld [vmem:[%s11] sm:$0x1]
    %v2706 = vsel %vm48, %v2702, 0.0
    %2707 = vadd.xlane.f32.xlu0 %v2706
    %v2708 = vpop.xlane.xlu0 %2707
    %v2709 = vsel %vm48, %v2703, 0.0
    %2710 = vadd.xlane.f32.xlu0 %v2709
    %v2711 = vpop.xlane.xlu0 %2710
    %v2712 = vmul.f32 %v2708, %v55
    %v2713 = vmul.f32 %v2711, %v55
    %v2714 = vsub.f32 %v2702, %v2712
    %v2715 = vsub.f32 %v2703, %v2713
    %v2716 = vmul.f32 %v2714, %v2714
    %v2717 = vmul.f32 %v2715, %v2715
    %v2718 = vsel %vm48, %v2716, 0.0
    %2719 = vadd.xlane.f32.xlu0 %v2718
    %v2720 = vpop.xlane.xlu0 %2719
    %v2721 = vsel %vm48, %v2717, 0.0
    %2722 = vadd.xlane.f32.xlu0 %v2721
    %v2723 = vpop.xlane.xlu0 %2722
    %v2724 = vmul.f32 %v2720, %v68
    %v2725 = vmul.f32 %v2723, %v68
    %v2726 = vrsqrt.pop %v2724
    %v2727 = vmul.f32 %v2724, %v2726
    %vm2728 = vcmp.eq.f32.partialorder %v2724, inf
    %v2729 = vsel %vm2728, %v2724, %v2727
    %vm2730 = vcmp.eq.f32.partialorder %v2724, 0.0
    %v2731 = vand.u32 %v2724, 2147483648
    %v2732 = vsel %vm2730, %v2731, %v2729
    %v2733 = vrsqrt.pop %v2725
    %v2734 = vmul.f32 %v2725, %v2733
    %vm2735 = vcmp.eq.f32.partialorder %v2725, inf
    %v2736 = vsel %vm2735, %v2725, %v2734
    %vm2737 = vcmp.eq.f32.partialorder %v2725, 0.0
    %v2738 = vand.u32 %v2725, 2147483648
    %v2739 = vsel %vm2737, %v2738, %v2736
    %v2741 = vlaneseq
    %v2742 = vshrl.u32 %v2741, 7
    %v2743 = vsub.s32 0, %v2742
    %v2744 = vrot.slane %v2704, %v2743
    %v2746 = vmul.f32 %v2744, %v2714
    %v2747 = vmul.f32 %v2744, %v2715
    %v2748 = vadd.f32 %v2732, 1e-06
    %v2749 = vadd.f32 %v2739, 1e-06
    %v2750 = vrcp.pop %v2748
    %v2751 = vmul.f32 %v2746, %v2750
    %v2752 = vrcp.pop %v2749
    %v2753 = vmul.f32 %v2747, %v2752
    %v2755 = vlaneseq
    %v2756 = vshrl.u32 %v2755, 7
    %v2757 = vsub.s32 0, %v2756
    %v2758 = vrot.slane %v2705, %v2757
    %v2760 = vadd.f32 %v2751, %v2758
    %v2761 = vadd.f32 %v2753, %v2758
    %v2762 = vld [vmem:[%s6] sm:$0xff]
    %v2763 = vld [vmem:[%s6 + $0x8] sm:$0xff]
    %v2764 = vld [vmem:[%s6 + $0x10] sm:$0xff]
    %v2765 = vld [vmem:[%s6 + $0x18] sm:$0xff]
    %v2766 = vld [vmem:[%s7] sm:$0x1]
    %v2768 = vlaneseq
    %v2769 = vshrl.u32 %v2768, 7
    %v2770 = vsub.s32 0, %v2769
    %v2771 = vrot.slane %v2766, %v2770
    %v2774 = vsel %vm48, %v2760, 0
    %v2777 = vsel %vm48, %v2761, 0
    %2779 = vmatprep.subr.mxu0 0.0
    %2780 = vmatpush1.msra.mxu0 %v2762
    %2781 = vmatprep.subr.mxu0 0.0
    %2782 = vmatpush1.msra.mxu0 %v2763
    %2783 = vmatprep.subr.mxu0 0.0
    %2784 = vmatpush1.msra.mxu0 %v2764
    %2785 = vmatprep.subr.mxu0 0.0
    %2786 = vmatpush1.msra.mxu0 %v2765
    %2787 = vmatprep.subr.mxu0 0.0
    %2788 = vmatpush1.msra.mxu0 0.0
    %2789 = vmatprep.subr.mxu0 0.0
    %2790 = vmatpush1.msra.mxu0 0.0
    %2791 = vmatprep.subr.mxu0 0.0
    %2792 = vmatpush1.msra.mxu0 0.0
    %2793 = vmatprep.subr.mxu0 0.0
    %2794 = vmatpush1.msra.mxu0 0.0
    %2795 = vmatprep.subr.mxu0 0.0
    %2796 = vmatpush1.msra.mxu0 0.0
    %2797 = vmatprep.subr.mxu0 0.0
    %2798 = vmatpush1.msra.mxu0 0.0
    %2799 = vmatprep.subr.mxu0 0.0
    %2800 = vmatpush1.msra.mxu0 0.0
    %2801 = vmatprep.subr.mxu0 0.0
    %2802 = vmatpush1.msra.mxu0 0.0
    %2803 = vmatprep.subr.mxu0 0.0
    %2804 = vmatpush1.msra.mxu0 0.0
    %2805 = vmatprep.subr.mxu0 0.0
    %2806 = vmatpush1.msra.mxu0 0.0
    %2807 = vmatprep.subr.mxu0 0.0
    %2808 = vmatpush1.msra.mxu0 0.0
    %2809 = vmatprep.subr.mxu0 0.0
    %2810 = vmatpush1.msra.mxu0 0.0
    %2811 = vmatprep.subr.mxu0 0.0
    %2812 = vmatpush1.msra.mxu0 0.0
    %2813 = vmatprep.subr.mxu0 0.0
    %2814 = vmatpush1.msra.mxu0 0.0
    %2815 = vmatprep.subr.mxu0 0.0
    %2816 = vmatpush1.msra.mxu0 0.0
    %2817 = vmatprep.subr.mxu0 0.0
    %2818 = vmatpush1.msra.mxu0 0.0
    %2819 = vmatprep.subr.mxu0 0.0
    %2820 = vmatpush1.msra.mxu0 0.0
    %2821 = vmatprep.subr.mxu0 0.0
    %2822 = vmatpush1.msra.mxu0 0.0
    %2823 = vmatprep.subr.mxu0 0.0
    %2824 = vmatpush1.msra.mxu0 0.0
    %2825 = vmatprep.subr.mxu0 0.0
    %2826 = vmatpush1.msra.mxu0 0.0
    %2827 = vmatprep.subr.mxu0 0.0
    %2828 = vmatpush1.msra.mxu0 0.0
    %2829 = vmatprep.subr.mxu0 0.0
    %2830 = vmatpush1.msra.mxu0 0.0
    %2831 = vmatprep.subr.mxu0 0.0
    %2832 = vmatpush1.msra.mxu0 0.0
    %2833 = vmatprep.subr.mxu0 0.0
    %2834 = vmatpush1.msra.mxu0 0.0
    %2835 = vmatprep.subr.mxu0 0.0
    %2836 = vmatpush1.msra.mxu0 0.0
    %2837 = vmatprep.subr.mxu0 0.0
    %2838 = vmatpush1.msra.mxu0 0.0
    %2839 = vmatprep.subr.mxu0 0.0
    %2840 = vmatpush1.msra.mxu0 0.0
    %2841 = vmatprep.subr.mxu0 0.0
    %2842 = vmatpush1.msra.mxu0 0.0
    %2843 = vmatprep.mubr.f32.mxu0 0.0
    %2844 = vmatmul.mubr.f32.gmra.mrb[0].mxu0 %v2774
    %v2845 = vpop.f32.mrb[0].mxu0
    %v2846 = vadd.f32 %v2771, %v2845
    %v2847 = vpop.f32.mrb[0].mxu0
    %2848 = vmatprep.mubr.f32.mxu0 0.0
    %2849 = vmatmul.mubr.f32.gmra.mrb[0].mxu0 %v2777
    %v2850 = vpop.f32.mrb[0].mxu0
    %v2851 = vadd.f32 %v2771, %v2850
    %v2852 = vpop.f32.mrb[0].mxu0
    %2853 = vdwg.mxu0
    %v2854 = vmax.f32 %v2846, 0.0
    %v2855 = vmax.f32 %v2851, 0.0
    %v2856 = vld [vmem:[%s8] sm:$0xff]
    %v2857 = vld [vmem:[%s8 + $0x8] sm:$0xff]
    %v2858 = vld [vmem:[%s8 + $0x10] sm:$0xff]
    %v2859 = vld [vmem:[%s8 + $0x18] sm:$0xff]
    %v2860 = vld [vmem:[%s8 + $0x20] sm:$0xff]
    %v2861 = vld [vmem:[%s8 + $0x28] sm:$0xff]
    %v2862 = vld [vmem:[%s8 + $0x30] sm:$0xff]
    %v2863 = vld [vmem:[%s8 + $0x38] sm:$0xff]
    %v2864 = vld [vmem:[%s9] sm:$0x1]
    %v2866 = vlaneseq
    %v2867 = vshrl.u32 %v2866, 7
    %v2868 = vsub.s32 0, %v2867
    %v2869 = vrot.slane %v2864, %v2868
    %vm2871 = vcmask 523264
    %v2873 = vsel %vm2871, %v2854, 0
    %v2876 = vsel %vm2871, %v2855, 0
    %2878 = vmatprep.subr.mxu0 0.0
    %2879 = vmatpush1.msra.mxu0 %v2856
    %2880 = vmatprep.subr.mxu0 0.0
    %2881 = vmatpush1.msra.mxu0 %v2857
    %2882 = vmatprep.subr.mxu0 0.0
    %2883 = vmatpush1.msra.mxu0 %v2858
    %2884 = vmatprep.subr.mxu0 0.0
    %2885 = vmatpush1.msra.mxu0 %v2859
    %2886 = vmatprep.subr.mxu0 0.0
    %2887 = vmatpush1.msra.mxu0 %v2860
    %2888 = vmatprep.subr.mxu0 0.0
    %2889 = vmatpush1.msra.mxu0 %v2861
    %2890 = vmatprep.subr.mxu0 0.0
    %2891 = vmatpush1.msra.mxu0 %v2862
    %2892 = vmatprep.subr.mxu0 0.0
    %2893 = vmatpush1.msra.mxu0 %v2863
    %2894 = vmatprep.subr.mxu0 0.0
    %2895 = vmatpush1.msra.mxu0 0.0
    %2896 = vmatprep.subr.mxu0 0.0
    %2897 = vmatpush1.msra.mxu0 0.0
    %2898 = vmatprep.subr.mxu0 0.0
    %2899 = vmatpush1.msra.mxu0 0.0
    %2900 = vmatprep.subr.mxu0 0.0
    %2901 = vmatpush1.msra.mxu0 0.0
    %2902 = vmatprep.subr.mxu0 0.0
    %2903 = vmatpush1.msra.mxu0 0.0
    %2904 = vmatprep.subr.mxu0 0.0
    %2905 = vmatpush1.msra.mxu0 0.0
    %2906 = vmatprep.subr.mxu0 0.0
    %2907 = vmatpush1.msra.mxu0 0.0
    %2908 = vmatprep.subr.mxu0 0.0
    %2909 = vmatpush1.msra.mxu0 0.0
    %2910 = vmatprep.subr.mxu0 0.0
    %2911 = vmatpush1.msra.mxu0 0.0
    %2912 = vmatprep.subr.mxu0 0.0
    %2913 = vmatpush1.msra.mxu0 0.0
    %2914 = vmatprep.subr.mxu0 0.0
    %2915 = vmatpush1.msra.mxu0 0.0
    %2916 = vmatprep.subr.mxu0 0.0
    %2917 = vmatpush1.msra.mxu0 0.0
    %2918 = vmatprep.subr.mxu0 0.0
    %2919 = vmatpush1.msra.mxu0 0.0
    %2920 = vmatprep.subr.mxu0 0.0
    %2921 = vmatpush1.msra.mxu0 0.0
    %2922 = vmatprep.subr.mxu0 0.0
    %2923 = vmatpush1.msra.mxu0 0.0
    %2924 = vmatprep.subr.mxu0 0.0
    %2925 = vmatpush1.msra.mxu0 0.0
    %2926 = vmatprep.subr.mxu0 0.0
    %2927 = vmatpush1.msra.mxu0 0.0
    %2928 = vmatprep.subr.mxu0 0.0
    %2929 = vmatpush1.msra.mxu0 0.0
    %2930 = vmatprep.subr.mxu0 0.0
    %2931 = vmatpush1.msra.mxu0 0.0
    %2932 = vmatprep.subr.mxu0 0.0
    %2933 = vmatpush1.msra.mxu0 0.0
    %2934 = vmatprep.subr.mxu0 0.0
    %2935 = vmatpush1.msra.mxu0 0.0
    %2936 = vmatprep.subr.mxu0 0.0
    %2937 = vmatpush1.msra.mxu0 0.0
    %2938 = vmatprep.subr.mxu0 0.0
    %2939 = vmatpush1.msra.mxu0 0.0
    %2940 = vmatprep.subr.mxu0 0.0
    %2941 = vmatpush1.msra.mxu0 0.0
    %2942 = vmatprep.mubr.f32.mxu0 0.0
    %2943 = vmatmul.mubr.f32.gmra.mrb[0].mxu0 %v2873
    %v2944 = vpop.f32.mrb[0].mxu0
    %v2945 = vadd.f32 %v2869, %v2944
    %v2946 = vpop.f32.mrb[0].mxu0
    %2947 = vmatprep.mubr.f32.mxu0 0.0
    %2948 = vmatmul.mubr.f32.gmra.mrb[0].mxu0 %v2876
    %v2949 = vpop.f32.mrb[0].mxu0
    %v2950 = vadd.f32 %v2869, %v2949
    %v2951 = vpop.f32.mrb[0].mxu0
    %2952 = vdwg.mxu0
    %v2953 = vadd.f32 %v2702, %v2945
    %v2954 = vadd.f32 %v2703, %v2950
    %2955 = vst.msk [vmem:[#allocation2] sm:$0xff] %vm48, %v2953
    %2956 = vst.msk [vmem:[#allocation2 + $0x8] sm:$0xff] %vm48, %v2954
    // Predicated region
    $region50: #{tpu_custom_call.1} parent=1 // pred_check
      _
    $region51: #{tpu_custom_call.1} parent=1 // pred_check_branch
      %2958 = sbr.rel (0) target = $region53
    $region52: #{tpu_custom_call.1} parent=1 // pred_region
      %s2960 = ssub.s32 256, 256
      %2961 = vsyncadd [#allocation3], %s2960
      %s2962 = sshll.u32 [#allocation2], 4
      %s2963 = int_to_ptr.vmem [resolvable:$true] %s2962
      %2968 = dma.vmem_to_hbm [thread:$0]  %s2963, 256, %s12, [#allocation3], 128, 128, 8
    $region53: #{tpu_custom_call.1} parent=1 // pred_fallthru
      _
    // Predicated region
    $region54: #{tpu_custom_call.1} parent=1 // pred_check
      _
    $region55: #{tpu_custom_call.1} parent=1 // pred_check_branch
      %2970 = sbr.rel (0) target = $region57
    $region56: #{tpu_custom_call.1} parent=1 // pred_region
      %2971 = dma.done [#allocation3], 256
    $region57: #{tpu_custom_call.1} parent=1 // pred_fallthru
      _
    %2972 = vsyncpa [#allocation3], 1

</llo_original>
